<compile_context>
chip_gen: v7x
topology: tpu7x:2x2x1
jax: 0.10.0
libtpu: 0.0.40
codegen_flags: <defaults>
</compile_context>

<pallas_src>
import functools

import jax
import jax.numpy as jnp
from jax import lax
from jax.experimental import pallas as pl
from jax.experimental.pallas import tpu as pltpu


def _attention_kernel(xq_ref, xf_ref, wq_ref, wkv_ref, wp_ref, bp_ref,
                      o_ref, kv_ref, q_ref, y_ref, *,
                      num_heads: int, head_dim: int, dim: int):
    # Blocks:
    #   xq_ref  (1, tq, C)  query-tile slice of x
    #   xf_ref  (1, N,  C)  full-sequence x (index constant in the q-tile axis)
    #   wq_ref  (C, C)   bf16, W_q^T with softmax scale folded in
    #   wkv_ref (C, 2C)  bf16, [W_k^T | W_v^T]
    #   wp_ref  (C, C)   bf16, W_p^T
    #   bp_ref  (1, C)   f32 projection bias
    #   o_ref   (1, tq, C)
    # Scratch:
    #   kv_ref  (2, N, C) bf16   K / V for the current batch element
    #   q_ref   (tq, C)  bf16    scaled Q for the current tile
    #   y_ref   (tq, C)  bf16    concatenated per-head attention outputs

    # K/V projection once per batch element; the scratch persists across the
    # (arbitrary) query-tile grid axis.
    @pl.when(pl.program_id(1) == 0)
    def _():
        xf = xf_ref[0].astype(jnp.bfloat16)                        # (N, C)
        kv = jnp.dot(xf, wkv_ref[...],
                     preferred_element_type=jnp.float32)           # (N, 2C) f32
        kv_ref[0] = kv[:, :dim].astype(jnp.bfloat16)               # K
        kv_ref[1] = kv[:, dim:].astype(jnp.bfloat16)               # V

    # Q projection for the current query tile (scale pre-folded into Wq^T).
    xq = xq_ref[0].astype(jnp.bfloat16)                            # (tq, C)
    q_ref[...] = jnp.dot(xq, wq_ref[...],
                         preferred_element_type=jnp.float32
                         ).astype(jnp.bfloat16)

    # Per-head attention.  Each head's output is written into its column slot
    # of y_ref, so the output projection below is a single full-K MXU matmul
    # and no (N_heads x K=Dh) matmuls or concatenates are needed.
    for h in range(num_heads):
        lo = h * head_dim
        hi = lo + head_dim
        qh = q_ref[:, lo:hi]                                       # (tq, Dh) bf16
        kh = kv_ref[0, :, lo:hi]                                   # (N, Dh) bf16
        vh = kv_ref[1, :, lo:hi]                                   # (N, Dh) bf16

        # s = qh @ kh^T without an explicit transpose (contract on Dh).
        s = lax.dot_general(qh, kh, (((1,), (1,)), ((), ())),
                            preferred_element_type=jnp.float32)    # (tq, N) f32
        s = s - jnp.max(s, axis=-1, keepdims=True)
        p = jnp.exp(s)
        inv = pl.reciprocal(jnp.sum(p, axis=-1, keepdims=True), approx=True)
        p = (p * inv).astype(jnp.bfloat16)

        y_ref[:, lo:hi] = jnp.dot(p, vh,
                                  preferred_element_type=jnp.float32
                                  ).astype(jnp.bfloat16)

    # Output projection + bias: one lane-dense (tq, C) store.
    out = jnp.dot(y_ref[...], wp_ref[...],
                  preferred_element_type=jnp.float32)              # (tq, C) f32
    o_ref[0] = (out + bp_ref[...]).astype(o_ref.dtype)


def attention_pallas(x, wq, wk, wv, wp, bp, *, num_heads: int):
    B, N, C = x.shape
    head_dim = C // num_heads
    scale = head_dim ** (-0.5)

    # Wrapper-side layout plumbing (free): pre-transpose, fold the scale into
    # W_q, fuse K/V weights, and cast all MXU weight operands to bf16.
    wq_t = (wq * scale).T.astype(jnp.bfloat16)                      # (C, C)
    wkv_t = jnp.concatenate([wk.T, wv.T], axis=1).astype(jnp.bfloat16)  # (C, 2C)
    wp_t = wp.T.astype(jnp.bfloat16)                                # (C, C)
    bp2 = bp.reshape(1, C).astype(jnp.float32)

    # Query tile: whole sequence for short N, 256 otherwise (divisible by 8,
    # last partial tile handled by Pallas block masking).
    tq = N if N <= 256 else 256
    nq = pl.cdiv(N, tq)

    # Explicit VMEM budget: double-buffered blocks + weights + scratch + live
    # intermediates.  Capped at 80% of physical VMEM for compiler headroom.
    bf16, f32 = 2, 4
    wbytes = (C * C + 2 * C * C + C * C) * bf16 + C * f32
    est = (
        2 * tq * C * f32          # x query tile (double-buffered)
        + 2 * N * C * f32         # x full block (double-buffered)
        + 2 * tq * C * f32        # output tile (double-buffered)
        + 2 * wbytes              # weight / bias buffers (<= 2 pipeline bufs)
        + 2 * N * C * bf16        # K/V scratch
        + 2 * tq * C * bf16       # q + y scratch
        + 2 * tq * N * f32        # one head's scores + probs
        + 4 * tq * C * f32        # misc f32 intermediates
    )
    try:
        vmem_cap = pltpu.get_tpu_info().vmem_capacity_bytes
    except Exception:
        vmem_cap = 64 * 1024 * 1024  # v7x-safe fallback
    vmem_limit = int(min(max(int(1.5 * est), 32 * 1024 * 1024),
                         int(0.8 * vmem_cap)))

    kernel = functools.partial(_attention_kernel, num_heads=num_heads,
                               head_dim=head_dim, dim=C)

    def build(single_buffer_weights: bool):
        wmode = ({"pipeline_mode": pl.Buffered(1)}
                 if single_buffer_weights else {})
        grid_spec = pltpu.PrefetchScalarGridSpec(
            num_scalar_prefetch=0,
            grid=(B, nq),
            in_specs=[
                pl.BlockSpec((1, tq, C), lambda b, q: (b, q, 0)),      # x (q tile)
                pl.BlockSpec((1, N, C), lambda b, q: (b, 0, 0)),       # x (full, K/V)
                pl.BlockSpec((C, C), lambda b, q: (0, 0), **wmode),    # Wq^T * scale
                pl.BlockSpec((C, 2 * C), lambda b, q: (0, 0), **wmode),  # [Wk^T|Wv^T]
                pl.BlockSpec((C, C), lambda b, q: (0, 0), **wmode),    # Wp^T
                pl.BlockSpec((1, C), lambda b, q: (0, 0), **wmode),    # b_proj
            ],
            out_specs=pl.BlockSpec((1, tq, C), lambda b, q: (b, q, 0)),
            scratch_shapes=[
                pltpu.VMEM((2, N, C), jnp.bfloat16),   # K | V (per batch elem)
                pltpu.VMEM((tq, C), jnp.bfloat16),     # Q for current tile
                pltpu.VMEM((tq, C), jnp.bfloat16),     # concat head outputs
            ],
        )
        return pl.pallas_call(
            kernel,
            out_shape=jax.ShapeDtypeStruct((B, N, C), x.dtype),
            grid_spec=grid_spec,
            compiler_params=pltpu.CompilerParams(
                dimension_semantics=("parallel", "arbitrary"),
                vmem_limit_bytes=vmem_limit,
            ),
        )

    args = (x, x, wq_t, wkv_t, wp_t, bp2)
    try:
        return build(True)(*args)
    except Exception:
        # Fallback if pipeline_mode=pl.Buffered(1) is not supported in this
        # jax build; only affects weight double-buffering VMEM, not results.
        return build(False)(*args)


def attention_reference(x, wq, wk, wv, wp, bp, *, num_heads: int):
    """Pure-JAX reference mirroring the PyTorch forward exactly (f32)."""
    B, N, C = x.shape
    head_dim = C // num_heads
    scale = head_dim ** (-0.5)

    q = x @ wq.T
    k = x @ wk.T
    v = x @ wv.T
    q = q.reshape(B, N, num_heads, head_dim).transpose(0, 2, 1, 3)
    k = k.reshape(B, N, num_heads, head_dim).transpose(0, 2, 1, 3)
    v = v.reshape(B, N, num_heads, head_dim).transpose(0, 2, 1, 3)
    q = q * scale
    attn = q @ jnp.swapaxes(k, -2, -1)
    attn = jax.nn.softmax(attn, axis=-1)
    out = (attn @ v).transpose(0, 2, 1, 3).reshape(B, N, C)
    out = out @ wp.T + bp
    return out


if __name__ == "__main__":
    # Small shapes consistent with the module: B=2, N=8 tokens, C=32, 8 heads.
    B, N, C = 2, 8, 32
    num_heads = 8

    key = jax.random.PRNGKey(0)
    kx, kq, kk, kv, kp, kb = jax.random.split(key, 6)

    x = jax.random.normal(kx, (B, N, C), dtype=jnp.float32)
    wq = 0.02 * jax.random.normal(kq, (C, C), dtype=jnp.float32)
    wk = 0.02 * jax.random.normal(kk, (C, C), dtype=jnp.float32)
    wv = 0.02 * jax.random.normal(kv, (C, C), dtype=jnp.float32)
    wp = 0.02 * jax.random.normal(kp, (C, C), dtype=jnp.float32)
    bp = 0.02 * jax.random.normal(kb, (C,), dtype=jnp.float32)

    out = attention_pallas(x, wq, wk, wv, wp, bp, num_heads=num_heads)
    out = jax.block_until_ready(out)

    ref = attention_reference(x, wq, wk, wv, wp, bp, num_heads=num_heads)
    assert out.shape == (B, N, C)
    max_err = float(jnp.max(jnp.abs(out - ref)))
    # Tolerance accounts for bf16 MXU operands (x, q/k/v, y, weights) with f32
    # accumulation plus the approx reciprocal in the softmax normalization.
    assert jnp.allclose(out, ref, atol=5e-3, rtol=5e-2), (
        f"mismatch vs reference (max abs err {max_err:.3e})")

    print("KERNEL_OK")
</pallas_src>

<mosaic_0001>
module attributes {stable_mosaic.version = 11 : i64} {
  func.func @_attention_kernel(%arg0: i32, %arg1: i32, %arg2: memref<1x8x32xf32, #tpu.memory_space<vmem>>, %arg3: memref<1x8x32xf32, #tpu.memory_space<vmem>>, %arg4: memref<32x32xbf16, #tpu.memory_space<vmem>>, %arg5: memref<32x64xbf16, #tpu.memory_space<vmem>>, %arg6: memref<32x32xbf16, #tpu.memory_space<vmem>>, %arg7: memref<1x32xf32, #tpu.memory_space<vmem>>, %arg8: memref<1x8x32xf32, #tpu.memory_space<vmem>>, %arg9: memref<2x8x32xbf16, #tpu.memory_space<vmem>>, %arg10: memref<8x32xbf16, #tpu.memory_space<vmem>>, %arg11: memref<8x32xbf16, #tpu.memory_space<vmem>>) attributes {dimension_semantics = [#tpu.dimension_semantics<parallel>, #tpu.dimension_semantics<arbitrary>], iteration_bounds = array<i64: 2, 1>, scalar_prefetch = 0 : i64, scratch_operands = 3 : i64, tpu.core_type = #tpu.core_type<tc>, window_params = [{transform_indices = @transform_0, window_bounds = array<i64: 1, 8, 32>}, {transform_indices = @transform_1, window_bounds = array<i64: 1, 8, 32>}, {pipeline_mode = #tpu.pipeline_mode<synchronous>, transform_indices = @transform_2, window_bounds = array<i64: 32, 32>}, {pipeline_mode = #tpu.pipeline_mode<synchronous>, transform_indices = @transform_3, window_bounds = array<i64: 32, 64>}, {pipeline_mode = #tpu.pipeline_mode<synchronous>, transform_indices = @transform_4, window_bounds = array<i64: 32, 32>}, {pipeline_mode = #tpu.pipeline_mode<synchronous>, transform_indices = @transform_5, window_bounds = array<i64: 1, 32>}, {transform_indices = @transform_6, window_bounds = array<i64: 1, 8, 32>}]} {
    %c0_i32 = arith.constant 0 : i32
    %0 = arith.cmpi eq, %arg1, %c0_i32 : i32
    %1 = arith.extui %0 : i1 to i32
    %c0_i32_0 = arith.constant 0 : i32
    %2 = arith.cmpi ne, %1, %c0_i32_0 : i32
    scf.if %2 {
      %c0_121 = arith.constant 0 : index
      %c0_122 = arith.constant 0 : index
      %c0_123 = arith.constant 0 : index
      %179 = vector.load %arg3[%c0_121, %c0_122, %c0_123] : memref<1x8x32xf32, #tpu.memory_space<vmem>>, vector<1x8x32xf32>
      %180 = vector.shape_cast %179 : vector<1x8x32xf32> to vector<8x32xf32>
      %181 = arith.truncf %180 : vector<8x32xf32> to vector<8x32xbf16>
      %c0_124 = arith.constant 0 : index
      %c0_125 = arith.constant 0 : index
      %182 = vector.load %arg5[%c0_124, %c0_125] : memref<32x64xbf16, #tpu.memory_space<vmem>>, vector<32x64xbf16>
      %cst_126 = arith.constant dense<0.000000e+00> : vector<8x64xf32>
      %183 = tpu.matmul %181, %182, %cst_126 {dimension_numbers = #tpu.dot_dimension_numbers<[1], [0], [0], [1], [0, 0, 1, 1], [], []>} : vector<8x32xbf16>, vector<32x64xbf16>, vector<8x64xf32> -> vector<8x64xf32>
      %184 = vector.extract_strided_slice %183 {offsets = [0, 0], sizes = [8, 32], strides = [1, 1]} : vector<8x64xf32> to vector<8x32xf32>
      %185 = arith.truncf %184 : vector<8x32xf32> to vector<8x32xbf16>
      %c0_127 = arith.constant 0 : index
      %c0_128 = arith.constant 0 : index
      %c0_129 = arith.constant 0 : index
      %186 = vector.load %arg9[%c0_127, %c0_128, %c0_129] : memref<2x8x32xbf16, #tpu.memory_space<vmem>>, vector<1x8x32xbf16>
      %187 = vector.shape_cast %186 : vector<1x8x32xbf16> to vector<8x32xbf16>
      %188 = vector.shape_cast %185 : vector<8x32xbf16> to vector<1x8x32xbf16>
      tpu.vector_store %arg9[%c0_127, %c0_128, %c0_129], %188 {strides = array<i32>} : memref<2x8x32xbf16, #tpu.memory_space<vmem>>, vector<1x8x32xbf16>,
      %189 = vector.extract_strided_slice %183 {offsets = [0, 32], sizes = [8, 32], strides = [1, 1]} : vector<8x64xf32> to vector<8x32xf32>
      %190 = arith.truncf %189 : vector<8x32xf32> to vector<8x32xbf16>
      %c1_130 = arith.constant 1 : index
      %c0_131 = arith.constant 0 : index
      %c0_132 = arith.constant 0 : index
      %191 = vector.load %arg9[%c1_130, %c0_131, %c0_132] : memref<2x8x32xbf16, #tpu.memory_space<vmem>>, vector<1x8x32xbf16>
      %192 = vector.shape_cast %191 : vector<1x8x32xbf16> to vector<8x32xbf16>
      %193 = vector.shape_cast %190 : vector<8x32xbf16> to vector<1x8x32xbf16>
      tpu.vector_store %arg9[%c1_130, %c0_131, %c0_132], %193 {strides = array<i32>} : memref<2x8x32xbf16, #tpu.memory_space<vmem>>, vector<1x8x32xbf16>,
    } else {
    }
    %c0 = arith.constant 0 : index
    %c0_1 = arith.constant 0 : index
    %c0_2 = arith.constant 0 : index
    %3 = vector.load %arg2[%c0, %c0_1, %c0_2] : memref<1x8x32xf32, #tpu.memory_space<vmem>>, vector<1x8x32xf32>
    %4 = vector.shape_cast %3 : vector<1x8x32xf32> to vector<8x32xf32>
    %5 = arith.truncf %4 : vector<8x32xf32> to vector<8x32xbf16>
    %c0_3 = arith.constant 0 : index
    %c0_4 = arith.constant 0 : index
    %6 = vector.load %arg4[%c0_3, %c0_4] : memref<32x32xbf16, #tpu.memory_space<vmem>>, vector<32x32xbf16>
    %cst = arith.constant dense<0.000000e+00> : vector<8x32xf32>
    %7 = tpu.matmul %5, %6, %cst {dimension_numbers = #tpu.dot_dimension_numbers<[1], [0], [0], [1], [0, 0, 1, 1], [], []>} : vector<8x32xbf16>, vector<32x32xbf16>, vector<8x32xf32> -> vector<8x32xf32>
    %8 = arith.truncf %7 : vector<8x32xf32> to vector<8x32xbf16>
    %c0_5 = arith.constant 0 : index
    %c0_6 = arith.constant 0 : index
    %9 = vector.load %arg10[%c0_5, %c0_6] : memref<8x32xbf16, #tpu.memory_space<vmem>>, vector<8x32xbf16>
    tpu.vector_store %arg10[%c0_5, %c0_6], %8 {strides = array<i32>} : memref<8x32xbf16, #tpu.memory_space<vmem>>, vector<8x32xbf16>,
    %c0_7 = arith.constant 0 : index
    %c0_8 = arith.constant 0 : index
    %10 = vector.load %arg10[%c0_7, %c0_8] : memref<8x32xbf16, #tpu.memory_space<vmem>>, vector<8x4xbf16>
    %c0_9 = arith.constant 0 : index
    %c0_10 = arith.constant 0 : index
    %c0_11 = arith.constant 0 : index
    %11 = vector.load %arg9[%c0_9, %c0_10, %c0_11] : memref<2x8x32xbf16, #tpu.memory_space<vmem>>, vector<1x8x4xbf16>
    %12 = vector.shape_cast %11 : vector<1x8x4xbf16> to vector<8x4xbf16>
    %c1 = arith.constant 1 : index
    %c0_12 = arith.constant 0 : index
    %c0_13 = arith.constant 0 : index
    %13 = vector.load %arg9[%c1, %c0_12, %c0_13] : memref<2x8x32xbf16, #tpu.memory_space<vmem>>, vector<1x8x4xbf16>
    %14 = vector.shape_cast %13 : vector<1x8x4xbf16> to vector<8x4xbf16>
    %cst_14 = arith.constant dense<0.000000e+00> : vector<8x8xf32>
    %15 = tpu.matmul %10, %12, %cst_14 {dimension_numbers = #tpu.dot_dimension_numbers<[1], [1], [0], [0], [0, 0, 1, 0], [], []>} : vector<8x4xbf16>, vector<8x4xbf16>, vector<8x8xf32> -> vector<8x8xf32>
    %cst_15 = arith.constant dense<0xFF800000> : vector<8xf32>
    %16 = vector.multi_reduction <maximumf>, %15, %cst_15 [1] : vector<8x8xf32> to vector<8xf32>
    %17 = vector.shape_cast %16 : vector<8xf32> to vector<8x1xf32>
    %18 = vector.broadcast %17 : vector<8x1xf32> to vector<8x8xf32>
    %19 = arith.subf %15, %18 : vector<8x8xf32>
    %20 = math.exp %19 : vector<8x8xf32>
    %cst_16 = arith.constant dense<0.000000e+00> : vector<8xf32>
    %21 = vector.multi_reduction <add>, %20, %cst_16 [1] : vector<8x8xf32> to vector<8xf32>
    %22 = vector.shape_cast %21 : vector<8xf32> to vector<8x1xf32>
    %23 = tpu.reciprocal %22 {approx = true} : vector<8x1xf32> -> vector<8x1xf32>
    %24 = vector.broadcast %23 : vector<8x1xf32> to vector<8x8xf32>
    %25 = arith.mulf %20, %24 : vector<8x8xf32>
    %26 = arith.truncf %25 : vector<8x8xf32> to vector<8x8xbf16>
    %cst_17 = arith.constant dense<0.000000e+00> : vector<8x4xf32>
    %27 = tpu.matmul %26, %14, %cst_17 {dimension_numbers = #tpu.dot_dimension_numbers<[1], [0], [0], [1], [0, 0, 1, 1], [], []>} : vector<8x8xbf16>, vector<8x4xbf16>, vector<8x4xf32> -> vector<8x4xf32>
    %28 = arith.truncf %27 : vector<8x4xf32> to vector<8x4xbf16>
    %c0_18 = arith.constant 0 : index
    %c0_19 = arith.constant 0 : index
    %29 = vector.load %arg11[%c0_18, %c0_19] : memref<8x32xbf16, #tpu.memory_space<vmem>>, vector<8x4xbf16>
    tpu.vector_store %arg11[%c0_18, %c0_19], %28 {strides = array<i32>} : memref<8x32xbf16, #tpu.memory_space<vmem>>, vector<8x4xbf16>,
    %c0_20 = arith.constant 0 : index
    %c4 = arith.constant 4 : index
    %30 = vector.load %arg10[%c0_20, %c4] : memref<8x32xbf16, #tpu.memory_space<vmem>>, vector<8x4xbf16>
    %c0_21 = arith.constant 0 : index
    %c0_22 = arith.constant 0 : index
    %c4_23 = arith.constant 4 : index
    %31 = vector.load %arg9[%c0_21, %c0_22, %c4_23] : memref<2x8x32xbf16, #tpu.memory_space<vmem>>, vector<1x8x4xbf16>
    %32 = vector.shape_cast %31 : vector<1x8x4xbf16> to vector<8x4xbf16>
    %c1_24 = arith.constant 1 : index
    %c0_25 = arith.constant 0 : index
    %c4_26 = arith.constant 4 : index
    %33 = vector.load %arg9[%c1_24, %c0_25, %c4_26] : memref<2x8x32xbf16, #tpu.memory_space<vmem>>, vector<1x8x4xbf16>
    %34 = vector.shape_cast %33 : vector<1x8x4xbf16> to vector<8x4xbf16>
    %cst_27 = arith.constant dense<0.000000e+00> : vector<8x8xf32>
    %35 = tpu.matmul %30, %32, %cst_27 {dimension_numbers = #tpu.dot_dimension_numbers<[1], [1], [0], [0], [0, 0, 1, 0], [], []>} : vector<8x4xbf16>, vector<8x4xbf16>, vector<8x8xf32> -> vector<8x8xf32>
    %cst_28 = arith.constant dense<0xFF800000> : vector<8xf32>
    %36 = vector.multi_reduction <maximumf>, %35, %cst_28 [1] : vector<8x8xf32> to vector<8xf32>
    %37 = vector.shape_cast %36 : vector<8xf32> to vector<8x1xf32>
    %38 = vector.broadcast %37 : vector<8x1xf32> to vector<8x8xf32>
    %39 = arith.subf %35, %38 : vector<8x8xf32>
    %40 = math.exp %39 : vector<8x8xf32>
    %cst_29 = arith.constant dense<0.000000e+00> : vector<8xf32>
    %41 = vector.multi_reduction <add>, %40, %cst_29 [1] : vector<8x8xf32> to vector<8xf32>
    %42 = vector.shape_cast %41 : vector<8xf32> to vector<8x1xf32>
    %43 = tpu.reciprocal %42 {approx = true} : vector<8x1xf32> -> vector<8x1xf32>
    %44 = vector.broadcast %43 : vector<8x1xf32> to vector<8x8xf32>
    %45 = arith.mulf %40, %44 : vector<8x8xf32>
    %46 = arith.truncf %45 : vector<8x8xf32> to vector<8x8xbf16>
    %cst_30 = arith.constant dense<0.000000e+00> : vector<8x4xf32>
    %47 = tpu.matmul %46, %34, %cst_30 {dimension_numbers = #tpu.dot_dimension_numbers<[1], [0], [0], [1], [0, 0, 1, 1], [], []>} : vector<8x8xbf16>, vector<8x4xbf16>, vector<8x4xf32> -> vector<8x4xf32>
    %48 = arith.truncf %47 : vector<8x4xf32> to vector<8x4xbf16>
    %c0_31 = arith.constant 0 : index
    %c4_32 = arith.constant 4 : index
    %49 = vector.load %arg11[%c0_31, %c4_32] : memref<8x32xbf16, #tpu.memory_space<vmem>>, vector<8x4xbf16>
    tpu.vector_store %arg11[%c0_31, %c4_32], %48 {strides = array<i32>} : memref<8x32xbf16, #tpu.memory_space<vmem>>, vector<8x4xbf16>,
    %c0_33 = arith.constant 0 : index
    %c8 = arith.constant 8 : index
    %50 = vector.load %arg10[%c0_33, %c8] : memref<8x32xbf16, #tpu.memory_space<vmem>>, vector<8x4xbf16>
    %c0_34 = arith.constant 0 : index
    %c0_35 = arith.constant 0 : index
    %c8_36 = arith.constant 8 : index
    %51 = vector.load %arg9[%c0_34, %c0_35, %c8_36] : memref<2x8x32xbf16, #tpu.memory_space<vmem>>, vector<1x8x4xbf16>
    %52 = vector.shape_cast %51 : vector<1x8x4xbf16> to vector<8x4xbf16>
    %c1_37 = arith.constant 1 : index
    %c0_38 = arith.constant 0 : index
    %c8_39 = arith.constant 8 : index
    %53 = vector.load %arg9[%c1_37, %c0_38, %c8_39] : memref<2x8x32xbf16, #tpu.memory_space<vmem>>, vector<1x8x4xbf16>
    %54 = vector.shape_cast %53 : vector<1x8x4xbf16> to vector<8x4xbf16>
    %cst_40 = arith.constant dense<0.000000e+00> : vector<8x8xf32>
    %55 = tpu.matmul %50, %52, %cst_40 {dimension_numbers = #tpu.dot_dimension_numbers<[1], [1], [0], [0], [0, 0, 1, 0], [], []>} : vector<8x4xbf16>, vector<8x4xbf16>, vector<8x8xf32> -> vector<8x8xf32>
    %cst_41 = arith.constant dense<0xFF800000> : vector<8xf32>
    %56 = vector.multi_reduction <maximumf>, %55, %cst_41 [1] : vector<8x8xf32> to vector<8xf32>
    %57 = vector.shape_cast %56 : vector<8xf32> to vector<8x1xf32>
    %58 = vector.broadcast %57 : vector<8x1xf32> to vector<8x8xf32>
    %59 = arith.subf %55, %58 : vector<8x8xf32>
    %60 = math.exp %59 : vector<8x8xf32>
    %cst_42 = arith.constant dense<0.000000e+00> : vector<8xf32>
    %61 = vector.multi_reduction <add>, %60, %cst_42 [1] : vector<8x8xf32> to vector<8xf32>
    %62 = vector.shape_cast %61 : vector<8xf32> to vector<8x1xf32>
    %63 = tpu.reciprocal %62 {approx = true} : vector<8x1xf32> -> vector<8x1xf32>
    %64 = vector.broadcast %63 : vector<8x1xf32> to vector<8x8xf32>
    %65 = arith.mulf %60, %64 : vector<8x8xf32>
    %66 = arith.truncf %65 : vector<8x8xf32> to vector<8x8xbf16>
    %cst_43 = arith.constant dense<0.000000e+00> : vector<8x4xf32>
    %67 = tpu.matmul %66, %54, %cst_43 {dimension_numbers = #tpu.dot_dimension_numbers<[1], [0], [0], [1], [0, 0, 1, 1], [], []>} : vector<8x8xbf16>, vector<8x4xbf16>, vector<8x4xf32> -> vector<8x4xf32>
    %68 = arith.truncf %67 : vector<8x4xf32> to vector<8x4xbf16>
    %c0_44 = arith.constant 0 : index
    %c8_45 = arith.constant 8 : index
    %69 = vector.load %arg11[%c0_44, %c8_45] : memref<8x32xbf16, #tpu.memory_space<vmem>>, vector<8x4xbf16>
    tpu.vector_store %arg11[%c0_44, %c8_45], %68 {strides = array<i32>} : memref<8x32xbf16, #tpu.memory_space<vmem>>, vector<8x4xbf16>,
    %c0_46 = arith.constant 0 : index
    %c12 = arith.constant 12 : index
    %70 = vector.load %arg10[%c0_46, %c12] : memref<8x32xbf16, #tpu.memory_space<vmem>>, vector<8x4xbf16>
    %c0_47 = arith.constant 0 : index
    %c0_48 = arith.constant 0 : index
    %c12_49 = arith.constant 12 : index
    %71 = vector.load %arg9[%c0_47, %c0_48, %c12_49] : memref<2x8x32xbf16, #tpu.memory_space<vmem>>, vector<1x8x4xbf16>
    %72 = vector.shape_cast %71 : vector<1x8x4xbf16> to vector<8x4xbf16>
    %c1_50 = arith.constant 1 : index
    %c0_51 = arith.constant 0 : index
    %c12_52 = arith.constant 12 : index
    %73 = vector.load %arg9[%c1_50, %c0_51, %c12_52] : memref<2x8x32xbf16, #tpu.memory_space<vmem>>, vector<1x8x4xbf16>
    %74 = vector.shape_cast %73 : vector<1x8x4xbf16> to vector<8x4xbf16>
    %cst_53 = arith.constant dense<0.000000e+00> : vector<8x8xf32>
    %75 = tpu.matmul %70, %72, %cst_53 {dimension_numbers = #tpu.dot_dimension_numbers<[1], [1], [0], [0], [0, 0, 1, 0], [], []>} : vector<8x4xbf16>, vector<8x4xbf16>, vector<8x8xf32> -> vector<8x8xf32>
    %cst_54 = arith.constant dense<0xFF800000> : vector<8xf32>
    %76 = vector.multi_reduction <maximumf>, %75, %cst_54 [1] : vector<8x8xf32> to vector<8xf32>
    %77 = vector.shape_cast %76 : vector<8xf32> to vector<8x1xf32>
    %78 = vector.broadcast %77 : vector<8x1xf32> to vector<8x8xf32>
    %79 = arith.subf %75, %78 : vector<8x8xf32>
    %80 = math.exp %79 : vector<8x8xf32>
    %cst_55 = arith.constant dense<0.000000e+00> : vector<8xf32>
    %81 = vector.multi_reduction <add>, %80, %cst_55 [1] : vector<8x8xf32> to vector<8xf32>
    %82 = vector.shape_cast %81 : vector<8xf32> to vector<8x1xf32>
    %83 = tpu.reciprocal %82 {approx = true} : vector<8x1xf32> -> vector<8x1xf32>
    %84 = vector.broadcast %83 : vector<8x1xf32> to vector<8x8xf32>
    %85 = arith.mulf %80, %84 : vector<8x8xf32>
    %86 = arith.truncf %85 : vector<8x8xf32> to vector<8x8xbf16>
    %cst_56 = arith.constant dense<0.000000e+00> : vector<8x4xf32>
    %87 = tpu.matmul %86, %74, %cst_56 {dimension_numbers = #tpu.dot_dimension_numbers<[1], [0], [0], [1], [0, 0, 1, 1], [], []>} : vector<8x8xbf16>, vector<8x4xbf16>, vector<8x4xf32> -> vector<8x4xf32>
    %88 = arith.truncf %87 : vector<8x4xf32> to vector<8x4xbf16>
    %c0_57 = arith.constant 0 : index
    %c12_58 = arith.constant 12 : index
    %89 = vector.load %arg11[%c0_57, %c12_58] : memref<8x32xbf16, #tpu.memory_space<vmem>>, vector<8x4xbf16>
    tpu.vector_store %arg11[%c0_57, %c12_58], %88 {strides = array<i32>} : memref<8x32xbf16, #tpu.memory_space<vmem>>, vector<8x4xbf16>,
    %c0_59 = arith.constant 0 : index
    %c16 = arith.constant 16 : index
    %90 = vector.load %arg10[%c0_59, %c16] : memref<8x32xbf16, #tpu.memory_space<vmem>>, vector<8x4xbf16>
    %c0_60 = arith.constant 0 : index
    %c0_61 = arith.constant 0 : index
    %c16_62 = arith.constant 16 : index
    %91 = vector.load %arg9[%c0_60, %c0_61, %c16_62] : memref<2x8x32xbf16, #tpu.memory_space<vmem>>, vector<1x8x4xbf16>
    %92 = vector.shape_cast %91 : vector<1x8x4xbf16> to vector<8x4xbf16>
    %c1_63 = arith.constant 1 : index
    %c0_64 = arith.constant 0 : index
    %c16_65 = arith.constant 16 : index
    %93 = vector.load %arg9[%c1_63, %c0_64, %c16_65] : memref<2x8x32xbf16, #tpu.memory_space<vmem>>, vector<1x8x4xbf16>
    %94 = vector.shape_cast %93 : vector<1x8x4xbf16> to vector<8x4xbf16>
    %cst_66 = arith.constant dense<0.000000e+00> : vector<8x8xf32>
    %95 = tpu.matmul %90, %92, %cst_66 {dimension_numbers = #tpu.dot_dimension_numbers<[1], [1], [0], [0], [0, 0, 1, 0], [], []>} : vector<8x4xbf16>, vector<8x4xbf16>, vector<8x8xf32> -> vector<8x8xf32>
    %cst_67 = arith.constant dense<0xFF800000> : vector<8xf32>
    %96 = vector.multi_reduction <maximumf>, %95, %cst_67 [1] : vector<8x8xf32> to vector<8xf32>
    %97 = vector.shape_cast %96 : vector<8xf32> to vector<8x1xf32>
    %98 = vector.broadcast %97 : vector<8x1xf32> to vector<8x8xf32>
    %99 = arith.subf %95, %98 : vector<8x8xf32>
    %100 = math.exp %99 : vector<8x8xf32>
    %cst_68 = arith.constant dense<0.000000e+00> : vector<8xf32>
    %101 = vector.multi_reduction <add>, %100, %cst_68 [1] : vector<8x8xf32> to vector<8xf32>
    %102 = vector.shape_cast %101 : vector<8xf32> to vector<8x1xf32>
    %103 = tpu.reciprocal %102 {approx = true} : vector<8x1xf32> -> vector<8x1xf32>
    %104 = vector.broadcast %103 : vector<8x1xf32> to vector<8x8xf32>
    %105 = arith.mulf %100, %104 : vector<8x8xf32>
    %106 = arith.truncf %105 : vector<8x8xf32> to vector<8x8xbf16>
    %cst_69 = arith.constant dense<0.000000e+00> : vector<8x4xf32>
    %107 = tpu.matmul %106, %94, %cst_69 {dimension_numbers = #tpu.dot_dimension_numbers<[1], [0], [0], [1], [0, 0, 1, 1], [], []>} : vector<8x8xbf16>, vector<8x4xbf16>, vector<8x4xf32> -> vector<8x4xf32>
    %108 = arith.truncf %107 : vector<8x4xf32> to vector<8x4xbf16>
    %c0_70 = arith.constant 0 : index
    %c16_71 = arith.constant 16 : index
    %109 = vector.load %arg11[%c0_70, %c16_71] : memref<8x32xbf16, #tpu.memory_space<vmem>>, vector<8x4xbf16>
    tpu.vector_store %arg11[%c0_70, %c16_71], %108 {strides = array<i32>} : memref<8x32xbf16, #tpu.memory_space<vmem>>, vector<8x4xbf16>,
    %c0_72 = arith.constant 0 : index
    %c20 = arith.constant 20 : index
    %110 = vector.load %arg10[%c0_72, %c20] : memref<8x32xbf16, #tpu.memory_space<vmem>>, vector<8x4xbf16>
    %c0_73 = arith.constant 0 : index
    %c0_74 = arith.constant 0 : index
    %c20_75 = arith.constant 20 : index
    %111 = vector.load %arg9[%c0_73, %c0_74, %c20_75] : memref<2x8x32xbf16, #tpu.memory_space<vmem>>, vector<1x8x4xbf16>
    %112 = vector.shape_cast %111 : vector<1x8x4xbf16> to vector<8x4xbf16>
    %c1_76 = arith.constant 1 : index
    %c0_77 = arith.constant 0 : index
    %c20_78 = arith.constant 20 : index
    %113 = vector.load %arg9[%c1_76, %c0_77, %c20_78] : memref<2x8x32xbf16, #tpu.memory_space<vmem>>, vector<1x8x4xbf16>
    %114 = vector.shape_cast %113 : vector<1x8x4xbf16> to vector<8x4xbf16>
    %cst_79 = arith.constant dense<0.000000e+00> : vector<8x8xf32>
    %115 = tpu.matmul %110, %112, %cst_79 {dimension_numbers = #tpu.dot_dimension_numbers<[1], [1], [0], [0], [0, 0, 1, 0], [], []>} : vector<8x4xbf16>, vector<8x4xbf16>, vector<8x8xf32> -> vector<8x8xf32>
    %cst_80 = arith.constant dense<0xFF800000> : vector<8xf32>
    %116 = vector.multi_reduction <maximumf>, %115, %cst_80 [1] : vector<8x8xf32> to vector<8xf32>
    %117 = vector.shape_cast %116 : vector<8xf32> to vector<8x1xf32>
    %118 = vector.broadcast %117 : vector<8x1xf32> to vector<8x8xf32>
    %119 = arith.subf %115, %118 : vector<8x8xf32>
    %120 = math.exp %119 : vector<8x8xf32>
    %cst_81 = arith.constant dense<0.000000e+00> : vector<8xf32>
    %121 = vector.multi_reduction <add>, %120, %cst_81 [1] : vector<8x8xf32> to vector<8xf32>
    %122 = vector.shape_cast %121 : vector<8xf32> to vector<8x1xf32>
    %123 = tpu.reciprocal %122 {approx = true} : vector<8x1xf32> -> vector<8x1xf32>
    %124 = vector.broadcast %123 : vector<8x1xf32> to vector<8x8xf32>
    %125 = arith.mulf %120, %124 : vector<8x8xf32>
    %126 = arith.truncf %125 : vector<8x8xf32> to vector<8x8xbf16>
    %cst_82 = arith.constant dense<0.000000e+00> : vector<8x4xf32>
    %127 = tpu.matmul %126, %114, %cst_82 {dimension_numbers = #tpu.dot_dimension_numbers<[1], [0], [0], [1], [0, 0, 1, 1], [], []>} : vector<8x8xbf16>, vector<8x4xbf16>, vector<8x4xf32> -> vector<8x4xf32>
    %128 = arith.truncf %127 : vector<8x4xf32> to vector<8x4xbf16>
    %c0_83 = arith.constant 0 : index
    %c20_84 = arith.constant 20 : index
    %129 = vector.load %arg11[%c0_83, %c20_84] : memref<8x32xbf16, #tpu.memory_space<vmem>>, vector<8x4xbf16>
    tpu.vector_store %arg11[%c0_83, %c20_84], %128 {strides = array<i32>} : memref<8x32xbf16, #tpu.memory_space<vmem>>, vector<8x4xbf16>,
    %c0_85 = arith.constant 0 : index
    %c24 = arith.constant 24 : index
    %130 = vector.load %arg10[%c0_85, %c24] : memref<8x32xbf16, #tpu.memory_space<vmem>>, vector<8x4xbf16>
    %c0_86 = arith.constant 0 : index
    %c0_87 = arith.constant 0 : index
    %c24_88 = arith.constant 24 : index
    %131 = vector.load %arg9[%c0_86, %c0_87, %c24_88] : memref<2x8x32xbf16, #tpu.memory_space<vmem>>, vector<1x8x4xbf16>
    %132 = vector.shape_cast %131 : vector<1x8x4xbf16> to vector<8x4xbf16>
    %c1_89 = arith.constant 1 : index
    %c0_90 = arith.constant 0 : index
    %c24_91 = arith.constant 24 : index
    %133 = vector.load %arg9[%c1_89, %c0_90, %c24_91] : memref<2x8x32xbf16, #tpu.memory_space<vmem>>, vector<1x8x4xbf16>
    %134 = vector.shape_cast %133 : vector<1x8x4xbf16> to vector<8x4xbf16>
    %cst_92 = arith.constant dense<0.000000e+00> : vector<8x8xf32>
    %135 = tpu.matmul %130, %132, %cst_92 {dimension_numbers = #tpu.dot_dimension_numbers<[1], [1], [0], [0], [0, 0, 1, 0], [], []>} : vector<8x4xbf16>, vector<8x4xbf16>, vector<8x8xf32> -> vector<8x8xf32>
    %cst_93 = arith.constant dense<0xFF800000> : vector<8xf32>
    %136 = vector.multi_reduction <maximumf>, %135, %cst_93 [1] : vector<8x8xf32> to vector<8xf32>
    %137 = vector.shape_cast %136 : vector<8xf32> to vector<8x1xf32>
    %138 = vector.broadcast %137 : vector<8x1xf32> to vector<8x8xf32>
    %139 = arith.subf %135, %138 : vector<8x8xf32>
    %140 = math.exp %139 : vector<8x8xf32>
    %cst_94 = arith.constant dense<0.000000e+00> : vector<8xf32>
    %141 = vector.multi_reduction <add>, %140, %cst_94 [1] : vector<8x8xf32> to vector<8xf32>
    %142 = vector.shape_cast %141 : vector<8xf32> to vector<8x1xf32>
    %143 = tpu.reciprocal %142 {approx = true} : vector<8x1xf32> -> vector<8x1xf32>
    %144 = vector.broadcast %143 : vector<8x1xf32> to vector<8x8xf32>
    %145 = arith.mulf %140, %144 : vector<8x8xf32>
    %146 = arith.truncf %145 : vector<8x8xf32> to vector<8x8xbf16>
    %cst_95 = arith.constant dense<0.000000e+00> : vector<8x4xf32>
    %147 = tpu.matmul %146, %134, %cst_95 {dimension_numbers = #tpu.dot_dimension_numbers<[1], [0], [0], [1], [0, 0, 1, 1], [], []>} : vector<8x8xbf16>, vector<8x4xbf16>, vector<8x4xf32> -> vector<8x4xf32>
    %148 = arith.truncf %147 : vector<8x4xf32> to vector<8x4xbf16>
    %c0_96 = arith.constant 0 : index
    %c24_97 = arith.constant 24 : index
    %149 = vector.load %arg11[%c0_96, %c24_97] : memref<8x32xbf16, #tpu.memory_space<vmem>>, vector<8x4xbf16>
    tpu.vector_store %arg11[%c0_96, %c24_97], %148 {strides = array<i32>} : memref<8x32xbf16, #tpu.memory_space<vmem>>, vector<8x4xbf16>,
    %c0_98 = arith.constant 0 : index
    %c28 = arith.constant 28 : index
    %150 = vector.load %arg10[%c0_98, %c28] : memref<8x32xbf16, #tpu.memory_space<vmem>>, vector<8x4xbf16>
    %c0_99 = arith.constant 0 : index
    %c0_100 = arith.constant 0 : index
    %c28_101 = arith.constant 28 : index
    %151 = vector.load %arg9[%c0_99, %c0_100, %c28_101] : memref<2x8x32xbf16, #tpu.memory_space<vmem>>, vector<1x8x4xbf16>
    %152 = vector.shape_cast %151 : vector<1x8x4xbf16> to vector<8x4xbf16>
    %c1_102 = arith.constant 1 : index
    %c0_103 = arith.constant 0 : index
    %c28_104 = arith.constant 28 : index
    %153 = vector.load %arg9[%c1_102, %c0_103, %c28_104] : memref<2x8x32xbf16, #tpu.memory_space<vmem>>, vector<1x8x4xbf16>
    %154 = vector.shape_cast %153 : vector<1x8x4xbf16> to vector<8x4xbf16>
    %cst_105 = arith.constant dense<0.000000e+00> : vector<8x8xf32>
    %155 = tpu.matmul %150, %152, %cst_105 {dimension_numbers = #tpu.dot_dimension_numbers<[1], [1], [0], [0], [0, 0, 1, 0], [], []>} : vector<8x4xbf16>, vector<8x4xbf16>, vector<8x8xf32> -> vector<8x8xf32>
    %cst_106 = arith.constant dense<0xFF800000> : vector<8xf32>
    %156 = vector.multi_reduction <maximumf>, %155, %cst_106 [1] : vector<8x8xf32> to vector<8xf32>
    %157 = vector.shape_cast %156 : vector<8xf32> to vector<8x1xf32>
    %158 = vector.broadcast %157 : vector<8x1xf32> to vector<8x8xf32>
    %159 = arith.subf %155, %158 : vector<8x8xf32>
    %160 = math.exp %159 : vector<8x8xf32>
    %cst_107 = arith.constant dense<0.000000e+00> : vector<8xf32>
    %161 = vector.multi_reduction <add>, %160, %cst_107 [1] : vector<8x8xf32> to vector<8xf32>
    %162 = vector.shape_cast %161 : vector<8xf32> to vector<8x1xf32>
    %163 = tpu.reciprocal %162 {approx = true} : vector<8x1xf32> -> vector<8x1xf32>
    %164 = vector.broadcast %163 : vector<8x1xf32> to vector<8x8xf32>
    %165 = arith.mulf %160, %164 : vector<8x8xf32>
    %166 = arith.truncf %165 : vector<8x8xf32> to vector<8x8xbf16>
    %cst_108 = arith.constant dense<0.000000e+00> : vector<8x4xf32>
    %167 = tpu.matmul %166, %154, %cst_108 {dimension_numbers = #tpu.dot_dimension_numbers<[1], [0], [0], [1], [0, 0, 1, 1], [], []>} : vector<8x8xbf16>, vector<8x4xbf16>, vector<8x4xf32> -> vector<8x4xf32>
    %168 = arith.truncf %167 : vector<8x4xf32> to vector<8x4xbf16>
    %c0_109 = arith.constant 0 : index
    %c28_110 = arith.constant 28 : index
    %169 = vector.load %arg11[%c0_109, %c28_110] : memref<8x32xbf16, #tpu.memory_space<vmem>>, vector<8x4xbf16>
    tpu.vector_store %arg11[%c0_109, %c28_110], %168 {strides = array<i32>} : memref<8x32xbf16, #tpu.memory_space<vmem>>, vector<8x4xbf16>,
    %c0_111 = arith.constant 0 : index
    %c0_112 = arith.constant 0 : index
    %170 = vector.load %arg11[%c0_111, %c0_112] : memref<8x32xbf16, #tpu.memory_space<vmem>>, vector<8x32xbf16>
    %c0_113 = arith.constant 0 : index
    %c0_114 = arith.constant 0 : index
    %171 = vector.load %arg6[%c0_113, %c0_114] : memref<32x32xbf16, #tpu.memory_space<vmem>>, vector<32x32xbf16>
    %cst_115 = arith.constant dense<0.000000e+00> : vector<8x32xf32>
    %172 = tpu.matmul %170, %171, %cst_115 {dimension_numbers = #tpu.dot_dimension_numbers<[1], [0], [0], [1], [0, 0, 1, 1], [], []>} : vector<8x32xbf16>, vector<32x32xbf16>, vector<8x32xf32> -> vector<8x32xf32>
    %c0_116 = arith.constant 0 : index
    %c0_117 = arith.constant 0 : index
    %173 = vector.load %arg7[%c0_116, %c0_117] : memref<1x32xf32, #tpu.memory_space<vmem>>, vector<1x32xf32>
    %174 = vector.broadcast %173 : vector<1x32xf32> to vector<8x32xf32>
    %175 = arith.addf %172, %174 : vector<8x32xf32>
    %c0_118 = arith.constant 0 : index
    %c0_119 = arith.constant 0 : index
    %c0_120 = arith.constant 0 : index
    %176 = vector.load %arg8[%c0_118, %c0_119, %c0_120] : memref<1x8x32xf32, #tpu.memory_space<vmem>>, vector<1x8x32xf32>
    %177 = vector.shape_cast %176 : vector<1x8x32xf32> to vector<8x32xf32>
    %178 = vector.shape_cast %175 : vector<8x32xf32> to vector<1x8x32xf32>
    tpu.vector_store %arg8[%c0_118, %c0_119, %c0_120], %178 {strides = array<i32>} : memref<1x8x32xf32, #tpu.memory_space<vmem>>, vector<1x8x32xf32>,
    return
  }
  func.func @transform_0(%arg0: i32, %arg1: i32) -> (i32, i32, i32) {
    %c0_i32 = arith.constant 0 : i32
    %c0_i32_0 = arith.constant 0 : i32
    return %arg0, %arg1, %c0_i32 : i32, i32, i32
  }
  func.func @transform_1(%arg0: i32, %arg1: i32) -> (i32, i32, i32) {
    %c0_i32 = arith.constant 0 : i32
    %c0_i32_0 = arith.constant 0 : i32
    %c0_i32_1 = arith.constant 0 : i32
    return %arg0, %c0_i32, %c0_i32_0 : i32, i32, i32
  }
  func.func @transform_2(%arg0: i32, %arg1: i32) -> (i32, i32) {
    %c0_i32 = arith.constant 0 : i32
    %c0_i32_0 = arith.constant 0 : i32
    %c0_i32_1 = arith.constant 0 : i32
    return %c0_i32, %c0_i32_0 : i32, i32
  }
  func.func @transform_3(%arg0: i32, %arg1: i32) -> (i32, i32) {
    %c0_i32 = arith.constant 0 : i32
    %c0_i32_0 = arith.constant 0 : i32
    %c0_i32_1 = arith.constant 0 : i32
    return %c0_i32, %c0_i32_0 : i32, i32
  }
  func.func @transform_4(%arg0: i32, %arg1: i32) -> (i32, i32) {
    %c0_i32 = arith.constant 0 : i32
    %c0_i32_0 = arith.constant 0 : i32
    %c0_i32_1 = arith.constant 0 : i32
    return %c0_i32, %c0_i32_0 : i32, i32
  }
  func.func @transform_5(%arg0: i32, %arg1: i32) -> (i32, i32) {
    %c0_i32 = arith.constant 0 : i32
    %c0_i32_0 = arith.constant 0 : i32
    %c0_i32_1 = arith.constant 0 : i32
    return %c0_i32, %c0_i32_0 : i32, i32
  }
  func.func @transform_6(%arg0: i32, %arg1: i32) -> (i32, i32, i32) {
    %c0_i32 = arith.constant 0 : i32
    %c0_i32_0 = arith.constant 0 : i32
    return %arg0, %arg1, %c0_i32 : i32, i32, i32
  }
}

module attributes {stable_mosaic.version = 11 : i64} {
  func.func @_attention_kernel(%arg0: i32, %arg1: i32, %arg2: memref<1x8x32xf32, #tpu.memory_space<vmem>>, %arg3: memref<1x8x32xf32, #tpu.memory_space<vmem>>, %arg4: memref<32x32xbf16, #tpu.memory_space<vmem>>, %arg5: memref<32x64xbf16, #tpu.memory_space<vmem>>, %arg6: memref<32x32xbf16, #tpu.memory_space<vmem>>, %arg7: memref<1x32xf32, #tpu.memory_space<vmem>>, %arg8: memref<1x8x32xf32, #tpu.memory_space<vmem>>, %arg9: memref<2x8x32xbf16, #tpu.memory_space<vmem>>, %arg10: memref<8x32xbf16, #tpu.memory_space<vmem>>, %arg11: memref<8x32xbf16, #tpu.memory_space<vmem>>) attributes {dimension_semantics = [#tpu.dimension_semantics<parallel>, #tpu.dimension_semantics<arbitrary>], iteration_bounds = array<i64: 2, 1>, scalar_prefetch = 0 : i64, scratch_operands = 3 : i64, tpu.core_type = #tpu.core_type<tc>, window_params = [{transform_indices = @transform_0, window_bounds = array<i64: 1, 8, 32>}, {transform_indices = @transform_1, window_bounds = array<i64: 1, 8, 32>}, {pipeline_mode = #tpu.pipeline_mode<synchronous>, transform_indices = @transform_2, window_bounds = array<i64: 32, 32>}, {pipeline_mode = #tpu.pipeline_mode<synchronous>, transform_indices = @transform_3, window_bounds = array<i64: 32, 64>}, {pipeline_mode = #tpu.pipeline_mode<synchronous>, transform_indices = @transform_4, window_bounds = array<i64: 32, 32>}, {pipeline_mode = #tpu.pipeline_mode<synchronous>, transform_indices = @transform_5, window_bounds = array<i64: 1, 32>}, {transform_indices = @transform_6, window_bounds = array<i64: 1, 8, 32>}]} {
    %c0_i32 = arith.constant 0 : i32
    %0 = arith.cmpi eq, %arg1, %c0_i32 : i32
    %1 = arith.extui %0 : i1 to i32
    %c0_i32_0 = arith.constant 0 : i32
    %2 = arith.cmpi ne, %1, %c0_i32_0 : i32
    scf.if %2 {
      %c0_121 = arith.constant 0 : index
      %c0_122 = arith.constant 0 : index
      %c0_123 = arith.constant 0 : index
      %179 = vector.load %arg3[%c0_121, %c0_122, %c0_123] : memref<1x8x32xf32, #tpu.memory_space<vmem>>, vector<1x8x32xf32>
      %180 = vector.shape_cast %179 : vector<1x8x32xf32> to vector<8x32xf32>
      %181 = arith.truncf %180 : vector<8x32xf32> to vector<8x32xbf16>
      %c0_124 = arith.constant 0 : index
      %c0_125 = arith.constant 0 : index
      %182 = vector.load %arg5[%c0_124, %c0_125] : memref<32x64xbf16, #tpu.memory_space<vmem>>, vector<32x64xbf16>
      %cst_126 = arith.constant dense<0.000000e+00> : vector<8x64xf32>
      %183 = tpu.matmul %181, %182, %cst_126 {dimension_numbers = #tpu.dot_dimension_numbers<[1], [0], [0], [1], [0, 0, 1, 1], [], []>} : vector<8x32xbf16>, vector<32x64xbf16>, vector<8x64xf32> -> vector<8x64xf32>
      %184 = vector.extract_strided_slice %183 {offsets = [0, 0], sizes = [8, 32], strides = [1, 1]} : vector<8x64xf32> to vector<8x32xf32>
      %185 = arith.truncf %184 : vector<8x32xf32> to vector<8x32xbf16>
      %c0_127 = arith.constant 0 : index
      %c0_128 = arith.constant 0 : index
      %c0_129 = arith.constant 0 : index
      %186 = vector.load %arg9[%c0_127, %c0_128, %c0_129] : memref<2x8x32xbf16, #tpu.memory_space<vmem>>, vector<1x8x32xbf16>
      %187 = vector.shape_cast %186 : vector<1x8x32xbf16> to vector<8x32xbf16>
      %188 = vector.shape_cast %185 : vector<8x32xbf16> to vector<1x8x32xbf16>
      tpu.vector_store %arg9[%c0_127, %c0_128, %c0_129], %188 {strides = array<i32>} : memref<2x8x32xbf16, #tpu.memory_space<vmem>>, vector<1x8x32xbf16>,
      %189 = vector.extract_strided_slice %183 {offsets = [0, 32], sizes = [8, 32], strides = [1, 1]} : vector<8x64xf32> to vector<8x32xf32>
      %190 = arith.truncf %189 : vector<8x32xf32> to vector<8x32xbf16>
      %c1_130 = arith.constant 1 : index
      %c0_131 = arith.constant 0 : index
      %c0_132 = arith.constant 0 : index
      %191 = vector.load %arg9[%c1_130, %c0_131, %c0_132] : memref<2x8x32xbf16, #tpu.memory_space<vmem>>, vector<1x8x32xbf16>
      %192 = vector.shape_cast %191 : vector<1x8x32xbf16> to vector<8x32xbf16>
      %193 = vector.shape_cast %190 : vector<8x32xbf16> to vector<1x8x32xbf16>
      tpu.vector_store %arg9[%c1_130, %c0_131, %c0_132], %193 {strides = array<i32>} : memref<2x8x32xbf16, #tpu.memory_space<vmem>>, vector<1x8x32xbf16>,
    } else {
    }
    %c0 = arith.constant 0 : index
    %c0_1 = arith.constant 0 : index
    %c0_2 = arith.constant 0 : index
    %3 = vector.load %arg2[%c0, %c0_1, %c0_2] : memref<1x8x32xf32, #tpu.memory_space<vmem>>, vector<1x8x32xf32>
    %4 = vector.shape_cast %3 : vector<1x8x32xf32> to vector<8x32xf32>
    %5 = arith.truncf %4 : vector<8x32xf32> to vector<8x32xbf16>
    %c0_3 = arith.constant 0 : index
    %c0_4 = arith.constant 0 : index
    %6 = vector.load %arg4[%c0_3, %c0_4] : memref<32x32xbf16, #tpu.memory_space<vmem>>, vector<32x32xbf16>
    %cst = arith.constant dense<0.000000e+00> : vector<8x32xf32>
    %7 = tpu.matmul %5, %6, %cst {dimension_numbers = #tpu.dot_dimension_numbers<[1], [0], [0], [1], [0, 0, 1, 1], [], []>} : vector<8x32xbf16>, vector<32x32xbf16>, vector<8x32xf32> -> vector<8x32xf32>
    %8 = arith.truncf %7 : vector<8x32xf32> to vector<8x32xbf16>
    %c0_5 = arith.constant 0 : index
    %c0_6 = arith.constant 0 : index
    %9 = vector.load %arg10[%c0_5, %c0_6] : memref<8x32xbf16, #tpu.memory_space<vmem>>, vector<8x32xbf16>
    tpu.vector_store %arg10[%c0_5, %c0_6], %8 {strides = array<i32>} : memref<8x32xbf16, #tpu.memory_space<vmem>>, vector<8x32xbf16>,
    %c0_7 = arith.constant 0 : index
    %c0_8 = arith.constant 0 : index
    %10 = vector.load %arg10[%c0_7, %c0_8] : memref<8x32xbf16, #tpu.memory_space<vmem>>, vector<8x4xbf16>
    %c0_9 = arith.constant 0 : index
    %c0_10 = arith.constant 0 : index
    %c0_11 = arith.constant 0 : index
    %11 = vector.load %arg9[%c0_9, %c0_10, %c0_11] : memref<2x8x32xbf16, #tpu.memory_space<vmem>>, vector<1x8x4xbf16>
    %12 = vector.shape_cast %11 : vector<1x8x4xbf16> to vector<8x4xbf16>
    %c1 = arith.constant 1 : index
    %c0_12 = arith.constant 0 : index
    %c0_13 = arith.constant 0 : index
    %13 = vector.load %arg9[%c1, %c0_12, %c0_13] : memref<2x8x32xbf16, #tpu.memory_space<vmem>>, vector<1x8x4xbf16>
    %14 = vector.shape_cast %13 : vector<1x8x4xbf16> to vector<8x4xbf16>
    %cst_14 = arith.constant dense<0.000000e+00> : vector<8x8xf32>
    %15 = tpu.matmul %10, %12, %cst_14 {dimension_numbers = #tpu.dot_dimension_numbers<[1], [1], [0], [0], [0, 0, 1, 0], [], []>} : vector<8x4xbf16>, vector<8x4xbf16>, vector<8x8xf32> -> vector<8x8xf32>
    %cst_15 = arith.constant dense<0xFF800000> : vector<8xf32>
    %16 = vector.multi_reduction <maximumf>, %15, %cst_15 [1] : vector<8x8xf32> to vector<8xf32>
    %17 = vector.shape_cast %16 : vector<8xf32> to vector<8x1xf32>
    %18 = vector.broadcast %17 : vector<8x1xf32> to vector<8x8xf32>
    %19 = arith.subf %15, %18 : vector<8x8xf32>
    %20 = math.exp %19 : vector<8x8xf32>
    %cst_16 = arith.constant dense<0.000000e+00> : vector<8xf32>
    %21 = vector.multi_reduction <add>, %20, %cst_16 [1] : vector<8x8xf32> to vector<8xf32>
    %22 = vector.shape_cast %21 : vector<8xf32> to vector<8x1xf32>
    %23 = tpu.reciprocal %22 {approx = true} : vector<8x1xf32> -> vector<8x1xf32>
    %24 = vector.broadcast %23 : vector<8x1xf32> to vector<8x8xf32>
    %25 = arith.mulf %20, %24 : vector<8x8xf32>
    %26 = arith.truncf %25 : vector<8x8xf32> to vector<8x8xbf16>
    %cst_17 = arith.constant dense<0.000000e+00> : vector<8x4xf32>
    %27 = tpu.matmul %26, %14, %cst_17 {dimension_numbers = #tpu.dot_dimension_numbers<[1], [0], [0], [1], [0, 0, 1, 1], [], []>} : vector<8x8xbf16>, vector<8x4xbf16>, vector<8x4xf32> -> vector<8x4xf32>
    %28 = arith.truncf %27 : vector<8x4xf32> to vector<8x4xbf16>
    %c0_18 = arith.constant 0 : index
    %c0_19 = arith.constant 0 : index
    %29 = vector.load %arg11[%c0_18, %c0_19] : memref<8x32xbf16, #tpu.memory_space<vmem>>, vector<8x4xbf16>
    tpu.vector_store %arg11[%c0_18, %c0_19], %28 {strides = array<i32>} : memref<8x32xbf16, #tpu.memory_space<vmem>>, vector<8x4xbf16>,
    %c0_20 = arith.constant 0 : index
    %c4 = arith.constant 4 : index
    %30 = vector.load %arg10[%c0_20, %c4] : memref<8x32xbf16, #tpu.memory_space<vmem>>, vector<8x4xbf16>
    %c0_21 = arith.constant 0 : index
    %c0_22 = arith.constant 0 : index
    %c4_23 = arith.constant 4 : index
    %31 = vector.load %arg9[%c0_21, %c0_22, %c4_23] : memref<2x8x32xbf16, #tpu.memory_space<vmem>>, vector<1x8x4xbf16>
    %32 = vector.shape_cast %31 : vector<1x8x4xbf16> to vector<8x4xbf16>
    %c1_24 = arith.constant 1 : index
    %c0_25 = arith.constant 0 : index
    %c4_26 = arith.constant 4 : index
    %33 = vector.load %arg9[%c1_24, %c0_25, %c4_26] : memref<2x8x32xbf16, #tpu.memory_space<vmem>>, vector<1x8x4xbf16>
    %34 = vector.shape_cast %33 : vector<1x8x4xbf16> to vector<8x4xbf16>
    %cst_27 = arith.constant dense<0.000000e+00> : vector<8x8xf32>
    %35 = tpu.matmul %30, %32, %cst_27 {dimension_numbers = #tpu.dot_dimension_numbers<[1], [1], [0], [0], [0, 0, 1, 0], [], []>} : vector<8x4xbf16>, vector<8x4xbf16>, vector<8x8xf32> -> vector<8x8xf32>
    %cst_28 = arith.constant dense<0xFF800000> : vector<8xf32>
    %36 = vector.multi_reduction <maximumf>, %35, %cst_28 [1] : vector<8x8xf32> to vector<8xf32>
    %37 = vector.shape_cast %36 : vector<8xf32> to vector<8x1xf32>
    %38 = vector.broadcast %37 : vector<8x1xf32> to vector<8x8xf32>
    %39 = arith.subf %35, %38 : vector<8x8xf32>
    %40 = math.exp %39 : vector<8x8xf32>
    %cst_29 = arith.constant dense<0.000000e+00> : vector<8xf32>
    %41 = vector.multi_reduction <add>, %40, %cst_29 [1] : vector<8x8xf32> to vector<8xf32>
    %42 = vector.shape_cast %41 : vector<8xf32> to vector<8x1xf32>
    %43 = tpu.reciprocal %42 {approx = true} : vector<8x1xf32> -> vector<8x1xf32>
    %44 = vector.broadcast %43 : vector<8x1xf32> to vector<8x8xf32>
    %45 = arith.mulf %40, %44 : vector<8x8xf32>
    %46 = arith.truncf %45 : vector<8x8xf32> to vector<8x8xbf16>
    %cst_30 = arith.constant dense<0.000000e+00> : vector<8x4xf32>
    %47 = tpu.matmul %46, %34, %cst_30 {dimension_numbers = #tpu.dot_dimension_numbers<[1], [0], [0], [1], [0, 0, 1, 1], [], []>} : vector<8x8xbf16>, vector<8x4xbf16>, vector<8x4xf32> -> vector<8x4xf32>
    %48 = arith.truncf %47 : vector<8x4xf32> to vector<8x4xbf16>
    %c0_31 = arith.constant 0 : index
    %c4_32 = arith.constant 4 : index
    %49 = vector.load %arg11[%c0_31, %c4_32] : memref<8x32xbf16, #tpu.memory_space<vmem>>, vector<8x4xbf16>
    tpu.vector_store %arg11[%c0_31, %c4_32], %48 {strides = array<i32>} : memref<8x32xbf16, #tpu.memory_space<vmem>>, vector<8x4xbf16>,
    %c0_33 = arith.constant 0 : index
    %c8 = arith.constant 8 : index
    %50 = vector.load %arg10[%c0_33, %c8] : memref<8x32xbf16, #tpu.memory_space<vmem>>, vector<8x4xbf16>
    %c0_34 = arith.constant 0 : index
    %c0_35 = arith.constant 0 : index
    %c8_36 = arith.constant 8 : index
    %51 = vector.load %arg9[%c0_34, %c0_35, %c8_36] : memref<2x8x32xbf16, #tpu.memory_space<vmem>>, vector<1x8x4xbf16>
    %52 = vector.shape_cast %51 : vector<1x8x4xbf16> to vector<8x4xbf16>
    %c1_37 = arith.constant 1 : index
    %c0_38 = arith.constant 0 : index
    %c8_39 = arith.constant 8 : index
    %53 = vector.load %arg9[%c1_37, %c0_38, %c8_39] : memref<2x8x32xbf16, #tpu.memory_space<vmem>>, vector<1x8x4xbf16>
    %54 = vector.shape_cast %53 : vector<1x8x4xbf16> to vector<8x4xbf16>
    %cst_40 = arith.constant dense<0.000000e+00> : vector<8x8xf32>
    %55 = tpu.matmul %50, %52, %cst_40 {dimension_numbers = #tpu.dot_dimension_numbers<[1], [1], [0], [0], [0, 0, 1, 0], [], []>} : vector<8x4xbf16>, vector<8x4xbf16>, vector<8x8xf32> -> vector<8x8xf32>
    %cst_41 = arith.constant dense<0xFF800000> : vector<8xf32>
    %56 = vector.multi_reduction <maximumf>, %55, %cst_41 [1] : vector<8x8xf32> to vector<8xf32>
    %57 = vector.shape_cast %56 : vector<8xf32> to vector<8x1xf32>
    %58 = vector.broadcast %57 : vector<8x1xf32> to vector<8x8xf32>
    %59 = arith.subf %55, %58 : vector<8x8xf32>
    %60 = math.exp %59 : vector<8x8xf32>
    %cst_42 = arith.constant dense<0.000000e+00> : vector<8xf32>
    %61 = vector.multi_reduction <add>, %60, %cst_42 [1] : vector<8x8xf32> to vector<8xf32>
    %62 = vector.shape_cast %61 : vector<8xf32> to vector<8x1xf32>
    %63 = tpu.reciprocal %62 {approx = true} : vector<8x1xf32> -> vector<8x1xf32>
    %64 = vector.broadcast %63 : vector<8x1xf32> to vector<8x8xf32>
    %65 = arith.mulf %60, %64 : vector<8x8xf32>
    %66 = arith.truncf %65 : vector<8x8xf32> to vector<8x8xbf16>
    %cst_43 = arith.constant dense<0.000000e+00> : vector<8x4xf32>
    %67 = tpu.matmul %66, %54, %cst_43 {dimension_numbers = #tpu.dot_dimension_numbers<[1], [0], [0], [1], [0, 0, 1, 1], [], []>} : vector<8x8xbf16>, vector<8x4xbf16>, vector<8x4xf32> -> vector<8x4xf32>
    %68 = arith.truncf %67 : vector<8x4xf32> to vector<8x4xbf16>
    %c0_44 = arith.constant 0 : index
    %c8_45 = arith.constant 8 : index
    %69 = vector.load %arg11[%c0_44, %c8_45] : memref<8x32xbf16, #tpu.memory_space<vmem>>, vector<8x4xbf16>
    tpu.vector_store %arg11[%c0_44, %c8_45], %68 {strides = array<i32>} : memref<8x32xbf16, #tpu.memory_space<vmem>>, vector<8x4xbf16>,
    %c0_46 = arith.constant 0 : index
    %c12 = arith.constant 12 : index
    %70 = vector.load %arg10[%c0_46, %c12] : memref<8x32xbf16, #tpu.memory_space<vmem>>, vector<8x4xbf16>
    %c0_47 = arith.constant 0 : index
    %c0_48 = arith.constant 0 : index
    %c12_49 = arith.constant 12 : index
    %71 = vector.load %arg9[%c0_47, %c0_48, %c12_49] : memref<2x8x32xbf16, #tpu.memory_space<vmem>>, vector<1x8x4xbf16>
    %72 = vector.shape_cast %71 : vector<1x8x4xbf16> to vector<8x4xbf16>
    %c1_50 = arith.constant 1 : index
    %c0_51 = arith.constant 0 : index
    %c12_52 = arith.constant 12 : index
    %73 = vector.load %arg9[%c1_50, %c0_51, %c12_52] : memref<2x8x32xbf16, #tpu.memory_space<vmem>>, vector<1x8x4xbf16>
    %74 = vector.shape_cast %73 : vector<1x8x4xbf16> to vector<8x4xbf16>
    %cst_53 = arith.constant dense<0.000000e+00> : vector<8x8xf32>
    %75 = tpu.matmul %70, %72, %cst_53 {dimension_numbers = #tpu.dot_dimension_numbers<[1], [1], [0], [0], [0, 0, 1, 0], [], []>} : vector<8x4xbf16>, vector<8x4xbf16>, vector<8x8xf32> -> vector<8x8xf32>
    %cst_54 = arith.constant dense<0xFF800000> : vector<8xf32>
    %76 = vector.multi_reduction <maximumf>, %75, %cst_54 [1] : vector<8x8xf32> to vector<8xf32>
    %77 = vector.shape_cast %76 : vector<8xf32> to vector<8x1xf32>
    %78 = vector.broadcast %77 : vector<8x1xf32> to vector<8x8xf32>
    %79 = arith.subf %75, %78 : vector<8x8xf32>
    %80 = math.exp %79 : vector<8x8xf32>
    %cst_55 = arith.constant dense<0.000000e+00> : vector<8xf32>
    %81 = vector.multi_reduction <add>, %80, %cst_55 [1] : vector<8x8xf32> to vector<8xf32>
    %82 = vector.shape_cast %81 : vector<8xf32> to vector<8x1xf32>
    %83 = tpu.reciprocal %82 {approx = true} : vector<8x1xf32> -> vector<8x1xf32>
    %84 = vector.broadcast %83 : vector<8x1xf32> to vector<8x8xf32>
    %85 = arith.mulf %80, %84 : vector<8x8xf32>
    %86 = arith.truncf %85 : vector<8x8xf32> to vector<8x8xbf16>
    %cst_56 = arith.constant dense<0.000000e+00> : vector<8x4xf32>
    %87 = tpu.matmul %86, %74, %cst_56 {dimension_numbers = #tpu.dot_dimension_numbers<[1], [0], [0], [1], [0, 0, 1, 1], [], []>} : vector<8x8xbf16>, vector<8x4xbf16>, vector<8x4xf32> -> vector<8x4xf32>
    %88 = arith.truncf %87 : vector<8x4xf32> to vector<8x4xbf16>
    %c0_57 = arith.constant 0 : index
    %c12_58 = arith.constant 12 : index
    %89 = vector.load %arg11[%c0_57, %c12_58] : memref<8x32xbf16, #tpu.memory_space<vmem>>, vector<8x4xbf16>
    tpu.vector_store %arg11[%c0_57, %c12_58], %88 {strides = array<i32>} : memref<8x32xbf16, #tpu.memory_space<vmem>>, vector<8x4xbf16>,
    %c0_59 = arith.constant 0 : index
    %c16 = arith.constant 16 : index
    %90 = vector.load %arg10[%c0_59, %c16] : memref<8x32xbf16, #tpu.memory_space<vmem>>, vector<8x4xbf16>
    %c0_60 = arith.constant 0 : index
    %c0_61 = arith.constant 0 : index
    %c16_62 = arith.constant 16 : index
    %91 = vector.load %arg9[%c0_60, %c0_61, %c16_62] : memref<2x8x32xbf16, #tpu.memory_space<vmem>>, vector<1x8x4xbf16>
    %92 = vector.shape_cast %91 : vector<1x8x4xbf16> to vector<8x4xbf16>
    %c1_63 = arith.constant 1 : index
    %c0_64 = arith.constant 0 : index
    %c16_65 = arith.constant 16 : index
    %93 = vector.load %arg9[%c1_63, %c0_64, %c16_65] : memref<2x8x32xbf16, #tpu.memory_space<vmem>>, vector<1x8x4xbf16>
    %94 = vector.shape_cast %93 : vector<1x8x4xbf16> to vector<8x4xbf16>
    %cst_66 = arith.constant dense<0.000000e+00> : vector<8x8xf32>
    %95 = tpu.matmul %90, %92, %cst_66 {dimension_numbers = #tpu.dot_dimension_numbers<[1], [1], [0], [0], [0, 0, 1, 0], [], []>} : vector<8x4xbf16>, vector<8x4xbf16>, vector<8x8xf32> -> vector<8x8xf32>
    %cst_67 = arith.constant dense<0xFF800000> : vector<8xf32>
    %96 = vector.multi_reduction <maximumf>, %95, %cst_67 [1] : vector<8x8xf32> to vector<8xf32>
    %97 = vector.shape_cast %96 : vector<8xf32> to vector<8x1xf32>
    %98 = vector.broadcast %97 : vector<8x1xf32> to vector<8x8xf32>
    %99 = arith.subf %95, %98 : vector<8x8xf32>
    %100 = math.exp %99 : vector<8x8xf32>
    %cst_68 = arith.constant dense<0.000000e+00> : vector<8xf32>
    %101 = vector.multi_reduction <add>, %100, %cst_68 [1] : vector<8x8xf32> to vector<8xf32>
    %102 = vector.shape_cast %101 : vector<8xf32> to vector<8x1xf32>
    %103 = tpu.reciprocal %102 {approx = true} : vector<8x1xf32> -> vector<8x1xf32>
    %104 = vector.broadcast %103 : vector<8x1xf32> to vector<8x8xf32>
    %105 = arith.mulf %100, %104 : vector<8x8xf32>
    %106 = arith.truncf %105 : vector<8x8xf32> to vector<8x8xbf16>
    %cst_69 = arith.constant dense<0.000000e+00> : vector<8x4xf32>
    %107 = tpu.matmul %106, %94, %cst_69 {dimension_numbers = #tpu.dot_dimension_numbers<[1], [0], [0], [1], [0, 0, 1, 1], [], []>} : vector<8x8xbf16>, vector<8x4xbf16>, vector<8x4xf32> -> vector<8x4xf32>
    %108 = arith.truncf %107 : vector<8x4xf32> to vector<8x4xbf16>
    %c0_70 = arith.constant 0 : index
    %c16_71 = arith.constant 16 : index
    %109 = vector.load %arg11[%c0_70, %c16_71] : memref<8x32xbf16, #tpu.memory_space<vmem>>, vector<8x4xbf16>
    tpu.vector_store %arg11[%c0_70, %c16_71], %108 {strides = array<i32>} : memref<8x32xbf16, #tpu.memory_space<vmem>>, vector<8x4xbf16>,
    %c0_72 = arith.constant 0 : index
    %c20 = arith.constant 20 : index
    %110 = vector.load %arg10[%c0_72, %c20] : memref<8x32xbf16, #tpu.memory_space<vmem>>, vector<8x4xbf16>
    %c0_73 = arith.constant 0 : index
    %c0_74 = arith.constant 0 : index
    %c20_75 = arith.constant 20 : index
    %111 = vector.load %arg9[%c0_73, %c0_74, %c20_75] : memref<2x8x32xbf16, #tpu.memory_space<vmem>>, vector<1x8x4xbf16>
    %112 = vector.shape_cast %111 : vector<1x8x4xbf16> to vector<8x4xbf16>
    %c1_76 = arith.constant 1 : index
    %c0_77 = arith.constant 0 : index
    %c20_78 = arith.constant 20 : index
    %113 = vector.load %arg9[%c1_76, %c0_77, %c20_78] : memref<2x8x32xbf16, #tpu.memory_space<vmem>>, vector<1x8x4xbf16>
    %114 = vector.shape_cast %113 : vector<1x8x4xbf16> to vector<8x4xbf16>
    %cst_79 = arith.constant dense<0.000000e+00> : vector<8x8xf32>
    %115 = tpu.matmul %110, %112, %cst_79 {dimension_numbers = #tpu.dot_dimension_numbers<[1], [1], [0], [0], [0, 0, 1, 0], [], []>} : vector<8x4xbf16>, vector<8x4xbf16>, vector<8x8xf32> -> vector<8x8xf32>
    %cst_80 = arith.constant dense<0xFF800000> : vector<8xf32>
    %116 = vector.multi_reduction <maximumf>, %115, %cst_80 [1] : vector<8x8xf32> to vector<8xf32>
    %117 = vector.shape_cast %116 : vector<8xf32> to vector<8x1xf32>
    %118 = vector.broadcast %117 : vector<8x1xf32> to vector<8x8xf32>
    %119 = arith.subf %115, %118 : vector<8x8xf32>
    %120 = math.exp %119 : vector<8x8xf32>
    %cst_81 = arith.constant dense<0.000000e+00> : vector<8xf32>
    %121 = vector.multi_reduction <add>, %120, %cst_81 [1] : vector<8x8xf32> to vector<8xf32>
    %122 = vector.shape_cast %121 : vector<8xf32> to vector<8x1xf32>
    %123 = tpu.reciprocal %122 {approx = true} : vector<8x1xf32> -> vector<8x1xf32>
    %124 = vector.broadcast %123 : vector<8x1xf32> to vector<8x8xf32>
    %125 = arith.mulf %120, %124 : vector<8x8xf32>
    %126 = arith.truncf %125 : vector<8x8xf32> to vector<8x8xbf16>
    %cst_82 = arith.constant dense<0.000000e+00> : vector<8x4xf32>
    %127 = tpu.matmul %126, %114, %cst_82 {dimension_numbers = #tpu.dot_dimension_numbers<[1], [0], [0], [1], [0, 0, 1, 1], [], []>} : vector<8x8xbf16>, vector<8x4xbf16>, vector<8x4xf32> -> vector<8x4xf32>
    %128 = arith.truncf %127 : vector<8x4xf32> to vector<8x4xbf16>
    %c0_83 = arith.constant 0 : index
    %c20_84 = arith.constant 20 : index
    %129 = vector.load %arg11[%c0_83, %c20_84] : memref<8x32xbf16, #tpu.memory_space<vmem>>, vector<8x4xbf16>
    tpu.vector_store %arg11[%c0_83, %c20_84], %128 {strides = array<i32>} : memref<8x32xbf16, #tpu.memory_space<vmem>>, vector<8x4xbf16>,
    %c0_85 = arith.constant 0 : index
    %c24 = arith.constant 24 : index
    %130 = vector.load %arg10[%c0_85, %c24] : memref<8x32xbf16, #tpu.memory_space<vmem>>, vector<8x4xbf16>
    %c0_86 = arith.constant 0 : index
    %c0_87 = arith.constant 0 : index
    %c24_88 = arith.constant 24 : index
    %131 = vector.load %arg9[%c0_86, %c0_87, %c24_88] : memref<2x8x32xbf16, #tpu.memory_space<vmem>>, vector<1x8x4xbf16>
    %132 = vector.shape_cast %131 : vector<1x8x4xbf16> to vector<8x4xbf16>
    %c1_89 = arith.constant 1 : index
    %c0_90 = arith.constant 0 : index
    %c24_91 = arith.constant 24 : index
    %133 = vector.load %arg9[%c1_89, %c0_90, %c24_91] : memref<2x8x32xbf16, #tpu.memory_space<vmem>>, vector<1x8x4xbf16>
    %134 = vector.shape_cast %133 : vector<1x8x4xbf16> to vector<8x4xbf16>
    %cst_92 = arith.constant dense<0.000000e+00> : vector<8x8xf32>
    %135 = tpu.matmul %130, %132, %cst_92 {dimension_numbers = #tpu.dot_dimension_numbers<[1], [1], [0], [0], [0, 0, 1, 0], [], []>} : vector<8x4xbf16>, vector<8x4xbf16>, vector<8x8xf32> -> vector<8x8xf32>
    %cst_93 = arith.constant dense<0xFF800000> : vector<8xf32>
    %136 = vector.multi_reduction <maximumf>, %135, %cst_93 [1] : vector<8x8xf32> to vector<8xf32>
    %137 = vector.shape_cast %136 : vector<8xf32> to vector<8x1xf32>
    %138 = vector.broadcast %137 : vector<8x1xf32> to vector<8x8xf32>
    %139 = arith.subf %135, %138 : vector<8x8xf32>
    %140 = math.exp %139 : vector<8x8xf32>
    %cst_94 = arith.constant dense<0.000000e+00> : vector<8xf32>
    %141 = vector.multi_reduction <add>, %140, %cst_94 [1] : vector<8x8xf32> to vector<8xf32>
    %142 = vector.shape_cast %141 : vector<8xf32> to vector<8x1xf32>
    %143 = tpu.reciprocal %142 {approx = true} : vector<8x1xf32> -> vector<8x1xf32>
    %144 = vector.broadcast %143 : vector<8x1xf32> to vector<8x8xf32>
    %145 = arith.mulf %140, %144 : vector<8x8xf32>
    %146 = arith.truncf %145 : vector<8x8xf32> to vector<8x8xbf16>
    %cst_95 = arith.constant dense<0.000000e+00> : vector<8x4xf32>
    %147 = tpu.matmul %146, %134, %cst_95 {dimension_numbers = #tpu.dot_dimension_numbers<[1], [0], [0], [1], [0, 0, 1, 1], [], []>} : vector<8x8xbf16>, vector<8x4xbf16>, vector<8x4xf32> -> vector<8x4xf32>
    %148 = arith.truncf %147 : vector<8x4xf32> to vector<8x4xbf16>
    %c0_96 = arith.constant 0 : index
    %c24_97 = arith.constant 24 : index
    %149 = vector.load %arg11[%c0_96, %c24_97] : memref<8x32xbf16, #tpu.memory_space<vmem>>, vector<8x4xbf16>
    tpu.vector_store %arg11[%c0_96, %c24_97], %148 {strides = array<i32>} : memref<8x32xbf16, #tpu.memory_space<vmem>>, vector<8x4xbf16>,
    %c0_98 = arith.constant 0 : index
    %c28 = arith.constant 28 : index
    %150 = vector.load %arg10[%c0_98, %c28] : memref<8x32xbf16, #tpu.memory_space<vmem>>, vector<8x4xbf16>
    %c0_99 = arith.constant 0 : index
    %c0_100 = arith.constant 0 : index
    %c28_101 = arith.constant 28 : index
    %151 = vector.load %arg9[%c0_99, %c0_100, %c28_101] : memref<2x8x32xbf16, #tpu.memory_space<vmem>>, vector<1x8x4xbf16>
    %152 = vector.shape_cast %151 : vector<1x8x4xbf16> to vector<8x4xbf16>
    %c1_102 = arith.constant 1 : index
    %c0_103 = arith.constant 0 : index
    %c28_104 = arith.constant 28 : index
    %153 = vector.load %arg9[%c1_102, %c0_103, %c28_104] : memref<2x8x32xbf16, #tpu.memory_space<vmem>>, vector<1x8x4xbf16>
    %154 = vector.shape_cast %153 : vector<1x8x4xbf16> to vector<8x4xbf16>
    %cst_105 = arith.constant dense<0.000000e+00> : vector<8x8xf32>
    %155 = tpu.matmul %150, %152, %cst_105 {dimension_numbers = #tpu.dot_dimension_numbers<[1], [1], [0], [0], [0, 0, 1, 0], [], []>} : vector<8x4xbf16>, vector<8x4xbf16>, vector<8x8xf32> -> vector<8x8xf32>
    %cst_106 = arith.constant dense<0xFF800000> : vector<8xf32>
    %156 = vector.multi_reduction <maximumf>, %155, %cst_106 [1] : vector<8x8xf32> to vector<8xf32>
    %157 = vector.shape_cast %156 : vector<8xf32> to vector<8x1xf32>
    %158 = vector.broadcast %157 : vector<8x1xf32> to vector<8x8xf32>
    %159 = arith.subf %155, %158 : vector<8x8xf32>
    %160 = math.exp %159 : vector<8x8xf32>
    %cst_107 = arith.constant dense<0.000000e+00> : vector<8xf32>
    %161 = vector.multi_reduction <add>, %160, %cst_107 [1] : vector<8x8xf32> to vector<8xf32>
    %162 = vector.shape_cast %161 : vector<8xf32> to vector<8x1xf32>
    %163 = tpu.reciprocal %162 {approx = true} : vector<8x1xf32> -> vector<8x1xf32>
    %164 = vector.broadcast %163 : vector<8x1xf32> to vector<8x8xf32>
    %165 = arith.mulf %160, %164 : vector<8x8xf32>
    %166 = arith.truncf %165 : vector<8x8xf32> to vector<8x8xbf16>
    %cst_108 = arith.constant dense<0.000000e+00> : vector<8x4xf32>
    %167 = tpu.matmul %166, %154, %cst_108 {dimension_numbers = #tpu.dot_dimension_numbers<[1], [0], [0], [1], [0, 0, 1, 1], [], []>} : vector<8x8xbf16>, vector<8x4xbf16>, vector<8x4xf32> -> vector<8x4xf32>
    %168 = arith.truncf %167 : vector<8x4xf32> to vector<8x4xbf16>
    %c0_109 = arith.constant 0 : index
    %c28_110 = arith.constant 28 : index
    %169 = vector.load %arg11[%c0_109, %c28_110] : memref<8x32xbf16, #tpu.memory_space<vmem>>, vector<8x4xbf16>
    tpu.vector_store %arg11[%c0_109, %c28_110], %168 {strides = array<i32>} : memref<8x32xbf16, #tpu.memory_space<vmem>>, vector<8x4xbf16>,
    %c0_111 = arith.constant 0 : index
    %c0_112 = arith.constant 0 : index
    %170 = vector.load %arg11[%c0_111, %c0_112] : memref<8x32xbf16, #tpu.memory_space<vmem>>, vector<8x32xbf16>
    %c0_113 = arith.constant 0 : index
    %c0_114 = arith.constant 0 : index
    %171 = vector.load %arg6[%c0_113, %c0_114] : memref<32x32xbf16, #tpu.memory_space<vmem>>, vector<32x32xbf16>
    %cst_115 = arith.constant dense<0.000000e+00> : vector<8x32xf32>
    %172 = tpu.matmul %170, %171, %cst_115 {dimension_numbers = #tpu.dot_dimension_numbers<[1], [0], [0], [1], [0, 0, 1, 1], [], []>} : vector<8x32xbf16>, vector<32x32xbf16>, vector<8x32xf32> -> vector<8x32xf32>
    %c0_116 = arith.constant 0 : index
    %c0_117 = arith.constant 0 : index
    %173 = vector.load %arg7[%c0_116, %c0_117] : memref<1x32xf32, #tpu.memory_space<vmem>>, vector<1x32xf32>
    %174 = vector.broadcast %173 : vector<1x32xf32> to vector<8x32xf32>
    %175 = arith.addf %172, %174 : vector<8x32xf32>
    %c0_118 = arith.constant 0 : index
    %c0_119 = arith.constant 0 : index
    %c0_120 = arith.constant 0 : index
    %176 = vector.load %arg8[%c0_118, %c0_119, %c0_120] : memref<1x8x32xf32, #tpu.memory_space<vmem>>, vector<1x8x32xf32>
    %177 = vector.shape_cast %176 : vector<1x8x32xf32> to vector<8x32xf32>
    %178 = vector.shape_cast %175 : vector<8x32xf32> to vector<1x8x32xf32>
    tpu.vector_store %arg8[%c0_118, %c0_119, %c0_120], %178 {strides = array<i32>} : memref<1x8x32xf32, #tpu.memory_space<vmem>>, vector<1x8x32xf32>,
    return
  }
  func.func @transform_0(%arg0: i32, %arg1: i32) -> (i32, i32, i32) {
    %c0_i32 = arith.constant 0 : i32
    %c0_i32_0 = arith.constant 0 : i32
    return %arg0, %arg1, %c0_i32 : i32, i32, i32
  }
  func.func @transform_1(%arg0: i32, %arg1: i32) -> (i32, i32, i32) {
    %c0_i32 = arith.constant 0 : i32
    %c0_i32_0 = arith.constant 0 : i32
    %c0_i32_1 = arith.constant 0 : i32
    return %arg0, %c0_i32, %c0_i32_0 : i32, i32, i32
  }
  func.func @transform_2(%arg0: i32, %arg1: i32) -> (i32, i32) {
    %c0_i32 = arith.constant 0 : i32
    %c0_i32_0 = arith.constant 0 : i32
    %c0_i32_1 = arith.constant 0 : i32
    return %c0_i32, %c0_i32_0 : i32, i32
  }
  func.func @transform_3(%arg0: i32, %arg1: i32) -> (i32, i32) {
    %c0_i32 = arith.constant 0 : i32
    %c0_i32_0 = arith.constant 0 : i32
    %c0_i32_1 = arith.constant 0 : i32
    return %c0_i32, %c0_i32_0 : i32, i32
  }
  func.func @transform_4(%arg0: i32, %arg1: i32) -> (i32, i32) {
    %c0_i32 = arith.constant 0 : i32
    %c0_i32_0 = arith.constant 0 : i32
    %c0_i32_1 = arith.constant 0 : i32
    return %c0_i32, %c0_i32_0 : i32, i32
  }
  func.func @transform_5(%arg0: i32, %arg1: i32) -> (i32, i32) {
    %c0_i32 = arith.constant 0 : i32
    %c0_i32_0 = arith.constant 0 : i32
    %c0_i32_1 = arith.constant 0 : i32
    return %c0_i32, %c0_i32_0 : i32, i32
  }
  func.func @transform_6(%arg0: i32, %arg1: i32) -> (i32, i32, i32) {
    %c0_i32 = arith.constant 0 : i32
    %c0_i32_0 = arith.constant 0 : i32
    return %arg0, %arg1, %c0_i32 : i32, i32, i32
  }
}

</mosaic_0001>

<llo_original>
// kernel: tpu_custom_call.1
$region0: #{tpu_custom_call.1}
  #allocation0 [shape = 'u32[]', space=smem, size = 0x4, offset = 0x4, fixed_abs, tag = 'smem constant byte address 0x4 - core index']
  #allocation1 [shape = 'u32[144,128]{1,0:T(1,128)}', space=vmem, size = 0x12000, scoped, tag = 'internal scratch']
  #allocation2 [shape = 'bf16[2,8,32]{2,1,0:T(8,128)(2,1)}', space=vmem, size = 0x1000, scoped, tag = 'scratch operand']
  #allocation3 [shape = 'bf16[8,32]{1,0:T(8,128)(2,1)}', space=vmem, size = 0x800, scoped, tag = 'scratch operand']
  #allocation4 [shape = 'bf16[8,32]{1,0:T(8,128)(2,1)}', space=vmem, size = 0x800, scoped, tag = 'scratch operand']
  %s0 = inlined_call_operand.hbm [shape: f32[2,8,32], index: 0, kind: input, shape index: {}]
  %s1 = inlined_call_operand.hbm [shape: f32[2,8,32], index: 1, kind: input, shape index: {}]
  %s2 = inlined_call_operand.hbm [shape: bf16[32,32], index: 2, kind: input, shape index: {}]
  %s3 = inlined_call_operand.hbm [shape: bf16[32,64], index: 3, kind: input, shape index: {}]
  %s4 = inlined_call_operand.hbm [shape: bf16[32,32], index: 4, kind: input, shape index: {}]
  %s5 = inlined_call_operand.vmem [shape: f32[1,32], index: 5, kind: input, shape index: {}]
  %s6 = inlined_call_operand.hbm [shape: f32[2,8,32], index: 6, kind: output, shape index: {}]
  %s7 = sld [smem:[#allocation0]]
  $region81: #{tpu_custom_call.1} parent=0
    _
  %s9 = ssub.s32 1, %s7
  %s10 = scalar_select 0, %s9, %s7
  $region1: #{tpu_custom_call.1} parent=0
    #allocation5 [shape = 'u8[8192]{0}', space=vmem, size = 0x2000, scoped, tag = 'input window, operand 0']
    #allocation6 [shape = 's32[2]{0}', space=sflag, size = 0x8, scoped, tag = 'scoped memory for tpu_custom_call.1']
    #allocation7 [shape = 's32[2]{0}', space=sflag, size = 0x8, scoped, tag = 'scoped memory for tpu_custom_call.1']
    #allocation8 [shape = 'u8[8192]{0}', space=vmem, size = 0x2000, scoped, tag = 'input window, operand 1']
    #allocation9 [shape = 's32[2]{0}', space=sflag, size = 0x8, scoped, tag = 'scoped memory for tpu_custom_call.1']
    #allocation10 [shape = 'u8[8192]{0}', space=vmem, size = 0x2000, scoped, tag = 'input window, operand 2, single buffered']
    #allocation11 [shape = 'u8[8192]{0}', space=vmem, size = 0x2000, scoped, tag = 'input window, operand 3, single buffered']
    #allocation12 [shape = 's32[1]{0}', space=sflag, size = 0x4, scoped, tag = 'scoped memory for tpu_custom_call.1']
    #allocation13 [shape = 'u8[8192]{0}', space=vmem, size = 0x2000, scoped, tag = 'input window, operand 4, single buffered']
    #allocation14 [shape = 'u8[8192]{0}', space=vmem, size = 0x2000, scoped, tag = 'output window, operand 0']
    %11 = vsyncpa [#allocation6], 0
    %s12 = scalar_lea.sflag [#allocation6], 1
    %13 = vsyncpa %s12, 0
    %14 = vsyncpa [#allocation9], 0
    %s15 = scalar_lea.sflag [#allocation9], 1
    %16 = vsyncpa %s15, 0
    %17 = vsyncpa [#allocation12], 0
    %18 = vsyncpa [#allocation7], 0
    %s19 = scalar_lea.sflag [#allocation7], 1
    %20 = vsyncpa %s19, 0
    loop: start=0, step=1, limit=4
    $region2: #{tpu_custom_call.1} parent=1 // loop_pre_header
      _
    $region3: #{tpu_custom_call.1} parent=1 // loop_header
      %s22 = sphi 0, %s26
      %p23 = scmp.ge.s32.totalorder %s22, 4
      %s29 = sphi 0, %s41
      %s30 = sphi 0, %s37
      %s31 = sphi 0, %s29
      %s32 = sphi 0, %s30
      %s33 = sphi 0, %s31
      %s34 = sphi 0, %s32
      %s46 = sphi 0, %s48
      %s49 = sphi 0, %s46
      %s50 = sphi 0, %s49
      %s66 = sphi 0, %s50
      %s72 = sphi 0, %s74
      %s75 = sphi 0, %s72
      %s76 = sphi 0, %s75
      %s92 = sphi 0, %s76
      %s96 = sphi 0, %s96
      %s98 = sphi 0, %s96
      %s99 = sphi 0, %s98
      %s113 = sphi 0, %s99
      %s117 = sphi 0, %s117
      %s119 = sphi 0, %s117
      %s120 = sphi 0, %s119
      %s134 = sphi 0, %s120
      %s138 = sphi 0, %s138
      %s140 = sphi 0, %s138
      %s141 = sphi 0, %s140
      %s155 = sphi 0, %s141
      %s159 = sphi 0, %s159
      %s161 = sphi 0, %s159
      %s162 = sphi 0, %s161
      %s176 = sphi 0, %s162
      %s184 = sphi 0, %s186
      %s187 = sphi 0, %s184
      %s188 = sphi 0, %s187
      %s204 = sphi 0, %s188
    $region4: #{tpu_custom_call.1} parent=1 // loop_header_branch
      %25 = sbr.rel (%p23) target = $region8
    $region5: #{tpu_custom_call.1} parent=1 // loop_body
      %s27 = ssub.s32 %s22, 1
      %s28 = ssub.s32 %s22, 2
      %s35 = sadd.s32 1, %s30
      %p36 = scmp.ge.s32.totalorder %s35, 1
      %s37 = scalar_select %p36, 0, %s35
      %s38 = sadd.s32 1, %s29
      %s39 = scalar_select %p36, %s38, %s29
      %p40 = scmp.ge.s32.totalorder %s39, 2
      %s41 = scalar_select %p40, 0, %s39
      %s42 = ssub.s32 %s29, %s41
      %s43 = ssub.s32 %s30, %s37
      %s44 = sor.u32 %s42, %s43
      %p45 = scmp.eq.s32.totalorder %s44, 0
      %s47 = sadd.s32 %s46, 1
      %s48 = scalar_select %p45, %s46, %s47
      %p51 = pneg %p45
      %p52 = scmp.eq.s32.totalorder %s22, 1
      %p53 = por %p51, %p52
      %p54 = scmp.ne.s32.totalorder %s46, %s49
      %p55 = scmp.eq.s32.totalorder %s22, 0
      %p56 = por %p54, %p55
      %p57 = scmp.ne.s32.totalorder %s46, %s49
      %p58 = scmp.eq.s32.totalorder %s27, 1
      %p59 = por %p57, %p58
      %p60 = scmp.ne.s32.totalorder %s49, %s50
      %p61 = scmp.eq.s32.totalorder %s27, 0
      %p62 = por %p60, %p61
      %p63 = scmp.ne.s32.totalorder %s49, %s50
      %p64 = scmp.eq.s32.totalorder %s28, 1
      %p65 = por %p63, %p64
      %p67 = scmp.ne.s32.totalorder %s50, %s66
      %p68 = scmp.eq.s32.totalorder %s28, 0
      %p69 = por %p67, %p68
      %s70 = ssub.s32 %s29, %s41
      %p71 = scmp.eq.s32.totalorder %s70, 0
      %s73 = sadd.s32 %s72, 1
      %s74 = scalar_select %p71, %s72, %s73
      %p77 = pneg %p71
      %p78 = scmp.eq.s32.totalorder %s22, 1
      %p79 = por %p77, %p78
      %p80 = scmp.ne.s32.totalorder %s72, %s75
      %p81 = scmp.eq.s32.totalorder %s22, 0
      %p82 = por %p80, %p81
      %p83 = scmp.ne.s32.totalorder %s72, %s75
      %p84 = scmp.eq.s32.totalorder %s27, 1
      %p85 = por %p83, %p84
      %p86 = scmp.ne.s32.totalorder %s75, %s76
      %p87 = scmp.eq.s32.totalorder %s27, 0
      %p88 = por %p86, %p87
      %p89 = scmp.ne.s32.totalorder %s75, %s76
      %p90 = scmp.eq.s32.totalorder %s28, 1
      %p91 = por %p89, %p90
      %p93 = scmp.ne.s32.totalorder %s76, %s92
      %p94 = scmp.eq.s32.totalorder %s28, 0
      %p95 = por %p93, %p94
      %s97 = sadd.s32 %s96, 1
      %p100 = scmp.eq.s32.totalorder %s22, 1
      %p101 = scmp.ne.s32.totalorder %s96, %s98
      %p102 = scmp.eq.s32.totalorder %s22, 0
      %p103 = por %p101, %p102
      %p104 = scmp.ne.s32.totalorder %s96, %s98
      %p105 = scmp.eq.s32.totalorder %s27, 1
      %p106 = por %p104, %p105
      %p107 = scmp.ne.s32.totalorder %s98, %s99
      %p108 = scmp.eq.s32.totalorder %s27, 0
      %p109 = por %p107, %p108
      %p110 = scmp.ne.s32.totalorder %s98, %s99
      %p111 = scmp.eq.s32.totalorder %s28, 1
      %p112 = por %p110, %p111
      %p114 = scmp.ne.s32.totalorder %s99, %s113
      %p115 = scmp.eq.s32.totalorder %s28, 0
      %p116 = por %p114, %p115
      %s118 = sadd.s32 %s117, 1
      %p121 = scmp.eq.s32.totalorder %s22, 1
      %p122 = scmp.ne.s32.totalorder %s117, %s119
      %p123 = scmp.eq.s32.totalorder %s22, 0
      %p124 = por %p122, %p123
      %p125 = scmp.ne.s32.totalorder %s117, %s119
      %p126 = scmp.eq.s32.totalorder %s27, 1
      %p127 = por %p125, %p126
      %p128 = scmp.ne.s32.totalorder %s119, %s120
      %p129 = scmp.eq.s32.totalorder %s27, 0
      %p130 = por %p128, %p129
      %p131 = scmp.ne.s32.totalorder %s119, %s120
      %p132 = scmp.eq.s32.totalorder %s28, 1
      %p133 = por %p131, %p132
      %p135 = scmp.ne.s32.totalorder %s120, %s134
      %p136 = scmp.eq.s32.totalorder %s28, 0
      %p137 = por %p135, %p136
      %s139 = sadd.s32 %s138, 1
      %p142 = scmp.eq.s32.totalorder %s22, 1
      %p143 = scmp.ne.s32.totalorder %s138, %s140
      %p144 = scmp.eq.s32.totalorder %s22, 0
      %p145 = por %p143, %p144
      %p146 = scmp.ne.s32.totalorder %s138, %s140
      %p147 = scmp.eq.s32.totalorder %s27, 1
      %p148 = por %p146, %p147
      %p149 = scmp.ne.s32.totalorder %s140, %s141
      %p150 = scmp.eq.s32.totalorder %s27, 0
      %p151 = por %p149, %p150
      %p152 = scmp.ne.s32.totalorder %s140, %s141
      %p153 = scmp.eq.s32.totalorder %s28, 1
      %p154 = por %p152, %p153
      %p156 = scmp.ne.s32.totalorder %s141, %s155
      %p157 = scmp.eq.s32.totalorder %s28, 0
      %p158 = por %p156, %p157
      %s160 = sadd.s32 %s159, 1
      %p163 = scmp.eq.s32.totalorder %s22, 1
      %p164 = scmp.ne.s32.totalorder %s159, %s161
      %p165 = scmp.eq.s32.totalorder %s22, 0
      %p166 = por %p164, %p165
      %p167 = scmp.ne.s32.totalorder %s159, %s161
      %p168 = scmp.eq.s32.totalorder %s27, 1
      %p169 = por %p167, %p168
      %p170 = scmp.ne.s32.totalorder %s161, %s162
      %p171 = scmp.eq.s32.totalorder %s27, 0
      %p172 = por %p170, %p171
      %p173 = scmp.ne.s32.totalorder %s161, %s162
      %p174 = scmp.eq.s32.totalorder %s28, 1
      %p175 = por %p173, %p174
      %p177 = scmp.ne.s32.totalorder %s162, %s176
      %p178 = scmp.eq.s32.totalorder %s28, 0
      %p179 = por %p177, %p178
      %s180 = ssub.s32 %s29, %s41
      %s181 = ssub.s32 %s30, %s37
      %s182 = sor.u32 %s180, %s181
      %p183 = scmp.eq.s32.totalorder %s182, 0
      %s185 = sadd.s32 %s184, 1
      %s186 = scalar_select %p183, %s184, %s185
      %p189 = pneg %p183
      %p190 = scmp.eq.s32.totalorder %s22, 1
      %p191 = por %p189, %p190
      %p192 = scmp.ne.s32.totalorder %s184, %s187
      %p193 = scmp.eq.s32.totalorder %s22, 0
      %p194 = por %p192, %p193
      %p195 = scmp.ne.s32.totalorder %s184, %s187
      %p196 = scmp.eq.s32.totalorder %s27, 1
      %p197 = por %p195, %p196
      %p198 = scmp.ne.s32.totalorder %s187, %s188
      %p199 = scmp.eq.s32.totalorder %s27, 0
      %p200 = por %p198, %p199
      %p201 = scmp.ne.s32.totalorder %s187, %s188
      %p202 = scmp.eq.s32.totalorder %s28, 1
      %p203 = por %p201, %p202
      %p205 = scmp.ne.s32.totalorder %s188, %s204
      %p206 = scmp.eq.s32.totalorder %s28, 0
      %p207 = por %p205, %p206
      %p208 = scmp.le.s32.totalorder 1, %s22
      %p209 = scmp.lt.s32.totalorder %s22, 3
      %p210 = pnand %p208, %p209
      %p211 = pneg %p210
      // Predicated region
      $region9: #{tpu_custom_call.1} parent=5 // pred_check
        _
      $region10: #{tpu_custom_call.1} parent=5 // pred_check_branch
        %213 = sbr.rel (%p210) target = $region12
      $region11: #{tpu_custom_call.1} parent=5 // pred_region
        %s214 = ssub.s32 %s22, 1
        // Predicated region
        $region13: #{tpu_custom_call.1} parent=11 // pred_check
          %p215 = pneg %p109
        $region14: #{tpu_custom_call.1} parent=11 // pred_check_branch
          %217 = sbr.rel (%p215) target = $region16
        $region15: #{tpu_custom_call.1} parent=11 // pred_region
          %s219 = ssub.s32 256, 256
          %220 = vsyncadd [#allocation9], %s219
          %s221 = sshll.u32 [#allocation10], 4
          %s222 = int_to_ptr.vmem [resolvable:$true] %s221
          %227 = dma.hbm_to_vmem [thread:$0]  %s2, 256, %s222, [#allocation9], 64, 64, 4
        $region16: #{tpu_custom_call.1} parent=11 // pred_fallthru
          _
        // Predicated region
        $region17: #{tpu_custom_call.1} parent=11 // pred_check
          %p228 = pneg %p130
        $region18: #{tpu_custom_call.1} parent=11 // pred_check_branch
          %230 = sbr.rel (%p228) target = $region20
        $region19: #{tpu_custom_call.1} parent=11 // pred_region
          %s232 = ssub.s32 256, 256
          %233 = vsyncadd [#allocation12], %s232
          %s234 = sshll.u32 [#allocation11], 4
          %s235 = int_to_ptr.vmem [resolvable:$true] %s234
          %240 = dma.hbm_to_vmem [thread:$0]  %s3, 256, %s235, [#allocation12], 64, 64, 4
        $region20: #{tpu_custom_call.1} parent=11 // pred_fallthru
          _
        // Predicated region
        $region21: #{tpu_custom_call.1} parent=11 // pred_check
          %p241 = pneg %p151
        $region22: #{tpu_custom_call.1} parent=11 // pred_check_branch
          %243 = sbr.rel (%p241) target = $region24
        $region23: #{tpu_custom_call.1} parent=11 // pred_region
          %s245 = ssub.s32 256, 256
          %246 = vsyncadd [#allocation12], %s245
          %s247 = sshll.u32 [#allocation13], 4
          %s248 = int_to_ptr.vmem [resolvable:$true] %s247
          %253 = dma.hbm_to_vmem [thread:$0]  %s4, 256, %s248, [#allocation12], 64, 64, 4
        $region24: #{tpu_custom_call.1} parent=11 // pred_fallthru
          _
        // Predicated region
        $region25: #{tpu_custom_call.1} parent=11 // pred_check
          %p254 = pneg %p172
        $region26: #{tpu_custom_call.1} parent=11 // pred_check_branch
          %256 = sbr.rel (%p254) target = $region28
        $region27: #{tpu_custom_call.1} parent=11 // pred_region
          _
        $region28: #{tpu_custom_call.1} parent=11 // pred_fallthru
          _
      $region12: #{tpu_custom_call.1} parent=5 // pred_fallthru
        _
      %p257 = scmp.lt.s32.totalorder %s22, 2
      // Predicated region
      $region29: #{tpu_custom_call.1} parent=5 // pred_check
        %p258 = pneg %p257
      $region30: #{tpu_custom_call.1} parent=5 // pred_check_branch
        %260 = sbr.rel (%p258) target = $region32
      $region31: #{tpu_custom_call.1} parent=5 // pred_region
        // Predicated region
        $region33: #{tpu_custom_call.1} parent=31 // pred_check
          %p261 = pneg %p56
        $region34: #{tpu_custom_call.1} parent=31 // pred_check_branch
          %263 = sbr.rel (%p261) target = $region36
        $region35: #{tpu_custom_call.1} parent=31 // pred_region
          %s264 = sand.u32 %s46, 1
          %s265 = scalar_lea.sflag [#allocation6], %s264
          %s266 = sand.u32 %s46, 1
          %s267 = smul.addr %s266, 8
          %s268 = scalar_lea.vmem [#allocation5], %s267
          %s270 = ssub.s32 128, 128
          %271 = vsyncadd %s265, %s270
          %s272 = sadd.s32 %s30, %s29
          %s273 = smul.addr %s272, 128
          %s274 = scalar_lea.hbm %s0, %s273
          %s276 = sshll.u32 %s268, 4
          %s277 = int_to_ptr.vmem [resolvable:$true] %s276
          %279 = dma.hbm_to_vmem [thread:$0]  %s274, 128, %s277, %s265
        $region36: #{tpu_custom_call.1} parent=31 // pred_fallthru
          _
        // Predicated region
        $region37: #{tpu_custom_call.1} parent=31 // pred_check
          %p280 = pneg %p82
        $region38: #{tpu_custom_call.1} parent=31 // pred_check_branch
          %282 = sbr.rel (%p280) target = $region40
        $region39: #{tpu_custom_call.1} parent=31 // pred_region
          %s283 = sand.u32 %s22, 1
          %s284 = scalar_lea.sflag [#allocation9], %s283
          %s285 = sand.u32 %s72, 1
          %s286 = smul.addr %s285, 8
          %s287 = scalar_lea.vmem [#allocation8], %s286
          %s289 = ssub.s32 128, 128
          %290 = vsyncadd %s284, %s289
          %s291 = smul.addr %s29, 128
          %s292 = scalar_lea.hbm %s1, %s291
          %s294 = sshll.u32 %s287, 4
          %s295 = int_to_ptr.vmem [resolvable:$true] %s294
          %297 = dma.hbm_to_vmem [thread:$0]  %s292, 128, %s295, %s284
        $region40: #{tpu_custom_call.1} parent=31 // pred_fallthru
          _
      $region32: #{tpu_custom_call.1} parent=5 // pred_fallthru
        _
      %p298 = scmp.le.s32.totalorder 1, %s22
      %p299 = scmp.lt.s32.totalorder %s22, 3
      %p300 = pnand %p298, %p299
      %p301 = pneg %p300
      // Predicated region
      $region41: #{tpu_custom_call.1} parent=5 // pred_check
        _
      $region42: #{tpu_custom_call.1} parent=5 // pred_check_branch
        %303 = sbr.rel (%p300) target = $region44
      $region43: #{tpu_custom_call.1} parent=5 // pred_region
        %s304 = ssub.s32 %s22, 1
        %s305 = sand.u32 %s49, 1
        %s306 = scalar_lea.sflag [#allocation6], %s305
        %s307 = sand.u32 %s49, 1
        %s308 = smul.addr %s307, 8
        %s309 = scalar_lea.vmem [#allocation5], %s308
        // Predicated region
        $region45: #{tpu_custom_call.1} parent=43 // pred_check
          %p310 = pneg %p62
        $region46: #{tpu_custom_call.1} parent=43 // pred_check_branch
          %312 = sbr.rel (%p310) target = $region48
        $region47: #{tpu_custom_call.1} parent=43 // pred_region
          %313 = dma.done %s306, 128
        $region48: #{tpu_custom_call.1} parent=43 // pred_fallthru
          _
        %s314 = sand.u32 %s27, 1
        %s315 = scalar_lea.sflag [#allocation9], %s314
        %s316 = sand.u32 %s75, 1
        %s317 = smul.addr %s316, 8
        %s318 = scalar_lea.vmem [#allocation8], %s317
        // Predicated region
        $region49: #{tpu_custom_call.1} parent=43 // pred_check
          %p319 = pneg %p88
        $region50: #{tpu_custom_call.1} parent=43 // pred_check_branch
          %321 = sbr.rel (%p319) target = $region52
        $region51: #{tpu_custom_call.1} parent=43 // pred_region
          %322 = dma.done %s315, 128
        $region52: #{tpu_custom_call.1} parent=43 // pred_fallthru
          _
        // Predicated region
        $region53: #{tpu_custom_call.1} parent=43 // pred_check
          %p323 = pneg %p109
        $region54: #{tpu_custom_call.1} parent=43 // pred_check_branch
          %325 = sbr.rel (%p323) target = $region56
        $region55: #{tpu_custom_call.1} parent=43 // pred_region
          %326 = dma.done [#allocation9], 256
        $region56: #{tpu_custom_call.1} parent=43 // pred_fallthru
          _
        // Predicated region
        $region57: #{tpu_custom_call.1} parent=43 // pred_check
          %p327 = pneg %p130
        $region58: #{tpu_custom_call.1} parent=43 // pred_check_branch
          %329 = sbr.rel (%p327) target = $region60
        $region59: #{tpu_custom_call.1} parent=43 // pred_region
          %330 = dma.done [#allocation12], 256
        $region60: #{tpu_custom_call.1} parent=43 // pred_fallthru
          _
        // Predicated region
        $region61: #{tpu_custom_call.1} parent=43 // pred_check
          %p331 = pneg %p151
        $region62: #{tpu_custom_call.1} parent=43 // pred_check_branch
          %333 = sbr.rel (%p331) target = $region64
        $region63: #{tpu_custom_call.1} parent=43 // pred_region
          %334 = dma.done [#allocation12], 256
        $region64: #{tpu_custom_call.1} parent=43 // pred_fallthru
          _
        %s335 = sand.u32 %s49, 1
        %s336 = scalar_lea.sflag [#allocation6], %s335
        %s337 = sand.u32 %s49, 1
        %s338 = smul.addr %s337, 8
        %s339 = scalar_lea.vmem [#allocation5], %s338
        %p340 = pneg %p62
        %p341 = pneg %p59
        %s342 = sand.u32 %s27, 1
        %s343 = scalar_lea.sflag [#allocation9], %s342
        %s344 = sand.u32 %s75, 1
        %s345 = smul.addr %s344, 8
        %s346 = scalar_lea.vmem [#allocation8], %s345
        %p347 = pneg %p88
        %p348 = pneg %p85
        %p349 = pneg %p109
        %p350 = pneg %p106
        %p351 = pneg %p130
        %p352 = pneg %p127
        %p353 = pneg %p151
        %p354 = pneg %p148
        %p355 = pneg %p172
        %p356 = pneg %p169
        %p357 = pneg %p200
        %p358 = pneg %p197
        %s359 = sand.u32 %s187, 1
        %s360 = scalar_lea.sflag [#allocation7], %s359
        %s361 = sand.u32 %s187, 1
        %s362 = smul.addr %s361, 8
        %s363 = scalar_lea.vmem [#allocation14], %s362
        %p365 = scmp.eq.s32.totalorder %s32, 0
        // Predicated region
        $region65: #{tpu_custom_call.1} parent=43 // pred_check
          %p366 = pneg %p365
        $region66: #{tpu_custom_call.1} parent=43 // pred_check_branch
          %368 = sbr.rel (%p366) target = $region68
        $region67: #{tpu_custom_call.1} parent=43 // pred_region
          %v369 = vld [vmem:[%s318] sm:$0xff]
          %v370 = vpack.c.bf16 %v369, %v369
          %v371 = vld [vmem:[#allocation11] sm:$0xf]
          %v372 = vld [vmem:[#allocation11 + $0x4] sm:$0xf]
          %v373 = vld [vmem:[#allocation11 + $0x8] sm:$0xf]
          %v374 = vld [vmem:[#allocation11 + $0xc] sm:$0xf]
          %v379 = vunpack.c.l.b16 %v371
          %v380 = vunpack.c.l.b16 %v372
          %v381 = vunpack.c.l.b16 %v373
          %v382 = vunpack.c.l.b16 %v374
          %v383 = vpack.c.b16 %v380, %v379
          %v384 = vpack.c.b16 %v382, %v381
          %vm387 = vcmask 261120
          %v389 = vsel %vm387, %v370, 0
          %391 = vmatprep.subr.bf16.mxu0 0
          %392 = vmatpush1.bf16.msra.mxu0 %v383
          %393 = vmatprep.subr.bf16.mxu0 0
          %394 = vmatpush1.bf16.msra.mxu0 %v384
          %395 = vmatprep.subr.bf16.mxu0 0
          %396 = vmatpush1.bf16.msra.mxu0 0
          %397 = vmatprep.subr.bf16.mxu0 0
          %398 = vmatpush1.bf16.msra.mxu0 0
          %399 = vmatprep.subr.bf16.mxu0 0
          %400 = vmatpush1.bf16.msra.mxu0 0
          %401 = vmatprep.subr.bf16.mxu0 0
          %402 = vmatpush1.bf16.msra.mxu0 0
          %403 = vmatprep.subr.bf16.mxu0 0
          %404 = vmatpush1.bf16.msra.mxu0 0
          %405 = vmatprep.subr.bf16.mxu0 0
          %406 = vmatpush1.bf16.msra.mxu0 0
          %407 = vmatprep.subr.bf16.mxu0 0
          %408 = vmatpush1.bf16.msra.mxu0 0
          %409 = vmatprep.subr.bf16.mxu0 0
          %410 = vmatpush1.bf16.msra.mxu0 0
          %411 = vmatprep.subr.bf16.mxu0 0
          %412 = vmatpush1.bf16.msra.mxu0 0
          %413 = vmatprep.subr.bf16.mxu0 0
          %414 = vmatpush1.bf16.msra.mxu0 0
          %415 = vmatprep.subr.bf16.mxu0 0
          %416 = vmatpush1.bf16.msra.mxu0 0
          %417 = vmatprep.subr.bf16.mxu0 0
          %418 = vmatpush1.bf16.msra.mxu0 0
          %419 = vmatprep.subr.bf16.mxu0 0
          %420 = vmatpush1.bf16.msra.mxu0 0
          %421 = vmatprep.subr.bf16.mxu0 0
          %422 = vmatpush1.bf16.msra.mxu0 0
          %423 = vmatprep.mubr.bf16.mxu0 0
          %424 = vmatmul.mubr.bf16.gmra.mrb[0].mxu0 %v389
          %v425 = vpop.f32.mrb[0].mxu0
          %v426 = vadd.f32 0.0, %v425
          %v427 = vpop.f32.mrb[0].mxu0
          %v428 = vpop.f32.mrb[0].mxu0
          %v429 = vpop.f32.mrb[0].mxu0
          %430 = vdwg.mxu0
          %v431 = vpack.c.bf16 %v426, %v426
          %vm432 = vcmask 257024
          %433 = vst.msk [vmem:[#allocation2] sm:$0xf] %vm432, %v431
          %v435 = vunpack.c.l.b16 %v431
          %v436 = vpack.c.b16 %v435, %v435
          %437 = vrot.lane.b32.xlu0 %v436, 96
          %v438 = vpop.permute.xlu0 %437
          %s440 = scalar_lea.vmem [#allocation2], 4
          %441 = vst.msk [vmem:[%s440] sm:$0xf] %vm432, %v438
        $region68: #{tpu_custom_call.1} parent=43 // pred_fallthru
          _
        %v442 = vld [vmem:[%s309] sm:$0xff]
        %v443 = vpack.c.bf16 %v442, %v442
        %v444 = vld [vmem:[#allocation10] sm:$0xf]
        %v445 = vld [vmem:[#allocation10 + $0x4] sm:$0xf]
        %v446 = vld [vmem:[#allocation10 + $0x8] sm:$0xf]
        %v447 = vld [vmem:[#allocation10 + $0xc] sm:$0xf]
        %v452 = vunpack.c.l.b16 %v444
        %v453 = vunpack.c.l.b16 %v445
        %v454 = vunpack.c.l.b16 %v446
        %v455 = vunpack.c.l.b16 %v447
        %v456 = vpack.c.b16 %v453, %v452
        %v457 = vpack.c.b16 %v455, %v454
        %vm460 = vcmask 261120
        %v462 = vsel %vm460, %v443, 0
        %464 = vmatprep.subr.bf16.mxu0 0
        %465 = vmatpush1.bf16.msra.mxu0 %v456
        %466 = vmatprep.subr.bf16.mxu0 0
        %467 = vmatpush1.bf16.msra.mxu0 %v457
        %468 = vmatprep.subr.bf16.mxu0 0
        %469 = vmatpush1.bf16.msra.mxu0 0
        %470 = vmatprep.subr.bf16.mxu0 0
        %471 = vmatpush1.bf16.msra.mxu0 0
        %472 = vmatprep.subr.bf16.mxu0 0
        %473 = vmatpush1.bf16.msra.mxu0 0
        %474 = vmatprep.subr.bf16.mxu0 0
        %475 = vmatpush1.bf16.msra.mxu0 0
        %476 = vmatprep.subr.bf16.mxu0 0
        %477 = vmatpush1.bf16.msra.mxu0 0
        %478 = vmatprep.subr.bf16.mxu0 0
        %479 = vmatpush1.bf16.msra.mxu0 0
        %480 = vmatprep.subr.bf16.mxu0 0
        %481 = vmatpush1.bf16.msra.mxu0 0
        %482 = vmatprep.subr.bf16.mxu0 0
        %483 = vmatpush1.bf16.msra.mxu0 0
        %484 = vmatprep.subr.bf16.mxu0 0
        %485 = vmatpush1.bf16.msra.mxu0 0
        %486 = vmatprep.subr.bf16.mxu0 0
        %487 = vmatpush1.bf16.msra.mxu0 0
        %488 = vmatprep.subr.bf16.mxu0 0
        %489 = vmatpush1.bf16.msra.mxu0 0
        %490 = vmatprep.subr.bf16.mxu0 0
        %491 = vmatpush1.bf16.msra.mxu0 0
        %492 = vmatprep.subr.bf16.mxu0 0
        %493 = vmatpush1.bf16.msra.mxu0 0
        %494 = vmatprep.subr.bf16.mxu0 0
        %495 = vmatpush1.bf16.msra.mxu0 0
        %496 = vmatprep.mubr.bf16.mxu0 0
        %497 = vmatmul.mubr.bf16.gmra.mrb[0].mxu0 %v462
        %v498 = vpop.f32.mrb[0].mxu0
        %v499 = vadd.f32 0.0, %v498
        %v500 = vpop.f32.mrb[0].mxu0
        %v501 = vpop.f32.mrb[0].mxu0
        %v502 = vpop.f32.mrb[0].mxu0
        %503 = vdwg.mxu0
        %v504 = vpack.c.bf16 %v499, %v499
        %vm505 = vcmask 257024
        %506 = vst.msk [vmem:[#allocation3] sm:$0xf] %vm505, %v504
        %v507 = vld [vmem:[#allocation3] sm:$0xf]
        %v508 = vld [vmem:[#allocation2] sm:$0xf]
        %s509 = scalar_lea.vmem [#allocation2], 4
        %v510 = vld [vmem:[%s509] sm:$0xf]
        %vm511 = vcmask 31744
        %v513 = vsel %vm511, %v507, 0
        %v516 = vsel %vm511, %v508, 0
        %518 = vmatprep.subr.bf16.mxu0 0
        %519 = vmatpush1.bf16.xpose.msra.mxu0 %v516
        %520 = vmatprep.subr.bf16.mxu0 0
        %521 = vmatpush1.bf16.xpose.msra.mxu0 0
        %522 = vmatprep.subr.bf16.mxu0 0
        %523 = vmatpush1.bf16.xpose.msra.mxu0 0
        %524 = vmatprep.subr.bf16.mxu0 0
        %525 = vmatpush1.bf16.xpose.msra.mxu0 0
        %526 = vmatprep.subr.bf16.mxu0 0
        %527 = vmatpush1.bf16.xpose.msra.mxu0 0
        %528 = vmatprep.subr.bf16.mxu0 0
        %529 = vmatpush1.bf16.xpose.msra.mxu0 0
        %530 = vmatprep.subr.bf16.mxu0 0
        %531 = vmatpush1.bf16.xpose.msra.mxu0 0
        %532 = vmatprep.subr.bf16.mxu0 0
        %533 = vmatpush1.bf16.xpose.msra.mxu0 0
        %534 = vmatprep.subr.bf16.mxu0 0
        %535 = vmatpush1.bf16.xpose.msra.mxu0 0
        %536 = vmatprep.subr.bf16.mxu0 0
        %537 = vmatpush1.bf16.xpose.msra.mxu0 0
        %538 = vmatprep.subr.bf16.mxu0 0
        %539 = vmatpush1.bf16.xpose.msra.mxu0 0
        %540 = vmatprep.subr.bf16.mxu0 0
        %541 = vmatpush1.bf16.xpose.msra.mxu0 0
        %542 = vmatprep.subr.bf16.mxu0 0
        %543 = vmatpush1.bf16.xpose.msra.mxu0 0
        %544 = vmatprep.subr.bf16.mxu0 0
        %545 = vmatpush1.bf16.xpose.msra.mxu0 0
        %546 = vmatprep.subr.bf16.mxu0 0
        %547 = vmatpush1.bf16.xpose.msra.mxu0 0
        %548 = vmatprep.subr.bf16.mxu0 0
        %549 = vmatpush1.bf16.xpose.msra.mxu0 0
        %550 = vmatprep.mubr.bf16.mxu0 0
        %551 = vmatmul.mubr.bf16.gmra.mrb[0].mxu0 %v513
        %v552 = vpop.f32.mrb[0].mxu0
        %v553 = vadd.f32 0.0, %v552
        %v554 = vpop.f32.mrb[0].mxu0
        %v555 = vpop.f32.mrb[0].mxu0
        %v556 = vpop.f32.mrb[0].mxu0
        %557 = vdwg.mxu0
        %vm558 = vcmask 64512
        %v559 = vsel %vm558, %v553, -inf
        %560 = vmax.xlane.f32.xlu0 %v559
        %v561 = vpop.xlane.xlu0 %560
        %v562 = vsub.f32 %v553, %v561
        %v563 = vmul.f32 %v562, 1.442695
        %v564 = vpow.pop %v563
        %v565 = vsel %vm558, %v564, 0.0
        %566 = vadd.xlane.f32.xlu0 %v565
        %v567 = vpop.xlane.xlu0 %566
        %v568 = vrcp.pop %v567
        %v569 = vmul.f32 %v564, %v568
        %v570 = vpack.c.bf16 %v569, %v569
        %v572 = vsel %vm558, %v570, 0
        %vm574 = vcmask 1043456
        %v576 = vsel %vm574, %v510, 0
        %578 = vmatprep.subr.bf16.mxu0 0
        %579 = vmatpush1.bf16.msra.mxu0 %v576
        %580 = vmatprep.subr.bf16.mxu0 0
        %581 = vmatpush1.bf16.msra.mxu0 0
        %582 = vmatprep.subr.bf16.mxu0 0
        %583 = vmatpush1.bf16.msra.mxu0 0
        %584 = vmatprep.subr.bf16.mxu0 0
        %585 = vmatpush1.bf16.msra.mxu0 0
        %586 = vmatprep.subr.bf16.mxu0 0
        %587 = vmatpush1.bf16.msra.mxu0 0
        %588 = vmatprep.subr.bf16.mxu0 0
        %589 = vmatpush1.bf16.msra.mxu0 0
        %590 = vmatprep.subr.bf16.mxu0 0
        %591 = vmatpush1.bf16.msra.mxu0 0
        %592 = vmatprep.subr.bf16.mxu0 0
        %593 = vmatpush1.bf16.msra.mxu0 0
        %594 = vmatprep.subr.bf16.mxu0 0
        %595 = vmatpush1.bf16.msra.mxu0 0
        %596 = vmatprep.subr.bf16.mxu0 0
        %597 = vmatpush1.bf16.msra.mxu0 0
        %598 = vmatprep.subr.bf16.mxu0 0
        %599 = vmatpush1.bf16.msra.mxu0 0
        %600 = vmatprep.subr.bf16.mxu0 0
        %601 = vmatpush1.bf16.msra.mxu0 0
        %602 = vmatprep.subr.bf16.mxu0 0
        %603 = vmatpush1.bf16.msra.mxu0 0
        %604 = vmatprep.subr.bf16.mxu0 0
        %605 = vmatpush1.bf16.msra.mxu0 0
        %606 = vmatprep.subr.bf16.mxu0 0
        %607 = vmatpush1.bf16.msra.mxu0 0
        %608 = vmatprep.subr.bf16.mxu0 0
        %609 = vmatpush1.bf16.msra.mxu0 0
        %610 = vmatprep.mubr.bf16.mxu0 0
        %611 = vmatmul.mubr.bf16.gmra.mrb[0].mxu0 %v572
        %v612 = vpop.f32.mrb[0].mxu0
        %v613 = vadd.f32 0.0, %v612
        %v614 = vpop.f32.mrb[0].mxu0
        %v615 = vpop.f32.mrb[0].mxu0
        %v616 = vpop.f32.mrb[0].mxu0
        %617 = vdwg.mxu0
        %v618 = vpack.c.bf16 %v613, %v613
        %vm619 = vcmask 27648
        %620 = vst.msk [vmem:[#allocation4] sm:$0xf] %vm619, %v618
        %v621 = vld [vmem:[#allocation3] sm:$0xf]
        %v622 = vld [vmem:[#allocation2] sm:$0xf]
        %v623 = vld [vmem:[%s509] sm:$0xf]
        %v625 = vunpack.c.l.b16 %v621
        %v626 = vpack.c.b16 %v625, %v625
        %627 = vrot.lane.b32.xlu0 %v626, 124
        %v628 = vpop.permute.xlu0 %627
        %v630 = vunpack.c.l.b16 %v622
        %v631 = vpack.c.b16 %v630, %v630
        %632 = vrot.lane.b32.xlu0 %v631, 124
        %v633 = vpop.permute.xlu0 %632
        %v635 = vsel %vm511, %v628, 0
        %v638 = vsel %vm511, %v633, 0
        %640 = vmatprep.subr.bf16.mxu0 0
        %641 = vmatpush1.bf16.xpose.msra.mxu0 %v638
        %642 = vmatprep.subr.bf16.mxu0 0
        %643 = vmatpush1.bf16.xpose.msra.mxu0 0
        %644 = vmatprep.subr.bf16.mxu0 0
        %645 = vmatpush1.bf16.xpose.msra.mxu0 0
        %646 = vmatprep.subr.bf16.mxu0 0
        %647 = vmatpush1.bf16.xpose.msra.mxu0 0
        %648 = vmatprep.subr.bf16.mxu0 0
        %649 = vmatpush1.bf16.xpose.msra.mxu0 0
        %650 = vmatprep.subr.bf16.mxu0 0
        %651 = vmatpush1.bf16.xpose.msra.mxu0 0
        %652 = vmatprep.subr.bf16.mxu0 0
        %653 = vmatpush1.bf16.xpose.msra.mxu0 0
        %654 = vmatprep.subr.bf16.mxu0 0
        %655 = vmatpush1.bf16.xpose.msra.mxu0 0
        %656 = vmatprep.subr.bf16.mxu0 0
        %657 = vmatpush1.bf16.xpose.msra.mxu0 0
        %658 = vmatprep.subr.bf16.mxu0 0
        %659 = vmatpush1.bf16.xpose.msra.mxu0 0
        %660 = vmatprep.subr.bf16.mxu0 0
        %661 = vmatpush1.bf16.xpose.msra.mxu0 0
        %662 = vmatprep.subr.bf16.mxu0 0
        %663 = vmatpush1.bf16.xpose.msra.mxu0 0
        %664 = vmatprep.subr.bf16.mxu0 0
        %665 = vmatpush1.bf16.xpose.msra.mxu0 0
        %666 = vmatprep.subr.bf16.mxu0 0
        %667 = vmatpush1.bf16.xpose.msra.mxu0 0
        %668 = vmatprep.subr.bf16.mxu0 0
        %669 = vmatpush1.bf16.xpose.msra.mxu0 0
        %670 = vmatprep.subr.bf16.mxu0 0
        %671 = vmatpush1.bf16.xpose.msra.mxu0 0
        %672 = vmatprep.mubr.bf16.mxu0 0
        %673 = vmatmul.mubr.bf16.gmra.mrb[0].mxu0 %v635
        %v674 = vpop.f32.mrb[0].mxu0
        %v675 = vadd.f32 0.0, %v674
        %v676 = vpop.f32.mrb[0].mxu0
        %v677 = vpop.f32.mrb[0].mxu0
        %v678 = vpop.f32.mrb[0].mxu0
        %679 = vdwg.mxu0
        %v680 = vsel %vm558, %v675, -inf
        %681 = vmax.xlane.f32.xlu0 %v680
        %v682 = vpop.xlane.xlu0 %681
        %v683 = vsub.f32 %v675, %v682
        %v684 = vmul.f32 %v683, 1.442695
        %v685 = vpow.pop %v684
        %v686 = vsel %vm558, %v685, 0.0
        %687 = vadd.xlane.f32.xlu0 %v686
        %v688 = vpop.xlane.xlu0 %687
        %v689 = vrcp.pop %v688
        %v690 = vmul.f32 %v685, %v689
        %v691 = vpack.c.bf16 %v690, %v690
        %v693 = vunpack.c.l.b16 %v623
        %v694 = vpack.c.b16 %v693, %v693
        %695 = vrot.lane.b32.xlu0 %v694, 124
        %v696 = vpop.permute.xlu0 %695
        %v698 = vsel %vm558, %v691, 0
        %v701 = vsel %vm574, %v696, 0
        %703 = vmatprep.subr.bf16.mxu0 0
        %704 = vmatpush1.bf16.msra.mxu0 %v701
        %705 = vmatprep.subr.bf16.mxu0 0
        %706 = vmatpush1.bf16.msra.mxu0 0
        %707 = vmatprep.subr.bf16.mxu0 0
        %708 = vmatpush1.bf16.msra.mxu0 0
        %709 = vmatprep.subr.bf16.mxu0 0
        %710 = vmatpush1.bf16.msra.mxu0 0
        %711 = vmatprep.subr.bf16.mxu0 0
        %712 = vmatpush1.bf16.msra.mxu0 0
        %713 = vmatprep.subr.bf16.mxu0 0
        %714 = vmatpush1.bf16.msra.mxu0 0
        %715 = vmatprep.subr.bf16.mxu0 0
        %716 = vmatpush1.bf16.msra.mxu0 0
        %717 = vmatprep.subr.bf16.mxu0 0
        %718 = vmatpush1.bf16.msra.mxu0 0
        %719 = vmatprep.subr.bf16.mxu0 0
        %720 = vmatpush1.bf16.msra.mxu0 0
        %721 = vmatprep.subr.bf16.mxu0 0
        %722 = vmatpush1.bf16.msra.mxu0 0
        %723 = vmatprep.subr.bf16.mxu0 0
        %724 = vmatpush1.bf16.msra.mxu0 0
        %725 = vmatprep.subr.bf16.mxu0 0
        %726 = vmatpush1.bf16.msra.mxu0 0
        %727 = vmatprep.subr.bf16.mxu0 0
        %728 = vmatpush1.bf16.msra.mxu0 0
        %729 = vmatprep.subr.bf16.mxu0 0
        %730 = vmatpush1.bf16.msra.mxu0 0
        %731 = vmatprep.subr.bf16.mxu0 0
        %732 = vmatpush1.bf16.msra.mxu0 0
        %733 = vmatprep.subr.bf16.mxu0 0
        %734 = vmatpush1.bf16.msra.mxu0 0
        %735 = vmatprep.mubr.bf16.mxu0 0
        %736 = vmatmul.mubr.bf16.gmra.mrb[0].mxu0 %v698
        %v737 = vpop.f32.mrb[0].mxu0
        %v738 = vadd.f32 0.0, %v737
        %v739 = vpop.f32.mrb[0].mxu0
        %v740 = vpop.f32.mrb[0].mxu0
        %v741 = vpop.f32.mrb[0].mxu0
        %742 = vdwg.mxu0
        %v743 = vpack.c.bf16 %v738, %v738
        %v745 = vunpack.c.l.b16 %v743
        %v746 = vpack.c.b16 %v745, %v745
        %747 = vrot.lane.b32.xlu0 %v746, 4
        %v748 = vpop.permute.xlu0 %747
        %vm750 = vcmask 60448
        %751 = vst.msk [vmem:[#allocation4] sm:$0xf] %vm750, %v748
        %v752 = vld [vmem:[#allocation3] sm:$0xf]
        %v753 = vld [vmem:[#allocation2] sm:$0xf]
        %v754 = vld [vmem:[%s509] sm:$0xf]
        %v756 = vunpack.c.l.b16 %v752
        %v757 = vpack.c.b16 %v756, %v756
        %758 = vrot.lane.b32.xlu0 %v757, 120
        %v759 = vpop.permute.xlu0 %758
        %v761 = vunpack.c.l.b16 %v753
        %v762 = vpack.c.b16 %v761, %v761
        %763 = vrot.lane.b32.xlu0 %v762, 120
        %v764 = vpop.permute.xlu0 %763
        %v766 = vsel %vm511, %v759, 0
        %v769 = vsel %vm511, %v764, 0
        %771 = vmatprep.subr.bf16.mxu0 0
        %772 = vmatpush1.bf16.xpose.msra.mxu0 %v769
        %773 = vmatprep.subr.bf16.mxu0 0
        %774 = vmatpush1.bf16.xpose.msra.mxu0 0
        %775 = vmatprep.subr.bf16.mxu0 0
        %776 = vmatpush1.bf16.xpose.msra.mxu0 0
        %777 = vmatprep.subr.bf16.mxu0 0
        %778 = vmatpush1.bf16.xpose.msra.mxu0 0
        %779 = vmatprep.subr.bf16.mxu0 0
        %780 = vmatpush1.bf16.xpose.msra.mxu0 0
        %781 = vmatprep.subr.bf16.mxu0 0
        %782 = vmatpush1.bf16.xpose.msra.mxu0 0
        %783 = vmatprep.subr.bf16.mxu0 0
        %784 = vmatpush1.bf16.xpose.msra.mxu0 0
        %785 = vmatprep.subr.bf16.mxu0 0
        %786 = vmatpush1.bf16.xpose.msra.mxu0 0
        %787 = vmatprep.subr.bf16.mxu0 0
        %788 = vmatpush1.bf16.xpose.msra.mxu0 0
        %789 = vmatprep.subr.bf16.mxu0 0
        %790 = vmatpush1.bf16.xpose.msra.mxu0 0
        %791 = vmatprep.subr.bf16.mxu0 0
        %792 = vmatpush1.bf16.xpose.msra.mxu0 0
        %793 = vmatprep.subr.bf16.mxu0 0
        %794 = vmatpush1.bf16.xpose.msra.mxu0 0
        %795 = vmatprep.subr.bf16.mxu0 0
        %796 = vmatpush1.bf16.xpose.msra.mxu0 0
        %797 = vmatprep.subr.bf16.mxu0 0
        %798 = vmatpush1.bf16.xpose.msra.mxu0 0
        %799 = vmatprep.subr.bf16.mxu0 0
        %800 = vmatpush1.bf16.xpose.msra.mxu0 0
        %801 = vmatprep.subr.bf16.mxu0 0
        %802 = vmatpush1.bf16.xpose.msra.mxu0 0
        %803 = vmatprep.mubr.bf16.mxu0 0
        %804 = vmatmul.mubr.bf16.gmra.mrb[0].mxu0 %v766
        %v805 = vpop.f32.mrb[0].mxu0
        %v806 = vadd.f32 0.0, %v805
        %v807 = vpop.f32.mrb[0].mxu0
        %v808 = vpop.f32.mrb[0].mxu0
        %v809 = vpop.f32.mrb[0].mxu0
        %810 = vdwg.mxu0
        %v811 = vsel %vm558, %v806, -inf
        %812 = vmax.xlane.f32.xlu0 %v811
        %v813 = vpop.xlane.xlu0 %812
        %v814 = vsub.f32 %v806, %v813
        %v815 = vmul.f32 %v814, 1.442695
        %v816 = vpow.pop %v815
        %v817 = vsel %vm558, %v816, 0.0
        %818 = vadd.xlane.f32.xlu0 %v817
        %v819 = vpop.xlane.xlu0 %818
        %v820 = vrcp.pop %v819
        %v821 = vmul.f32 %v816, %v820
        %v822 = vpack.c.bf16 %v821, %v821
        %v824 = vunpack.c.l.b16 %v754
        %v825 = vpack.c.b16 %v824, %v824
        %826 = vrot.lane.b32.xlu0 %v825, 120
        %v827 = vpop.permute.xlu0 %826
        %v829 = vsel %vm558, %v822, 0
        %v832 = vsel %vm574, %v827, 0
        %834 = vmatprep.subr.bf16.mxu0 0
        %835 = vmatpush1.bf16.msra.mxu0 %v832
        %836 = vmatprep.subr.bf16.mxu0 0
        %837 = vmatpush1.bf16.msra.mxu0 0
        %838 = vmatprep.subr.bf16.mxu0 0
        %839 = vmatpush1.bf16.msra.mxu0 0
        %840 = vmatprep.subr.bf16.mxu0 0
        %841 = vmatpush1.bf16.msra.mxu0 0
        %842 = vmatprep.subr.bf16.mxu0 0
        %843 = vmatpush1.bf16.msra.mxu0 0
        %844 = vmatprep.subr.bf16.mxu0 0
        %845 = vmatpush1.bf16.msra.mxu0 0
        %846 = vmatprep.subr.bf16.mxu0 0
        %847 = vmatpush1.bf16.msra.mxu0 0
        %848 = vmatprep.subr.bf16.mxu0 0
        %849 = vmatpush1.bf16.msra.mxu0 0
        %850 = vmatprep.subr.bf16.mxu0 0
        %851 = vmatpush1.bf16.msra.mxu0 0
        %852 = vmatprep.subr.bf16.mxu0 0
        %853 = vmatpush1.bf16.msra.mxu0 0
        %854 = vmatprep.subr.bf16.mxu0 0
        %855 = vmatpush1.bf16.msra.mxu0 0
        %856 = vmatprep.subr.bf16.mxu0 0
        %857 = vmatpush1.bf16.msra.mxu0 0
        %858 = vmatprep.subr.bf16.mxu0 0
        %859 = vmatpush1.bf16.msra.mxu0 0
        %860 = vmatprep.subr.bf16.mxu0 0
        %861 = vmatpush1.bf16.msra.mxu0 0
        %862 = vmatprep.subr.bf16.mxu0 0
        %863 = vmatpush1.bf16.msra.mxu0 0
        %864 = vmatprep.subr.bf16.mxu0 0
        %865 = vmatpush1.bf16.msra.mxu0 0
        %866 = vmatprep.mubr.bf16.mxu0 0
        %867 = vmatmul.mubr.bf16.gmra.mrb[0].mxu0 %v829
        %v868 = vpop.f32.mrb[0].mxu0
        %v869 = vadd.f32 0.0, %v868
        %v870 = vpop.f32.mrb[0].mxu0
        %v871 = vpop.f32.mrb[0].mxu0
        %v872 = vpop.f32.mrb[0].mxu0
        %873 = vdwg.mxu0
        %v874 = vpack.c.bf16 %v869, %v869
        %v876 = vunpack.c.l.b16 %v874
        %v877 = vpack.c.b16 %v876, %v876
        %878 = vrot.lane.b32.xlu0 %v877, 8
        %v879 = vpop.permute.xlu0 %878
        %vm881 = vcmask 93248
        %882 = vst.msk [vmem:[#allocation4] sm:$0xf] %vm881, %v879
        %v883 = vld [vmem:[#allocation3] sm:$0xf]
        %v884 = vld [vmem:[#allocation2] sm:$0xf]
        %v885 = vld [vmem:[%s509] sm:$0xf]
        %v887 = vunpack.c.l.b16 %v883
        %v888 = vpack.c.b16 %v887, %v887
        %889 = vrot.lane.b32.xlu0 %v888, 116
        %v890 = vpop.permute.xlu0 %889
        %v892 = vunpack.c.l.b16 %v884
        %v893 = vpack.c.b16 %v892, %v892
        %894 = vrot.lane.b32.xlu0 %v893, 116
        %v895 = vpop.permute.xlu0 %894
        %v897 = vsel %vm511, %v890, 0
        %v900 = vsel %vm511, %v895, 0
        %902 = vmatprep.subr.bf16.mxu0 0
        %903 = vmatpush1.bf16.xpose.msra.mxu0 %v900
        %904 = vmatprep.subr.bf16.mxu0 0
        %905 = vmatpush1.bf16.xpose.msra.mxu0 0
        %906 = vmatprep.subr.bf16.mxu0 0
        %907 = vmatpush1.bf16.xpose.msra.mxu0 0
        %908 = vmatprep.subr.bf16.mxu0 0
        %909 = vmatpush1.bf16.xpose.msra.mxu0 0
        %910 = vmatprep.subr.bf16.mxu0 0
        %911 = vmatpush1.bf16.xpose.msra.mxu0 0
        %912 = vmatprep.subr.bf16.mxu0 0
        %913 = vmatpush1.bf16.xpose.msra.mxu0 0
        %914 = vmatprep.subr.bf16.mxu0 0
        %915 = vmatpush1.bf16.xpose.msra.mxu0 0
        %916 = vmatprep.subr.bf16.mxu0 0
        %917 = vmatpush1.bf16.xpose.msra.mxu0 0
        %918 = vmatprep.subr.bf16.mxu0 0
        %919 = vmatpush1.bf16.xpose.msra.mxu0 0
        %920 = vmatprep.subr.bf16.mxu0 0
        %921 = vmatpush1.bf16.xpose.msra.mxu0 0
        %922 = vmatprep.subr.bf16.mxu0 0
        %923 = vmatpush1.bf16.xpose.msra.mxu0 0
        %924 = vmatprep.subr.bf16.mxu0 0
        %925 = vmatpush1.bf16.xpose.msra.mxu0 0
        %926 = vmatprep.subr.bf16.mxu0 0
        %927 = vmatpush1.bf16.xpose.msra.mxu0 0
        %928 = vmatprep.subr.bf16.mxu0 0
        %929 = vmatpush1.bf16.xpose.msra.mxu0 0
        %930 = vmatprep.subr.bf16.mxu0 0
        %931 = vmatpush1.bf16.xpose.msra.mxu0 0
        %932 = vmatprep.subr.bf16.mxu0 0
        %933 = vmatpush1.bf16.xpose.msra.mxu0 0
        %934 = vmatprep.mubr.bf16.mxu0 0
        %935 = vmatmul.mubr.bf16.gmra.mrb[0].mxu0 %v897
        %v936 = vpop.f32.mrb[0].mxu0
        %v937 = vadd.f32 0.0, %v936
        %v938 = vpop.f32.mrb[0].mxu0
        %v939 = vpop.f32.mrb[0].mxu0
        %v940 = vpop.f32.mrb[0].mxu0
        %941 = vdwg.mxu0
        %v942 = vsel %vm558, %v937, -inf
        %943 = vmax.xlane.f32.xlu0 %v942
        %v944 = vpop.xlane.xlu0 %943
        %v945 = vsub.f32 %v937, %v944
        %v946 = vmul.f32 %v945, 1.442695
        %v947 = vpow.pop %v946
        %v948 = vsel %vm558, %v947, 0.0
        %949 = vadd.xlane.f32.xlu0 %v948
        %v950 = vpop.xlane.xlu0 %949
        %v951 = vrcp.pop %v950
        %v952 = vmul.f32 %v947, %v951
        %v953 = vpack.c.bf16 %v952, %v952
        %v955 = vunpack.c.l.b16 %v885
        %v956 = vpack.c.b16 %v955, %v955
        %957 = vrot.lane.b32.xlu0 %v956, 116
        %v958 = vpop.permute.xlu0 %957
        %v960 = vsel %vm558, %v953, 0
        %v963 = vsel %vm574, %v958, 0
        %965 = vmatprep.subr.bf16.mxu0 0
        %966 = vmatpush1.bf16.msra.mxu0 %v963
        %967 = vmatprep.subr.bf16.mxu0 0
        %968 = vmatpush1.bf16.msra.mxu0 0
        %969 = vmatprep.subr.bf16.mxu0 0
        %970 = vmatpush1.bf16.msra.mxu0 0
        %971 = vmatprep.subr.bf16.mxu0 0
        %972 = vmatpush1.bf16.msra.mxu0 0
        %973 = vmatprep.subr.bf16.mxu0 0
        %974 = vmatpush1.bf16.msra.mxu0 0
        %975 = vmatprep.subr.bf16.mxu0 0
        %976 = vmatpush1.bf16.msra.mxu0 0
        %977 = vmatprep.subr.bf16.mxu0 0
        %978 = vmatpush1.bf16.msra.mxu0 0
        %979 = vmatprep.subr.bf16.mxu0 0
        %980 = vmatpush1.bf16.msra.mxu0 0
        %981 = vmatprep.subr.bf16.mxu0 0
        %982 = vmatpush1.bf16.msra.mxu0 0
        %983 = vmatprep.subr.bf16.mxu0 0
        %984 = vmatpush1.bf16.msra.mxu0 0
        %985 = vmatprep.subr.bf16.mxu0 0
        %986 = vmatpush1.bf16.msra.mxu0 0
        %987 = vmatprep.subr.bf16.mxu0 0
        %988 = vmatpush1.bf16.msra.mxu0 0
        %989 = vmatprep.subr.bf16.mxu0 0
        %990 = vmatpush1.bf16.msra.mxu0 0
        %991 = vmatprep.subr.bf16.mxu0 0
        %992 = vmatpush1.bf16.msra.mxu0 0
        %993 = vmatprep.subr.bf16.mxu0 0
        %994 = vmatpush1.bf16.msra.mxu0 0
        %995 = vmatprep.subr.bf16.mxu0 0
        %996 = vmatpush1.bf16.msra.mxu0 0
        %997 = vmatprep.mubr.bf16.mxu0 0
        %998 = vmatmul.mubr.bf16.gmra.mrb[0].mxu0 %v960
        %v999 = vpop.f32.mrb[0].mxu0
        %v1000 = vadd.f32 0.0, %v999
        %v1001 = vpop.f32.mrb[0].mxu0
        %v1002 = vpop.f32.mrb[0].mxu0
        %v1003 = vpop.f32.mrb[0].mxu0
        %1004 = vdwg.mxu0
        %v1005 = vpack.c.bf16 %v1000, %v1000
        %v1007 = vunpack.c.l.b16 %v1005
        %v1008 = vpack.c.b16 %v1007, %v1007
        %1009 = vrot.lane.b32.xlu0 %v1008, 12
        %v1010 = vpop.permute.xlu0 %1009
        %vm1012 = vcmask 126048
        %1013 = vst.msk [vmem:[#allocation4] sm:$0xf] %vm1012, %v1010
        %v1014 = vld [vmem:[#allocation3] sm:$0xf]
        %v1015 = vld [vmem:[#allocation2] sm:$0xf]
        %v1016 = vld [vmem:[%s509] sm:$0xf]
        %v1018 = vunpack.c.l.b16 %v1014
        %v1019 = vpack.c.b16 %v1018, %v1018
        %1020 = vrot.lane.b32.xlu0 %v1019, 112
        %v1021 = vpop.permute.xlu0 %1020
        %v1023 = vunpack.c.l.b16 %v1015
        %v1024 = vpack.c.b16 %v1023, %v1023
        %1025 = vrot.lane.b32.xlu0 %v1024, 112
        %v1026 = vpop.permute.xlu0 %1025
        %v1028 = vsel %vm511, %v1021, 0
        %v1031 = vsel %vm511, %v1026, 0
        %1033 = vmatprep.subr.bf16.mxu0 0
        %1034 = vmatpush1.bf16.xpose.msra.mxu0 %v1031
        %1035 = vmatprep.subr.bf16.mxu0 0
        %1036 = vmatpush1.bf16.xpose.msra.mxu0 0
        %1037 = vmatprep.subr.bf16.mxu0 0
        %1038 = vmatpush1.bf16.xpose.msra.mxu0 0
        %1039 = vmatprep.subr.bf16.mxu0 0
        %1040 = vmatpush1.bf16.xpose.msra.mxu0 0
        %1041 = vmatprep.subr.bf16.mxu0 0
        %1042 = vmatpush1.bf16.xpose.msra.mxu0 0
        %1043 = vmatprep.subr.bf16.mxu0 0
        %1044 = vmatpush1.bf16.xpose.msra.mxu0 0
        %1045 = vmatprep.subr.bf16.mxu0 0
        %1046 = vmatpush1.bf16.xpose.msra.mxu0 0
        %1047 = vmatprep.subr.bf16.mxu0 0
        %1048 = vmatpush1.bf16.xpose.msra.mxu0 0
        %1049 = vmatprep.subr.bf16.mxu0 0
        %1050 = vmatpush1.bf16.xpose.msra.mxu0 0
        %1051 = vmatprep.subr.bf16.mxu0 0
        %1052 = vmatpush1.bf16.xpose.msra.mxu0 0
        %1053 = vmatprep.subr.bf16.mxu0 0
        %1054 = vmatpush1.bf16.xpose.msra.mxu0 0
        %1055 = vmatprep.subr.bf16.mxu0 0
        %1056 = vmatpush1.bf16.xpose.msra.mxu0 0
        %1057 = vmatprep.subr.bf16.mxu0 0
        %1058 = vmatpush1.bf16.xpose.msra.mxu0 0
        %1059 = vmatprep.subr.bf16.mxu0 0
        %1060 = vmatpush1.bf16.xpose.msra.mxu0 0
        %1061 = vmatprep.subr.bf16.mxu0 0
        %1062 = vmatpush1.bf16.xpose.msra.mxu0 0
        %1063 = vmatprep.subr.bf16.mxu0 0
        %1064 = vmatpush1.bf16.xpose.msra.mxu0 0
        %1065 = vmatprep.mubr.bf16.mxu0 0
        %1066 = vmatmul.mubr.bf16.gmra.mrb[0].mxu0 %v1028
        %v1067 = vpop.f32.mrb[0].mxu0
        %v1068 = vadd.f32 0.0, %v1067
        %v1069 = vpop.f32.mrb[0].mxu0
        %v1070 = vpop.f32.mrb[0].mxu0
        %v1071 = vpop.f32.mrb[0].mxu0
        %1072 = vdwg.mxu0
        %v1073 = vsel %vm558, %v1068, -inf
        %1074 = vmax.xlane.f32.xlu0 %v1073
        %v1075 = vpop.xlane.xlu0 %1074
        %v1076 = vsub.f32 %v1068, %v1075
        %v1077 = vmul.f32 %v1076, 1.442695
        %v1078 = vpow.pop %v1077
        %v1079 = vsel %vm558, %v1078, 0.0
        %1080 = vadd.xlane.f32.xlu0 %v1079
        %v1081 = vpop.xlane.xlu0 %1080
        %v1082 = vrcp.pop %v1081
        %v1083 = vmul.f32 %v1078, %v1082
        %v1084 = vpack.c.bf16 %v1083, %v1083
        %v1086 = vunpack.c.l.b16 %v1016
        %v1087 = vpack.c.b16 %v1086, %v1086
        %1088 = vrot.lane.b32.xlu0 %v1087, 112
        %v1089 = vpop.permute.xlu0 %1088
        %v1091 = vsel %vm558, %v1084, 0
        %v1094 = vsel %vm574, %v1089, 0
        %1096 = vmatprep.subr.bf16.mxu0 0
        %1097 = vmatpush1.bf16.msra.mxu0 %v1094
        %1098 = vmatprep.subr.bf16.mxu0 0
        %1099 = vmatpush1.bf16.msra.mxu0 0
        %1100 = vmatprep.subr.bf16.mxu0 0
        %1101 = vmatpush1.bf16.msra.mxu0 0
        %1102 = vmatprep.subr.bf16.mxu0 0
        %1103 = vmatpush1.bf16.msra.mxu0 0
        %1104 = vmatprep.subr.bf16.mxu0 0
        %1105 = vmatpush1.bf16.msra.mxu0 0
        %1106 = vmatprep.subr.bf16.mxu0 0
        %1107 = vmatpush1.bf16.msra.mxu0 0
        %1108 = vmatprep.subr.bf16.mxu0 0
        %1109 = vmatpush1.bf16.msra.mxu0 0
        %1110 = vmatprep.subr.bf16.mxu0 0
        %1111 = vmatpush1.bf16.msra.mxu0 0
        %1112 = vmatprep.subr.bf16.mxu0 0
        %1113 = vmatpush1.bf16.msra.mxu0 0
        %1114 = vmatprep.subr.bf16.mxu0 0
        %1115 = vmatpush1.bf16.msra.mxu0 0
        %1116 = vmatprep.subr.bf16.mxu0 0
        %1117 = vmatpush1.bf16.msra.mxu0 0
        %1118 = vmatprep.subr.bf16.mxu0 0
        %1119 = vmatpush1.bf16.msra.mxu0 0
        %1120 = vmatprep.subr.bf16.mxu0 0
        %1121 = vmatpush1.bf16.msra.mxu0 0
        %1122 = vmatprep.subr.bf16.mxu0 0
        %1123 = vmatpush1.bf16.msra.mxu0 0
        %1124 = vmatprep.subr.bf16.mxu0 0
        %1125 = vmatpush1.bf16.msra.mxu0 0
        %1126 = vmatprep.subr.bf16.mxu0 0
        %1127 = vmatpush1.bf16.msra.mxu0 0
        %1128 = vmatprep.mubr.bf16.mxu0 0
        %1129 = vmatmul.mubr.bf16.gmra.mrb[0].mxu0 %v1091
        %v1130 = vpop.f32.mrb[0].mxu0
        %v1131 = vadd.f32 0.0, %v1130
        %v1132 = vpop.f32.mrb[0].mxu0
        %v1133 = vpop.f32.mrb[0].mxu0
        %v1134 = vpop.f32.mrb[0].mxu0
        %1135 = vdwg.mxu0
        %v1136 = vpack.c.bf16 %v1131, %v1131
        %v1138 = vunpack.c.l.b16 %v1136
        %v1139 = vpack.c.b16 %v1138, %v1138
        %1140 = vrot.lane.b32.xlu0 %v1139, 16
        %v1141 = vpop.permute.xlu0 %1140
        %vm1143 = vcmask 158848
        %1144 = vst.msk [vmem:[#allocation4] sm:$0xf] %vm1143, %v1141
        %v1145 = vld [vmem:[#allocation3] sm:$0xf]
        %v1146 = vld [vmem:[#allocation2] sm:$0xf]
        %v1147 = vld [vmem:[%s509] sm:$0xf]
        %v1149 = vunpack.c.l.b16 %v1145
        %v1150 = vpack.c.b16 %v1149, %v1149
        %1151 = vrot.lane.b32.xlu0 %v1150, 108
        %v1152 = vpop.permute.xlu0 %1151
        %v1154 = vunpack.c.l.b16 %v1146
        %v1155 = vpack.c.b16 %v1154, %v1154
        %1156 = vrot.lane.b32.xlu0 %v1155, 108
        %v1157 = vpop.permute.xlu0 %1156
        %v1159 = vsel %vm511, %v1152, 0
        %v1162 = vsel %vm511, %v1157, 0
        %1164 = vmatprep.subr.bf16.mxu0 0
        %1165 = vmatpush1.bf16.xpose.msra.mxu0 %v1162
        %1166 = vmatprep.subr.bf16.mxu0 0
        %1167 = vmatpush1.bf16.xpose.msra.mxu0 0
        %1168 = vmatprep.subr.bf16.mxu0 0
        %1169 = vmatpush1.bf16.xpose.msra.mxu0 0
        %1170 = vmatprep.subr.bf16.mxu0 0
        %1171 = vmatpush1.bf16.xpose.msra.mxu0 0
        %1172 = vmatprep.subr.bf16.mxu0 0
        %1173 = vmatpush1.bf16.xpose.msra.mxu0 0
        %1174 = vmatprep.subr.bf16.mxu0 0
        %1175 = vmatpush1.bf16.xpose.msra.mxu0 0
        %1176 = vmatprep.subr.bf16.mxu0 0
        %1177 = vmatpush1.bf16.xpose.msra.mxu0 0
        %1178 = vmatprep.subr.bf16.mxu0 0
        %1179 = vmatpush1.bf16.xpose.msra.mxu0 0
        %1180 = vmatprep.subr.bf16.mxu0 0
        %1181 = vmatpush1.bf16.xpose.msra.mxu0 0
        %1182 = vmatprep.subr.bf16.mxu0 0
        %1183 = vmatpush1.bf16.xpose.msra.mxu0 0
        %1184 = vmatprep.subr.bf16.mxu0 0
        %1185 = vmatpush1.bf16.xpose.msra.mxu0 0
        %1186 = vmatprep.subr.bf16.mxu0 0
        %1187 = vmatpush1.bf16.xpose.msra.mxu0 0
        %1188 = vmatprep.subr.bf16.mxu0 0
        %1189 = vmatpush1.bf16.xpose.msra.mxu0 0
        %1190 = vmatprep.subr.bf16.mxu0 0
        %1191 = vmatpush1.bf16.xpose.msra.mxu0 0
        %1192 = vmatprep.subr.bf16.mxu0 0
        %1193 = vmatpush1.bf16.xpose.msra.mxu0 0
        %1194 = vmatprep.subr.bf16.mxu0 0
        %1195 = vmatpush1.bf16.xpose.msra.mxu0 0
        %1196 = vmatprep.mubr.bf16.mxu0 0
        %1197 = vmatmul.mubr.bf16.gmra.mrb[0].mxu0 %v1159
        %v1198 = vpop.f32.mrb[0].mxu0
        %v1199 = vadd.f32 0.0, %v1198
        %v1200 = vpop.f32.mrb[0].mxu0
        %v1201 = vpop.f32.mrb[0].mxu0
        %v1202 = vpop.f32.mrb[0].mxu0
        %1203 = vdwg.mxu0
        %v1204 = vsel %vm558, %v1199, -inf
        %1205 = vmax.xlane.f32.xlu0 %v1204
        %v1206 = vpop.xlane.xlu0 %1205
        %v1207 = vsub.f32 %v1199, %v1206
        %v1208 = vmul.f32 %v1207, 1.442695
        %v1209 = vpow.pop %v1208
        %v1210 = vsel %vm558, %v1209, 0.0
        %1211 = vadd.xlane.f32.xlu0 %v1210
        %v1212 = vpop.xlane.xlu0 %1211
        %v1213 = vrcp.pop %v1212
        %v1214 = vmul.f32 %v1209, %v1213
        %v1215 = vpack.c.bf16 %v1214, %v1214
        %v1217 = vunpack.c.l.b16 %v1147
        %v1218 = vpack.c.b16 %v1217, %v1217
        %1219 = vrot.lane.b32.xlu0 %v1218, 108
        %v1220 = vpop.permute.xlu0 %1219
        %v1222 = vsel %vm558, %v1215, 0
        %v1225 = vsel %vm574, %v1220, 0
        %1227 = vmatprep.subr.bf16.mxu0 0
        %1228 = vmatpush1.bf16.msra.mxu0 %v1225
        %1229 = vmatprep.subr.bf16.mxu0 0
        %1230 = vmatpush1.bf16.msra.mxu0 0
        %1231 = vmatprep.subr.bf16.mxu0 0
        %1232 = vmatpush1.bf16.msra.mxu0 0
        %1233 = vmatprep.subr.bf16.mxu0 0
        %1234 = vmatpush1.bf16.msra.mxu0 0
        %1235 = vmatprep.subr.bf16.mxu0 0
        %1236 = vmatpush1.bf16.msra.mxu0 0
        %1237 = vmatprep.subr.bf16.mxu0 0
        %1238 = vmatpush1.bf16.msra.mxu0 0
        %1239 = vmatprep.subr.bf16.mxu0 0
        %1240 = vmatpush1.bf16.msra.mxu0 0
        %1241 = vmatprep.subr.bf16.mxu0 0
        %1242 = vmatpush1.bf16.msra.mxu0 0
        %1243 = vmatprep.subr.bf16.mxu0 0
        %1244 = vmatpush1.bf16.msra.mxu0 0
        %1245 = vmatprep.subr.bf16.mxu0 0
        %1246 = vmatpush1.bf16.msra.mxu0 0
        %1247 = vmatprep.subr.bf16.mxu0 0
        %1248 = vmatpush1.bf16.msra.mxu0 0
        %1249 = vmatprep.subr.bf16.mxu0 0
        %1250 = vmatpush1.bf16.msra.mxu0 0
        %1251 = vmatprep.subr.bf16.mxu0 0
        %1252 = vmatpush1.bf16.msra.mxu0 0
        %1253 = vmatprep.subr.bf16.mxu0 0
        %1254 = vmatpush1.bf16.msra.mxu0 0
        %1255 = vmatprep.subr.bf16.mxu0 0
        %1256 = vmatpush1.bf16.msra.mxu0 0
        %1257 = vmatprep.subr.bf16.mxu0 0
        %1258 = vmatpush1.bf16.msra.mxu0 0
        %1259 = vmatprep.mubr.bf16.mxu0 0
        %1260 = vmatmul.mubr.bf16.gmra.mrb[0].mxu0 %v1222
        %v1261 = vpop.f32.mrb[0].mxu0
        %v1262 = vadd.f32 0.0, %v1261
        %v1263 = vpop.f32.mrb[0].mxu0
        %v1264 = vpop.f32.mrb[0].mxu0
        %v1265 = vpop.f32.mrb[0].mxu0
        %1266 = vdwg.mxu0
        %v1267 = vpack.c.bf16 %v1262, %v1262
        %v1269 = vunpack.c.l.b16 %v1267
        %v1270 = vpack.c.b16 %v1269, %v1269
        %1271 = vrot.lane.b32.xlu0 %v1270, 20
        %v1272 = vpop.permute.xlu0 %1271
        %vm1274 = vcmask 191648
        %1275 = vst.msk [vmem:[#allocation4] sm:$0xf] %vm1274, %v1272
        %v1276 = vld [vmem:[#allocation3] sm:$0xf]
        %v1277 = vld [vmem:[#allocation2] sm:$0xf]
        %v1278 = vld [vmem:[%s509] sm:$0xf]
        %v1280 = vunpack.c.l.b16 %v1276
        %v1281 = vpack.c.b16 %v1280, %v1280
        %1282 = vrot.lane.b32.xlu0 %v1281, 104
        %v1283 = vpop.permute.xlu0 %1282
        %v1285 = vunpack.c.l.b16 %v1277
        %v1286 = vpack.c.b16 %v1285, %v1285
        %1287 = vrot.lane.b32.xlu0 %v1286, 104
        %v1288 = vpop.permute.xlu0 %1287
        %v1290 = vsel %vm511, %v1283, 0
        %v1293 = vsel %vm511, %v1288, 0
        %1295 = vmatprep.subr.bf16.mxu0 0
        %1296 = vmatpush1.bf16.xpose.msra.mxu0 %v1293
        %1297 = vmatprep.subr.bf16.mxu0 0
        %1298 = vmatpush1.bf16.xpose.msra.mxu0 0
        %1299 = vmatprep.subr.bf16.mxu0 0
        %1300 = vmatpush1.bf16.xpose.msra.mxu0 0
        %1301 = vmatprep.subr.bf16.mxu0 0
        %1302 = vmatpush1.bf16.xpose.msra.mxu0 0
        %1303 = vmatprep.subr.bf16.mxu0 0
        %1304 = vmatpush1.bf16.xpose.msra.mxu0 0
        %1305 = vmatprep.subr.bf16.mxu0 0
        %1306 = vmatpush1.bf16.xpose.msra.mxu0 0
        %1307 = vmatprep.subr.bf16.mxu0 0
        %1308 = vmatpush1.bf16.xpose.msra.mxu0 0
        %1309 = vmatprep.subr.bf16.mxu0 0
        %1310 = vmatpush1.bf16.xpose.msra.mxu0 0
        %1311 = vmatprep.subr.bf16.mxu0 0
        %1312 = vmatpush1.bf16.xpose.msra.mxu0 0
        %1313 = vmatprep.subr.bf16.mxu0 0
        %1314 = vmatpush1.bf16.xpose.msra.mxu0 0
        %1315 = vmatprep.subr.bf16.mxu0 0
        %1316 = vmatpush1.bf16.xpose.msra.mxu0 0
        %1317 = vmatprep.subr.bf16.mxu0 0
        %1318 = vmatpush1.bf16.xpose.msra.mxu0 0
        %1319 = vmatprep.subr.bf16.mxu0 0
        %1320 = vmatpush1.bf16.xpose.msra.mxu0 0
        %1321 = vmatprep.subr.bf16.mxu0 0
        %1322 = vmatpush1.bf16.xpose.msra.mxu0 0
        %1323 = vmatprep.subr.bf16.mxu0 0
        %1324 = vmatpush1.bf16.xpose.msra.mxu0 0
        %1325 = vmatprep.subr.bf16.mxu0 0
        %1326 = vmatpush1.bf16.xpose.msra.mxu0 0
        %1327 = vmatprep.mubr.bf16.mxu0 0
        %1328 = vmatmul.mubr.bf16.gmra.mrb[0].mxu0 %v1290
        %v1329 = vpop.f32.mrb[0].mxu0
        %v1330 = vadd.f32 0.0, %v1329
        %v1331 = vpop.f32.mrb[0].mxu0
        %v1332 = vpop.f32.mrb[0].mxu0
        %v1333 = vpop.f32.mrb[0].mxu0
        %1334 = vdwg.mxu0
        %v1335 = vsel %vm558, %v1330, -inf
        %1336 = vmax.xlane.f32.xlu0 %v1335
        %v1337 = vpop.xlane.xlu0 %1336
        %v1338 = vsub.f32 %v1330, %v1337
        %v1339 = vmul.f32 %v1338, 1.442695
        %v1340 = vpow.pop %v1339
        %v1341 = vsel %vm558, %v1340, 0.0
        %1342 = vadd.xlane.f32.xlu0 %v1341
        %v1343 = vpop.xlane.xlu0 %1342
        %v1344 = vrcp.pop %v1343
        %v1345 = vmul.f32 %v1340, %v1344
        %v1346 = vpack.c.bf16 %v1345, %v1345
        %v1348 = vunpack.c.l.b16 %v1278
        %v1349 = vpack.c.b16 %v1348, %v1348
        %1350 = vrot.lane.b32.xlu0 %v1349, 104
        %v1351 = vpop.permute.xlu0 %1350
        %v1353 = vsel %vm558, %v1346, 0
        %v1356 = vsel %vm574, %v1351, 0
        %1358 = vmatprep.subr.bf16.mxu0 0
        %1359 = vmatpush1.bf16.msra.mxu0 %v1356
        %1360 = vmatprep.subr.bf16.mxu0 0
        %1361 = vmatpush1.bf16.msra.mxu0 0
        %1362 = vmatprep.subr.bf16.mxu0 0
        %1363 = vmatpush1.bf16.msra.mxu0 0
        %1364 = vmatprep.subr.bf16.mxu0 0
        %1365 = vmatpush1.bf16.msra.mxu0 0
        %1366 = vmatprep.subr.bf16.mxu0 0
        %1367 = vmatpush1.bf16.msra.mxu0 0
        %1368 = vmatprep.subr.bf16.mxu0 0
        %1369 = vmatpush1.bf16.msra.mxu0 0
        %1370 = vmatprep.subr.bf16.mxu0 0
        %1371 = vmatpush1.bf16.msra.mxu0 0
        %1372 = vmatprep.subr.bf16.mxu0 0
        %1373 = vmatpush1.bf16.msra.mxu0 0
        %1374 = vmatprep.subr.bf16.mxu0 0
        %1375 = vmatpush1.bf16.msra.mxu0 0
        %1376 = vmatprep.subr.bf16.mxu0 0
        %1377 = vmatpush1.bf16.msra.mxu0 0
        %1378 = vmatprep.subr.bf16.mxu0 0
        %1379 = vmatpush1.bf16.msra.mxu0 0
        %1380 = vmatprep.subr.bf16.mxu0 0
        %1381 = vmatpush1.bf16.msra.mxu0 0
        %1382 = vmatprep.subr.bf16.mxu0 0
        %1383 = vmatpush1.bf16.msra.mxu0 0
        %1384 = vmatprep.subr.bf16.mxu0 0
        %1385 = vmatpush1.bf16.msra.mxu0 0
        %1386 = vmatprep.subr.bf16.mxu0 0
        %1387 = vmatpush1.bf16.msra.mxu0 0
        %1388 = vmatprep.subr.bf16.mxu0 0
        %1389 = vmatpush1.bf16.msra.mxu0 0
        %1390 = vmatprep.mubr.bf16.mxu0 0
        %1391 = vmatmul.mubr.bf16.gmra.mrb[0].mxu0 %v1353
        %v1392 = vpop.f32.mrb[0].mxu0
        %v1393 = vadd.f32 0.0, %v1392
        %v1394 = vpop.f32.mrb[0].mxu0
        %v1395 = vpop.f32.mrb[0].mxu0
        %v1396 = vpop.f32.mrb[0].mxu0
        %1397 = vdwg.mxu0
        %v1398 = vpack.c.bf16 %v1393, %v1393
        %v1400 = vunpack.c.l.b16 %v1398
        %v1401 = vpack.c.b16 %v1400, %v1400
        %1402 = vrot.lane.b32.xlu0 %v1401, 24
        %v1403 = vpop.permute.xlu0 %1402
        %vm1405 = vcmask 224448
        %1406 = vst.msk [vmem:[#allocation4] sm:$0xf] %vm1405, %v1403
        %v1407 = vld [vmem:[#allocation3] sm:$0xf]
        %v1408 = vld [vmem:[#allocation2] sm:$0xf]
        %v1409 = vld [vmem:[%s509] sm:$0xf]
        %v1411 = vunpack.c.l.b16 %v1407
        %v1412 = vpack.c.b16 %v1411, %v1411
        %1413 = vrot.lane.b32.xlu0 %v1412, 100
        %v1414 = vpop.permute.xlu0 %1413
        %v1416 = vunpack.c.l.b16 %v1408
        %v1417 = vpack.c.b16 %v1416, %v1416
        %1418 = vrot.lane.b32.xlu0 %v1417, 100
        %v1419 = vpop.permute.xlu0 %1418
        %v1421 = vsel %vm511, %v1414, 0
        %v1424 = vsel %vm511, %v1419, 0
        %1426 = vmatprep.subr.bf16.mxu0 0
        %1427 = vmatpush1.bf16.xpose.msra.mxu0 %v1424
        %1428 = vmatprep.subr.bf16.mxu0 0
        %1429 = vmatpush1.bf16.xpose.msra.mxu0 0
        %1430 = vmatprep.subr.bf16.mxu0 0
        %1431 = vmatpush1.bf16.xpose.msra.mxu0 0
        %1432 = vmatprep.subr.bf16.mxu0 0
        %1433 = vmatpush1.bf16.xpose.msra.mxu0 0
        %1434 = vmatprep.subr.bf16.mxu0 0
        %1435 = vmatpush1.bf16.xpose.msra.mxu0 0
        %1436 = vmatprep.subr.bf16.mxu0 0
        %1437 = vmatpush1.bf16.xpose.msra.mxu0 0
        %1438 = vmatprep.subr.bf16.mxu0 0
        %1439 = vmatpush1.bf16.xpose.msra.mxu0 0
        %1440 = vmatprep.subr.bf16.mxu0 0
        %1441 = vmatpush1.bf16.xpose.msra.mxu0 0
        %1442 = vmatprep.subr.bf16.mxu0 0
        %1443 = vmatpush1.bf16.xpose.msra.mxu0 0
        %1444 = vmatprep.subr.bf16.mxu0 0
        %1445 = vmatpush1.bf16.xpose.msra.mxu0 0
        %1446 = vmatprep.subr.bf16.mxu0 0
        %1447 = vmatpush1.bf16.xpose.msra.mxu0 0
        %1448 = vmatprep.subr.bf16.mxu0 0
        %1449 = vmatpush1.bf16.xpose.msra.mxu0 0
        %1450 = vmatprep.subr.bf16.mxu0 0
        %1451 = vmatpush1.bf16.xpose.msra.mxu0 0
        %1452 = vmatprep.subr.bf16.mxu0 0
        %1453 = vmatpush1.bf16.xpose.msra.mxu0 0
        %1454 = vmatprep.subr.bf16.mxu0 0
        %1455 = vmatpush1.bf16.xpose.msra.mxu0 0
        %1456 = vmatprep.subr.bf16.mxu0 0
        %1457 = vmatpush1.bf16.xpose.msra.mxu0 0
        %1458 = vmatprep.mubr.bf16.mxu0 0
        %1459 = vmatmul.mubr.bf16.gmra.mrb[0].mxu0 %v1421
        %v1460 = vpop.f32.mrb[0].mxu0
        %v1461 = vadd.f32 0.0, %v1460
        %v1462 = vpop.f32.mrb[0].mxu0
        %v1463 = vpop.f32.mrb[0].mxu0
        %v1464 = vpop.f32.mrb[0].mxu0
        %1465 = vdwg.mxu0
        %v1466 = vsel %vm558, %v1461, -inf
        %1467 = vmax.xlane.f32.xlu0 %v1466
        %v1468 = vpop.xlane.xlu0 %1467
        %v1469 = vsub.f32 %v1461, %v1468
        %v1470 = vmul.f32 %v1469, 1.442695
        %v1471 = vpow.pop %v1470
        %v1472 = vsel %vm558, %v1471, 0.0
        %1473 = vadd.xlane.f32.xlu0 %v1472
        %v1474 = vpop.xlane.xlu0 %1473
        %v1475 = vrcp.pop %v1474
        %v1476 = vmul.f32 %v1471, %v1475
        %v1477 = vpack.c.bf16 %v1476, %v1476
        %v1479 = vunpack.c.l.b16 %v1409
        %v1480 = vpack.c.b16 %v1479, %v1479
        %1481 = vrot.lane.b32.xlu0 %v1480, 100
        %v1482 = vpop.permute.xlu0 %1481
        %v1484 = vsel %vm558, %v1477, 0
        %v1487 = vsel %vm574, %v1482, 0
        %1489 = vmatprep.subr.bf16.mxu0 0
        %1490 = vmatpush1.bf16.msra.mxu0 %v1487
        %1491 = vmatprep.subr.bf16.mxu0 0
        %1492 = vmatpush1.bf16.msra.mxu0 0
        %1493 = vmatprep.subr.bf16.mxu0 0
        %1494 = vmatpush1.bf16.msra.mxu0 0
        %1495 = vmatprep.subr.bf16.mxu0 0
        %1496 = vmatpush1.bf16.msra.mxu0 0
        %1497 = vmatprep.subr.bf16.mxu0 0
        %1498 = vmatpush1.bf16.msra.mxu0 0
        %1499 = vmatprep.subr.bf16.mxu0 0
        %1500 = vmatpush1.bf16.msra.mxu0 0
        %1501 = vmatprep.subr.bf16.mxu0 0
        %1502 = vmatpush1.bf16.msra.mxu0 0
        %1503 = vmatprep.subr.bf16.mxu0 0
        %1504 = vmatpush1.bf16.msra.mxu0 0
        %1505 = vmatprep.subr.bf16.mxu0 0
        %1506 = vmatpush1.bf16.msra.mxu0 0
        %1507 = vmatprep.subr.bf16.mxu0 0
        %1508 = vmatpush1.bf16.msra.mxu0 0
        %1509 = vmatprep.subr.bf16.mxu0 0
        %1510 = vmatpush1.bf16.msra.mxu0 0
        %1511 = vmatprep.subr.bf16.mxu0 0
        %1512 = vmatpush1.bf16.msra.mxu0 0
        %1513 = vmatprep.subr.bf16.mxu0 0
        %1514 = vmatpush1.bf16.msra.mxu0 0
        %1515 = vmatprep.subr.bf16.mxu0 0
        %1516 = vmatpush1.bf16.msra.mxu0 0
        %1517 = vmatprep.subr.bf16.mxu0 0
        %1518 = vmatpush1.bf16.msra.mxu0 0
        %1519 = vmatprep.subr.bf16.mxu0 0
        %1520 = vmatpush1.bf16.msra.mxu0 0
        %1521 = vmatprep.mubr.bf16.mxu0 0
        %1522 = vmatmul.mubr.bf16.gmra.mrb[0].mxu0 %v1484
        %v1523 = vpop.f32.mrb[0].mxu0
        %v1524 = vadd.f32 0.0, %v1523
        %v1525 = vpop.f32.mrb[0].mxu0
        %v1526 = vpop.f32.mrb[0].mxu0
        %v1527 = vpop.f32.mrb[0].mxu0
        %1528 = vdwg.mxu0
        %v1529 = vpack.c.bf16 %v1524, %v1524
        %v1531 = vunpack.c.l.b16 %v1529
        %v1532 = vpack.c.b16 %v1531, %v1531
        %1533 = vrot.lane.b32.xlu0 %v1532, 28
        %v1534 = vpop.permute.xlu0 %1533
        %vm1536 = vcmask 257248
        %1537 = vst.msk [vmem:[#allocation4] sm:$0xf] %vm1536, %v1534
        %v1538 = vld [vmem:[#allocation4] sm:$0xf]
        %v1539 = vld [vmem:[#allocation13] sm:$0xf]
        %v1540 = vld [vmem:[#allocation13 + $0x4] sm:$0xf]
        %v1541 = vld [vmem:[#allocation13 + $0x8] sm:$0xf]
        %v1542 = vld [vmem:[#allocation13 + $0xc] sm:$0xf]
        %v1543 = vld [vmem:[%s5] sm:$0x1]
        %v1545 = vlaneseq
        %v1546 = vshrl.u32 %v1545, 7
        %v1547 = vsub.s32 0, %v1546
        %v1548 = vrot.slane %v1543, %v1547
        %v1554 = vunpack.c.l.b16 %v1539
        %v1555 = vunpack.c.l.b16 %v1540
        %v1556 = vunpack.c.l.b16 %v1541
        %v1557 = vunpack.c.l.b16 %v1542
        %v1558 = vpack.c.b16 %v1555, %v1554
        %v1559 = vpack.c.b16 %v1557, %v1556
        %v1563 = vsel %vm460, %v1538, 0
        %1565 = vmatprep.subr.bf16.mxu0 0
        %1566 = vmatpush1.bf16.msra.mxu0 %v1558
        %1567 = vmatprep.subr.bf16.mxu0 0
        %1568 = vmatpush1.bf16.msra.mxu0 %v1559
        %1569 = vmatprep.subr.bf16.mxu0 0
        %1570 = vmatpush1.bf16.msra.mxu0 0
        %1571 = vmatprep.subr.bf16.mxu0 0
        %1572 = vmatpush1.bf16.msra.mxu0 0
        %1573 = vmatprep.subr.bf16.mxu0 0
        %1574 = vmatpush1.bf16.msra.mxu0 0
        %1575 = vmatprep.subr.bf16.mxu0 0
        %1576 = vmatpush1.bf16.msra.mxu0 0
        %1577 = vmatprep.subr.bf16.mxu0 0
        %1578 = vmatpush1.bf16.msra.mxu0 0
        %1579 = vmatprep.subr.bf16.mxu0 0
        %1580 = vmatpush1.bf16.msra.mxu0 0
        %1581 = vmatprep.subr.bf16.mxu0 0
        %1582 = vmatpush1.bf16.msra.mxu0 0
        %1583 = vmatprep.subr.bf16.mxu0 0
        %1584 = vmatpush1.bf16.msra.mxu0 0
        %1585 = vmatprep.subr.bf16.mxu0 0
        %1586 = vmatpush1.bf16.msra.mxu0 0
        %1587 = vmatprep.subr.bf16.mxu0 0
        %1588 = vmatpush1.bf16.msra.mxu0 0
        %1589 = vmatprep.subr.bf16.mxu0 0
        %1590 = vmatpush1.bf16.msra.mxu0 0
        %1591 = vmatprep.subr.bf16.mxu0 0
        %1592 = vmatpush1.bf16.msra.mxu0 0
        %1593 = vmatprep.subr.bf16.mxu0 0
        %1594 = vmatpush1.bf16.msra.mxu0 0
        %1595 = vmatprep.subr.bf16.mxu0 0
        %1596 = vmatpush1.bf16.msra.mxu0 0
        %1597 = vmatprep.mubr.bf16.mxu0 0
        %1598 = vmatmul.mubr.bf16.gmra.mrb[0].mxu0 %v1563
        %v1599 = vpop.f32.mrb[0].mxu0
        %v1600 = vadd.f32 %v1548, %v1599
        %v1601 = vpop.f32.mrb[0].mxu0
        %v1602 = vpop.f32.mrb[0].mxu0
        %v1603 = vpop.f32.mrb[0].mxu0
        %1604 = vdwg.mxu0
        %1605 = vst.msk [vmem:[%s363] sm:$0xff] %vm460, %v1600
        %s1606 = sand.u32 %s187, 1
        %s1607 = scalar_lea.sflag [#allocation7], %s1606
        %s1608 = sand.u32 %s187, 1
        %s1609 = smul.addr %s1608, 8
        %s1610 = scalar_lea.vmem [#allocation14], %s1609
        // Predicated region
        $region69: #{tpu_custom_call.1} parent=43 // pred_check
          %p1611 = pneg %p197
        $region70: #{tpu_custom_call.1} parent=43 // pred_check_branch
          %1613 = sbr.rel (%p1611) target = $region72
        $region71: #{tpu_custom_call.1} parent=43 // pred_region
          %s1615 = ssub.s32 128, 128
          %1616 = vsyncadd %s1607, %s1615
          %s1617 = sadd.s32 %s32, %s31
          %s1618 = smul.addr %s1617, 128
          %s1619 = scalar_lea.hbm %s6, %s1618
          %s1621 = sshll.u32 %s1610, 4
          %s1622 = int_to_ptr.vmem [resolvable:$true] %s1621
          %1624 = dma.vmem_to_hbm [thread:$0]  %s1622, 128, %s1619, %s1607
        $region72: #{tpu_custom_call.1} parent=43 // pred_fallthru
          _
      $region44: #{tpu_custom_call.1} parent=5 // pred_fallthru
        _
      %p1625 = scmp.le.s32.totalorder 2, %s22
      // Predicated region
      $region73: #{tpu_custom_call.1} parent=5 // pred_check
        %p1626 = pneg %p1625
      $region74: #{tpu_custom_call.1} parent=5 // pred_check_branch
        %1628 = sbr.rel (%p1626) target = $region76
      $region75: #{tpu_custom_call.1} parent=5 // pred_region
        %s1629 = ssub.s32 %s22, 2
        // Predicated region
        $region77: #{tpu_custom_call.1} parent=75 // pred_check
          %p1630 = pneg %p203
        $region78: #{tpu_custom_call.1} parent=75 // pred_check_branch
          %1632 = sbr.rel (%p1630) target = $region80
        $region79: #{tpu_custom_call.1} parent=75 // pred_region
          %s1633 = sand.u32 %s188, 1
          %s1634 = scalar_lea.sflag [#allocation7], %s1633
          %s1635 = sand.u32 %s188, 1
          %s1636 = smul.addr %s1635, 8
          %s1637 = scalar_lea.vmem [#allocation14], %s1636
          %1638 = dma.done %s1634, 128
        $region80: #{tpu_custom_call.1} parent=75 // pred_fallthru
          _
      $region76: #{tpu_custom_call.1} parent=5 // pred_fallthru
        _
    $region6: #{tpu_custom_call.1} parent=1 // loop_footer
      %s26 = sadd.s32 1, %s22
    $region7: #{tpu_custom_call.1} parent=1 // loop_footer_branch
      %21 = sbr.rel target = $region3
    $region8: #{tpu_custom_call.1} parent=1 // loop_exit
      _
    %1639 = vsyncpa [#allocation6], 1
    %s1640 = scalar_lea.sflag [#allocation6], 1
    %1641 = vsyncpa %s1640, 1
    %1642 = vsyncpa [#allocation9], 1
    %s1643 = scalar_lea.sflag [#allocation9], 1
    %1644 = vsyncpa %s1643, 1
    %1645 = vsyncpa [#allocation12], 1
    %1646 = vsyncpa [#allocation7], 1
    %s1647 = scalar_lea.sflag [#allocation7], 1
    %1648 = vsyncpa %s1647, 1

// kernel: tpu_custom_call.1
$region0: #{tpu_custom_call.1}
  #allocation0 [shape = 'u32[]', space=smem, size = 0x4, offset = 0x4, fixed_abs, tag = 'smem constant byte address 0x4 - core index']
  #allocation1 [shape = 'u32[144,128]{1,0:T(1,128)}', space=vmem, size = 0x12000, scoped, tag = 'internal scratch']
  #allocation2 [shape = 'bf16[2,8,32]{2,1,0:T(8,128)(2,1)}', space=vmem, size = 0x1000, scoped, tag = 'scratch operand']
  #allocation3 [shape = 'bf16[8,32]{1,0:T(8,128)(2,1)}', space=vmem, size = 0x800, scoped, tag = 'scratch operand']
  #allocation4 [shape = 'bf16[8,32]{1,0:T(8,128)(2,1)}', space=vmem, size = 0x800, scoped, tag = 'scratch operand']
  %s0 = inlined_call_operand.hbm [shape: f32[2,8,32], index: 0, kind: input, shape index: {}]
  %s1 = inlined_call_operand.hbm [shape: f32[2,8,32], index: 1, kind: input, shape index: {}]
  %s2 = inlined_call_operand.hbm [shape: bf16[32,32], index: 2, kind: input, shape index: {}]
  %s3 = inlined_call_operand.hbm [shape: bf16[32,64], index: 3, kind: input, shape index: {}]
  %s4 = inlined_call_operand.hbm [shape: bf16[32,32], index: 4, kind: input, shape index: {}]
  %s5 = inlined_call_operand.vmem [shape: f32[1,32], index: 5, kind: input, shape index: {}]
  %s6 = inlined_call_operand.hbm [shape: f32[2,8,32], index: 6, kind: output, shape index: {}]
  %s7 = sld [smem:[#allocation0]]
  $region81: #{tpu_custom_call.1} parent=0
    _
  %s9 = ssub.s32 1, %s7
  %s10 = scalar_select 0, %s9, %s7
  $region1: #{tpu_custom_call.1} parent=0
    #allocation5 [shape = 'u8[8192]{0}', space=vmem, size = 0x2000, scoped, tag = 'input window, operand 0']
    #allocation6 [shape = 's32[2]{0}', space=sflag, size = 0x8, scoped, tag = 'scoped memory for tpu_custom_call.1']
    #allocation7 [shape = 's32[2]{0}', space=sflag, size = 0x8, scoped, tag = 'scoped memory for tpu_custom_call.1']
    #allocation8 [shape = 'u8[8192]{0}', space=vmem, size = 0x2000, scoped, tag = 'input window, operand 1']
    #allocation9 [shape = 's32[2]{0}', space=sflag, size = 0x8, scoped, tag = 'scoped memory for tpu_custom_call.1']
    #allocation10 [shape = 'u8[8192]{0}', space=vmem, size = 0x2000, scoped, tag = 'input window, operand 2, single buffered']
    #allocation11 [shape = 'u8[8192]{0}', space=vmem, size = 0x2000, scoped, tag = 'input window, operand 3, single buffered']
    #allocation12 [shape = 's32[1]{0}', space=sflag, size = 0x4, scoped, tag = 'scoped memory for tpu_custom_call.1']
    #allocation13 [shape = 'u8[8192]{0}', space=vmem, size = 0x2000, scoped, tag = 'input window, operand 4, single buffered']
    #allocation14 [shape = 'u8[8192]{0}', space=vmem, size = 0x2000, scoped, tag = 'output window, operand 0']
    %11 = vsyncpa [#allocation6], 0
    %s12 = scalar_lea.sflag [#allocation6], 1
    %13 = vsyncpa %s12, 0
    %14 = vsyncpa [#allocation9], 0
    %s15 = scalar_lea.sflag [#allocation9], 1
    %16 = vsyncpa %s15, 0
    %17 = vsyncpa [#allocation12], 0
    %18 = vsyncpa [#allocation7], 0
    %s19 = scalar_lea.sflag [#allocation7], 1
    %20 = vsyncpa %s19, 0
    loop: start=0, step=1, limit=4
    $region2: #{tpu_custom_call.1} parent=1 // loop_pre_header
      _
    $region3: #{tpu_custom_call.1} parent=1 // loop_header
      %s22 = sphi 0, %s26
      %p23 = scmp.ge.s32.totalorder %s22, 4
      %s29 = sphi 0, %s41
      %s30 = sphi 0, %s37
      %s31 = sphi 0, %s29
      %s32 = sphi 0, %s30
      %s33 = sphi 0, %s31
      %s34 = sphi 0, %s32
      %s46 = sphi 0, %s48
      %s49 = sphi 0, %s46
      %s50 = sphi 0, %s49
      %s66 = sphi 0, %s50
      %s72 = sphi 0, %s74
      %s75 = sphi 0, %s72
      %s76 = sphi 0, %s75
      %s92 = sphi 0, %s76
      %s96 = sphi 0, %s96
      %s98 = sphi 0, %s96
      %s99 = sphi 0, %s98
      %s113 = sphi 0, %s99
      %s117 = sphi 0, %s117
      %s119 = sphi 0, %s117
      %s120 = sphi 0, %s119
      %s134 = sphi 0, %s120
      %s138 = sphi 0, %s138
      %s140 = sphi 0, %s138
      %s141 = sphi 0, %s140
      %s155 = sphi 0, %s141
      %s159 = sphi 0, %s159
      %s161 = sphi 0, %s159
      %s162 = sphi 0, %s161
      %s176 = sphi 0, %s162
      %s184 = sphi 0, %s186
      %s187 = sphi 0, %s184
      %s188 = sphi 0, %s187
      %s204 = sphi 0, %s188
    $region4: #{tpu_custom_call.1} parent=1 // loop_header_branch
      %25 = sbr.rel (%p23) target = $region8
    $region5: #{tpu_custom_call.1} parent=1 // loop_body
      %s27 = ssub.s32 %s22, 1
      %s28 = ssub.s32 %s22, 2
      %s35 = sadd.s32 1, %s30
      %p36 = scmp.ge.s32.totalorder %s35, 1
      %s37 = scalar_select %p36, 0, %s35
      %s38 = sadd.s32 1, %s29
      %s39 = scalar_select %p36, %s38, %s29
      %p40 = scmp.ge.s32.totalorder %s39, 2
      %s41 = scalar_select %p40, 0, %s39
      %s42 = ssub.s32 %s29, %s41
      %s43 = ssub.s32 %s30, %s37
      %s44 = sor.u32 %s42, %s43
      %p45 = scmp.eq.s32.totalorder %s44, 0
      %s47 = sadd.s32 %s46, 1
      %s48 = scalar_select %p45, %s46, %s47
      %p51 = pneg %p45
      %p52 = scmp.eq.s32.totalorder %s22, 1
      %p53 = por %p51, %p52
      %p54 = scmp.ne.s32.totalorder %s46, %s49
      %p55 = scmp.eq.s32.totalorder %s22, 0
      %p56 = por %p54, %p55
      %p57 = scmp.ne.s32.totalorder %s46, %s49
      %p58 = scmp.eq.s32.totalorder %s27, 1
      %p59 = por %p57, %p58
      %p60 = scmp.ne.s32.totalorder %s49, %s50
      %p61 = scmp.eq.s32.totalorder %s27, 0
      %p62 = por %p60, %p61
      %p63 = scmp.ne.s32.totalorder %s49, %s50
      %p64 = scmp.eq.s32.totalorder %s28, 1
      %p65 = por %p63, %p64
      %p67 = scmp.ne.s32.totalorder %s50, %s66
      %p68 = scmp.eq.s32.totalorder %s28, 0
      %p69 = por %p67, %p68
      %s70 = ssub.s32 %s29, %s41
      %p71 = scmp.eq.s32.totalorder %s70, 0
      %s73 = sadd.s32 %s72, 1
      %s74 = scalar_select %p71, %s72, %s73
      %p77 = pneg %p71
      %p78 = scmp.eq.s32.totalorder %s22, 1
      %p79 = por %p77, %p78
      %p80 = scmp.ne.s32.totalorder %s72, %s75
      %p81 = scmp.eq.s32.totalorder %s22, 0
      %p82 = por %p80, %p81
      %p83 = scmp.ne.s32.totalorder %s72, %s75
      %p84 = scmp.eq.s32.totalorder %s27, 1
      %p85 = por %p83, %p84
      %p86 = scmp.ne.s32.totalorder %s75, %s76
      %p87 = scmp.eq.s32.totalorder %s27, 0
      %p88 = por %p86, %p87
      %p89 = scmp.ne.s32.totalorder %s75, %s76
      %p90 = scmp.eq.s32.totalorder %s28, 1
      %p91 = por %p89, %p90
      %p93 = scmp.ne.s32.totalorder %s76, %s92
      %p94 = scmp.eq.s32.totalorder %s28, 0
      %p95 = por %p93, %p94
      %s97 = sadd.s32 %s96, 1
      %p100 = scmp.eq.s32.totalorder %s22, 1
      %p101 = scmp.ne.s32.totalorder %s96, %s98
      %p102 = scmp.eq.s32.totalorder %s22, 0
      %p103 = por %p101, %p102
      %p104 = scmp.ne.s32.totalorder %s96, %s98
      %p105 = scmp.eq.s32.totalorder %s27, 1
      %p106 = por %p104, %p105
      %p107 = scmp.ne.s32.totalorder %s98, %s99
      %p108 = scmp.eq.s32.totalorder %s27, 0
      %p109 = por %p107, %p108
      %p110 = scmp.ne.s32.totalorder %s98, %s99
      %p111 = scmp.eq.s32.totalorder %s28, 1
      %p112 = por %p110, %p111
      %p114 = scmp.ne.s32.totalorder %s99, %s113
      %p115 = scmp.eq.s32.totalorder %s28, 0
      %p116 = por %p114, %p115
      %s118 = sadd.s32 %s117, 1
      %p121 = scmp.eq.s32.totalorder %s22, 1
      %p122 = scmp.ne.s32.totalorder %s117, %s119
      %p123 = scmp.eq.s32.totalorder %s22, 0
      %p124 = por %p122, %p123
      %p125 = scmp.ne.s32.totalorder %s117, %s119
      %p126 = scmp.eq.s32.totalorder %s27, 1
      %p127 = por %p125, %p126
      %p128 = scmp.ne.s32.totalorder %s119, %s120
      %p129 = scmp.eq.s32.totalorder %s27, 0
      %p130 = por %p128, %p129
      %p131 = scmp.ne.s32.totalorder %s119, %s120
      %p132 = scmp.eq.s32.totalorder %s28, 1
      %p133 = por %p131, %p132
      %p135 = scmp.ne.s32.totalorder %s120, %s134
      %p136 = scmp.eq.s32.totalorder %s28, 0
      %p137 = por %p135, %p136
      %s139 = sadd.s32 %s138, 1
      %p142 = scmp.eq.s32.totalorder %s22, 1
      %p143 = scmp.ne.s32.totalorder %s138, %s140
      %p144 = scmp.eq.s32.totalorder %s22, 0
      %p145 = por %p143, %p144
      %p146 = scmp.ne.s32.totalorder %s138, %s140
      %p147 = scmp.eq.s32.totalorder %s27, 1
      %p148 = por %p146, %p147
      %p149 = scmp.ne.s32.totalorder %s140, %s141
      %p150 = scmp.eq.s32.totalorder %s27, 0
      %p151 = por %p149, %p150
      %p152 = scmp.ne.s32.totalorder %s140, %s141
      %p153 = scmp.eq.s32.totalorder %s28, 1
      %p154 = por %p152, %p153
      %p156 = scmp.ne.s32.totalorder %s141, %s155
      %p157 = scmp.eq.s32.totalorder %s28, 0
      %p158 = por %p156, %p157
      %s160 = sadd.s32 %s159, 1
      %p163 = scmp.eq.s32.totalorder %s22, 1
      %p164 = scmp.ne.s32.totalorder %s159, %s161
      %p165 = scmp.eq.s32.totalorder %s22, 0
      %p166 = por %p164, %p165
      %p167 = scmp.ne.s32.totalorder %s159, %s161
      %p168 = scmp.eq.s32.totalorder %s27, 1
      %p169 = por %p167, %p168
      %p170 = scmp.ne.s32.totalorder %s161, %s162
      %p171 = scmp.eq.s32.totalorder %s27, 0
      %p172 = por %p170, %p171
      %p173 = scmp.ne.s32.totalorder %s161, %s162
      %p174 = scmp.eq.s32.totalorder %s28, 1
      %p175 = por %p173, %p174
      %p177 = scmp.ne.s32.totalorder %s162, %s176
      %p178 = scmp.eq.s32.totalorder %s28, 0
      %p179 = por %p177, %p178
      %s180 = ssub.s32 %s29, %s41
      %s181 = ssub.s32 %s30, %s37
      %s182 = sor.u32 %s180, %s181
      %p183 = scmp.eq.s32.totalorder %s182, 0
      %s185 = sadd.s32 %s184, 1
      %s186 = scalar_select %p183, %s184, %s185
      %p189 = pneg %p183
      %p190 = scmp.eq.s32.totalorder %s22, 1
      %p191 = por %p189, %p190
      %p192 = scmp.ne.s32.totalorder %s184, %s187
      %p193 = scmp.eq.s32.totalorder %s22, 0
      %p194 = por %p192, %p193
      %p195 = scmp.ne.s32.totalorder %s184, %s187
      %p196 = scmp.eq.s32.totalorder %s27, 1
      %p197 = por %p195, %p196
      %p198 = scmp.ne.s32.totalorder %s187, %s188
      %p199 = scmp.eq.s32.totalorder %s27, 0
      %p200 = por %p198, %p199
      %p201 = scmp.ne.s32.totalorder %s187, %s188
      %p202 = scmp.eq.s32.totalorder %s28, 1
      %p203 = por %p201, %p202
      %p205 = scmp.ne.s32.totalorder %s188, %s204
      %p206 = scmp.eq.s32.totalorder %s28, 0
      %p207 = por %p205, %p206
      %p208 = scmp.le.s32.totalorder 1, %s22
      %p209 = scmp.lt.s32.totalorder %s22, 3
      %p210 = pnand %p208, %p209
      %p211 = pneg %p210
      // Predicated region
      $region9: #{tpu_custom_call.1} parent=5 // pred_check
        _
      $region10: #{tpu_custom_call.1} parent=5 // pred_check_branch
        %213 = sbr.rel (%p210) target = $region12
      $region11: #{tpu_custom_call.1} parent=5 // pred_region
        %s214 = ssub.s32 %s22, 1
        // Predicated region
        $region13: #{tpu_custom_call.1} parent=11 // pred_check
          %p215 = pneg %p109
        $region14: #{tpu_custom_call.1} parent=11 // pred_check_branch
          %217 = sbr.rel (%p215) target = $region16
        $region15: #{tpu_custom_call.1} parent=11 // pred_region
          %s219 = ssub.s32 256, 256
          %220 = vsyncadd [#allocation9], %s219
          %s221 = sshll.u32 [#allocation10], 4
          %s222 = int_to_ptr.vmem [resolvable:$true] %s221
          %227 = dma.hbm_to_vmem [thread:$0]  %s2, 256, %s222, [#allocation9], 64, 64, 4
        $region16: #{tpu_custom_call.1} parent=11 // pred_fallthru
          _
        // Predicated region
        $region17: #{tpu_custom_call.1} parent=11 // pred_check
          %p228 = pneg %p130
        $region18: #{tpu_custom_call.1} parent=11 // pred_check_branch
          %230 = sbr.rel (%p228) target = $region20
        $region19: #{tpu_custom_call.1} parent=11 // pred_region
          %s232 = ssub.s32 256, 256
          %233 = vsyncadd [#allocation12], %s232
          %s234 = sshll.u32 [#allocation11], 4
          %s235 = int_to_ptr.vmem [resolvable:$true] %s234
          %240 = dma.hbm_to_vmem [thread:$0]  %s3, 256, %s235, [#allocation12], 64, 64, 4
        $region20: #{tpu_custom_call.1} parent=11 // pred_fallthru
          _
        // Predicated region
        $region21: #{tpu_custom_call.1} parent=11 // pred_check
          %p241 = pneg %p151
        $region22: #{tpu_custom_call.1} parent=11 // pred_check_branch
          %243 = sbr.rel (%p241) target = $region24
        $region23: #{tpu_custom_call.1} parent=11 // pred_region
          %s245 = ssub.s32 256, 256
          %246 = vsyncadd [#allocation12], %s245
          %s247 = sshll.u32 [#allocation13], 4
          %s248 = int_to_ptr.vmem [resolvable:$true] %s247
          %253 = dma.hbm_to_vmem [thread:$0]  %s4, 256, %s248, [#allocation12], 64, 64, 4
        $region24: #{tpu_custom_call.1} parent=11 // pred_fallthru
          _
        // Predicated region
        $region25: #{tpu_custom_call.1} parent=11 // pred_check
          %p254 = pneg %p172
        $region26: #{tpu_custom_call.1} parent=11 // pred_check_branch
          %256 = sbr.rel (%p254) target = $region28
        $region27: #{tpu_custom_call.1} parent=11 // pred_region
          _
        $region28: #{tpu_custom_call.1} parent=11 // pred_fallthru
          _
      $region12: #{tpu_custom_call.1} parent=5 // pred_fallthru
        _
      %p257 = scmp.lt.s32.totalorder %s22, 2
      // Predicated region
      $region29: #{tpu_custom_call.1} parent=5 // pred_check
        %p258 = pneg %p257
      $region30: #{tpu_custom_call.1} parent=5 // pred_check_branch
        %260 = sbr.rel (%p258) target = $region32
      $region31: #{tpu_custom_call.1} parent=5 // pred_region
        // Predicated region
        $region33: #{tpu_custom_call.1} parent=31 // pred_check
          %p261 = pneg %p56
        $region34: #{tpu_custom_call.1} parent=31 // pred_check_branch
          %263 = sbr.rel (%p261) target = $region36
        $region35: #{tpu_custom_call.1} parent=31 // pred_region
          %s264 = sand.u32 %s46, 1
          %s265 = scalar_lea.sflag [#allocation6], %s264
          %s266 = sand.u32 %s46, 1
          %s267 = smul.addr %s266, 8
          %s268 = scalar_lea.vmem [#allocation5], %s267
          %s270 = ssub.s32 128, 128
          %271 = vsyncadd %s265, %s270
          %s272 = sadd.s32 %s30, %s29
          %s273 = smul.addr %s272, 128
          %s274 = scalar_lea.hbm %s0, %s273
          %s276 = sshll.u32 %s268, 4
          %s277 = int_to_ptr.vmem [resolvable:$true] %s276
          %279 = dma.hbm_to_vmem [thread:$0]  %s274, 128, %s277, %s265
        $region36: #{tpu_custom_call.1} parent=31 // pred_fallthru
          _
        // Predicated region
        $region37: #{tpu_custom_call.1} parent=31 // pred_check
          %p280 = pneg %p82
        $region38: #{tpu_custom_call.1} parent=31 // pred_check_branch
          %282 = sbr.rel (%p280) target = $region40
        $region39: #{tpu_custom_call.1} parent=31 // pred_region
          %s283 = sand.u32 %s22, 1
          %s284 = scalar_lea.sflag [#allocation9], %s283
          %s285 = sand.u32 %s72, 1
          %s286 = smul.addr %s285, 8
          %s287 = scalar_lea.vmem [#allocation8], %s286
          %s289 = ssub.s32 128, 128
          %290 = vsyncadd %s284, %s289
          %s291 = smul.addr %s29, 128
          %s292 = scalar_lea.hbm %s1, %s291
          %s294 = sshll.u32 %s287, 4
          %s295 = int_to_ptr.vmem [resolvable:$true] %s294
          %297 = dma.hbm_to_vmem [thread:$0]  %s292, 128, %s295, %s284
        $region40: #{tpu_custom_call.1} parent=31 // pred_fallthru
          _
      $region32: #{tpu_custom_call.1} parent=5 // pred_fallthru
        _
      %p298 = scmp.le.s32.totalorder 1, %s22
      %p299 = scmp.lt.s32.totalorder %s22, 3
      %p300 = pnand %p298, %p299
      %p301 = pneg %p300
      // Predicated region
      $region41: #{tpu_custom_call.1} parent=5 // pred_check
        _
      $region42: #{tpu_custom_call.1} parent=5 // pred_check_branch
        %303 = sbr.rel (%p300) target = $region44
      $region43: #{tpu_custom_call.1} parent=5 // pred_region
        %s304 = ssub.s32 %s22, 1
        %s305 = sand.u32 %s49, 1
        %s306 = scalar_lea.sflag [#allocation6], %s305
        %s307 = sand.u32 %s49, 1
        %s308 = smul.addr %s307, 8
        %s309 = scalar_lea.vmem [#allocation5], %s308
        // Predicated region
        $region45: #{tpu_custom_call.1} parent=43 // pred_check
          %p310 = pneg %p62
        $region46: #{tpu_custom_call.1} parent=43 // pred_check_branch
          %312 = sbr.rel (%p310) target = $region48
        $region47: #{tpu_custom_call.1} parent=43 // pred_region
          %313 = dma.done %s306, 128
        $region48: #{tpu_custom_call.1} parent=43 // pred_fallthru
          _
        %s314 = sand.u32 %s27, 1
        %s315 = scalar_lea.sflag [#allocation9], %s314
        %s316 = sand.u32 %s75, 1
        %s317 = smul.addr %s316, 8
        %s318 = scalar_lea.vmem [#allocation8], %s317
        // Predicated region
        $region49: #{tpu_custom_call.1} parent=43 // pred_check
          %p319 = pneg %p88
        $region50: #{tpu_custom_call.1} parent=43 // pred_check_branch
          %321 = sbr.rel (%p319) target = $region52
        $region51: #{tpu_custom_call.1} parent=43 // pred_region
          %322 = dma.done %s315, 128
        $region52: #{tpu_custom_call.1} parent=43 // pred_fallthru
          _
        // Predicated region
        $region53: #{tpu_custom_call.1} parent=43 // pred_check
          %p323 = pneg %p109
        $region54: #{tpu_custom_call.1} parent=43 // pred_check_branch
          %325 = sbr.rel (%p323) target = $region56
        $region55: #{tpu_custom_call.1} parent=43 // pred_region
          %326 = dma.done [#allocation9], 256
        $region56: #{tpu_custom_call.1} parent=43 // pred_fallthru
          _
        // Predicated region
        $region57: #{tpu_custom_call.1} parent=43 // pred_check
          %p327 = pneg %p130
        $region58: #{tpu_custom_call.1} parent=43 // pred_check_branch
          %329 = sbr.rel (%p327) target = $region60
        $region59: #{tpu_custom_call.1} parent=43 // pred_region
          %330 = dma.done [#allocation12], 256
        $region60: #{tpu_custom_call.1} parent=43 // pred_fallthru
          _
        // Predicated region
        $region61: #{tpu_custom_call.1} parent=43 // pred_check
          %p331 = pneg %p151
        $region62: #{tpu_custom_call.1} parent=43 // pred_check_branch
          %333 = sbr.rel (%p331) target = $region64
        $region63: #{tpu_custom_call.1} parent=43 // pred_region
          %334 = dma.done [#allocation12], 256
        $region64: #{tpu_custom_call.1} parent=43 // pred_fallthru
          _
        %s335 = sand.u32 %s49, 1
        %s336 = scalar_lea.sflag [#allocation6], %s335
        %s337 = sand.u32 %s49, 1
        %s338 = smul.addr %s337, 8
        %s339 = scalar_lea.vmem [#allocation5], %s338
        %p340 = pneg %p62
        %p341 = pneg %p59
        %s342 = sand.u32 %s27, 1
        %s343 = scalar_lea.sflag [#allocation9], %s342
        %s344 = sand.u32 %s75, 1
        %s345 = smul.addr %s344, 8
        %s346 = scalar_lea.vmem [#allocation8], %s345
        %p347 = pneg %p88
        %p348 = pneg %p85
        %p349 = pneg %p109
        %p350 = pneg %p106
        %p351 = pneg %p130
        %p352 = pneg %p127
        %p353 = pneg %p151
        %p354 = pneg %p148
        %p355 = pneg %p172
        %p356 = pneg %p169
        %p357 = pneg %p200
        %p358 = pneg %p197
        %s359 = sand.u32 %s187, 1
        %s360 = scalar_lea.sflag [#allocation7], %s359
        %s361 = sand.u32 %s187, 1
        %s362 = smul.addr %s361, 8
        %s363 = scalar_lea.vmem [#allocation14], %s362
        %p365 = scmp.eq.s32.totalorder %s32, 0
        // Predicated region
        $region65: #{tpu_custom_call.1} parent=43 // pred_check
          %p366 = pneg %p365
        $region66: #{tpu_custom_call.1} parent=43 // pred_check_branch
          %368 = sbr.rel (%p366) target = $region68
        $region67: #{tpu_custom_call.1} parent=43 // pred_region
          %v369 = vld [vmem:[%s318] sm:$0xff]
          %v370 = vpack.c.bf16 %v369, %v369
          %v371 = vld [vmem:[#allocation11] sm:$0xf]
          %v372 = vld [vmem:[#allocation11 + $0x4] sm:$0xf]
          %v373 = vld [vmem:[#allocation11 + $0x8] sm:$0xf]
          %v374 = vld [vmem:[#allocation11 + $0xc] sm:$0xf]
          %v379 = vunpack.c.l.b16 %v371
          %v380 = vunpack.c.l.b16 %v372
          %v381 = vunpack.c.l.b16 %v373
          %v382 = vunpack.c.l.b16 %v374
          %v383 = vpack.c.b16 %v380, %v379
          %v384 = vpack.c.b16 %v382, %v381
          %vm387 = vcmask 261120
          %v389 = vsel %vm387, %v370, 0
          %391 = vmatprep.subr.bf16.mxu0 0
          %392 = vmatpush1.bf16.msra.mxu0 %v383
          %393 = vmatprep.subr.bf16.mxu0 0
          %394 = vmatpush1.bf16.msra.mxu0 %v384
          %395 = vmatprep.subr.bf16.mxu0 0
          %396 = vmatpush1.bf16.msra.mxu0 0
          %397 = vmatprep.subr.bf16.mxu0 0
          %398 = vmatpush1.bf16.msra.mxu0 0
          %399 = vmatprep.subr.bf16.mxu0 0
          %400 = vmatpush1.bf16.msra.mxu0 0
          %401 = vmatprep.subr.bf16.mxu0 0
          %402 = vmatpush1.bf16.msra.mxu0 0
          %403 = vmatprep.subr.bf16.mxu0 0
          %404 = vmatpush1.bf16.msra.mxu0 0
          %405 = vmatprep.subr.bf16.mxu0 0
          %406 = vmatpush1.bf16.msra.mxu0 0
          %407 = vmatprep.subr.bf16.mxu0 0
          %408 = vmatpush1.bf16.msra.mxu0 0
          %409 = vmatprep.subr.bf16.mxu0 0
          %410 = vmatpush1.bf16.msra.mxu0 0
          %411 = vmatprep.subr.bf16.mxu0 0
          %412 = vmatpush1.bf16.msra.mxu0 0
          %413 = vmatprep.subr.bf16.mxu0 0
          %414 = vmatpush1.bf16.msra.mxu0 0
          %415 = vmatprep.subr.bf16.mxu0 0
          %416 = vmatpush1.bf16.msra.mxu0 0
          %417 = vmatprep.subr.bf16.mxu0 0
          %418 = vmatpush1.bf16.msra.mxu0 0
          %419 = vmatprep.subr.bf16.mxu0 0
          %420 = vmatpush1.bf16.msra.mxu0 0
          %421 = vmatprep.subr.bf16.mxu0 0
          %422 = vmatpush1.bf16.msra.mxu0 0
          %423 = vmatprep.mubr.bf16.mxu0 0
          %424 = vmatmul.mubr.bf16.gmra.mrb[0].mxu0 %v389
          %v425 = vpop.f32.mrb[0].mxu0
          %v426 = vadd.f32 0.0, %v425
          %v427 = vpop.f32.mrb[0].mxu0
          %v428 = vpop.f32.mrb[0].mxu0
          %v429 = vpop.f32.mrb[0].mxu0
          %430 = vdwg.mxu0
          %v431 = vpack.c.bf16 %v426, %v426
          %vm432 = vcmask 257024
          %433 = vst.msk [vmem:[#allocation2] sm:$0xf] %vm432, %v431
          %v435 = vunpack.c.l.b16 %v431
          %v436 = vpack.c.b16 %v435, %v435
          %437 = vrot.lane.b32.xlu0 %v436, 96
          %v438 = vpop.permute.xlu0 %437
          %s440 = scalar_lea.vmem [#allocation2], 4
          %441 = vst.msk [vmem:[%s440] sm:$0xf] %vm432, %v438
        $region68: #{tpu_custom_call.1} parent=43 // pred_fallthru
          _
        %v442 = vld [vmem:[%s309] sm:$0xff]
        %v443 = vpack.c.bf16 %v442, %v442
        %v444 = vld [vmem:[#allocation10] sm:$0xf]
        %v445 = vld [vmem:[#allocation10 + $0x4] sm:$0xf]
        %v446 = vld [vmem:[#allocation10 + $0x8] sm:$0xf]
        %v447 = vld [vmem:[#allocation10 + $0xc] sm:$0xf]
        %v452 = vunpack.c.l.b16 %v444
        %v453 = vunpack.c.l.b16 %v445
        %v454 = vunpack.c.l.b16 %v446
        %v455 = vunpack.c.l.b16 %v447
        %v456 = vpack.c.b16 %v453, %v452
        %v457 = vpack.c.b16 %v455, %v454
        %vm460 = vcmask 261120
        %v462 = vsel %vm460, %v443, 0
        %464 = vmatprep.subr.bf16.mxu0 0
        %465 = vmatpush1.bf16.msra.mxu0 %v456
        %466 = vmatprep.subr.bf16.mxu0 0
        %467 = vmatpush1.bf16.msra.mxu0 %v457
        %468 = vmatprep.subr.bf16.mxu0 0
        %469 = vmatpush1.bf16.msra.mxu0 0
        %470 = vmatprep.subr.bf16.mxu0 0
        %471 = vmatpush1.bf16.msra.mxu0 0
        %472 = vmatprep.subr.bf16.mxu0 0
        %473 = vmatpush1.bf16.msra.mxu0 0
        %474 = vmatprep.subr.bf16.mxu0 0
        %475 = vmatpush1.bf16.msra.mxu0 0
        %476 = vmatprep.subr.bf16.mxu0 0
        %477 = vmatpush1.bf16.msra.mxu0 0
        %478 = vmatprep.subr.bf16.mxu0 0
        %479 = vmatpush1.bf16.msra.mxu0 0
        %480 = vmatprep.subr.bf16.mxu0 0
        %481 = vmatpush1.bf16.msra.mxu0 0
        %482 = vmatprep.subr.bf16.mxu0 0
        %483 = vmatpush1.bf16.msra.mxu0 0
        %484 = vmatprep.subr.bf16.mxu0 0
        %485 = vmatpush1.bf16.msra.mxu0 0
        %486 = vmatprep.subr.bf16.mxu0 0
        %487 = vmatpush1.bf16.msra.mxu0 0
        %488 = vmatprep.subr.bf16.mxu0 0
        %489 = vmatpush1.bf16.msra.mxu0 0
        %490 = vmatprep.subr.bf16.mxu0 0
        %491 = vmatpush1.bf16.msra.mxu0 0
        %492 = vmatprep.subr.bf16.mxu0 0
        %493 = vmatpush1.bf16.msra.mxu0 0
        %494 = vmatprep.subr.bf16.mxu0 0
        %495 = vmatpush1.bf16.msra.mxu0 0
        %496 = vmatprep.mubr.bf16.mxu0 0
        %497 = vmatmul.mubr.bf16.gmra.mrb[0].mxu0 %v462
        %v498 = vpop.f32.mrb[0].mxu0
        %v499 = vadd.f32 0.0, %v498
        %v500 = vpop.f32.mrb[0].mxu0
        %v501 = vpop.f32.mrb[0].mxu0
        %v502 = vpop.f32.mrb[0].mxu0
        %503 = vdwg.mxu0
        %v504 = vpack.c.bf16 %v499, %v499
        %vm505 = vcmask 257024
        %506 = vst.msk [vmem:[#allocation3] sm:$0xf] %vm505, %v504
        %v507 = vld [vmem:[#allocation3] sm:$0xf]
        %v508 = vld [vmem:[#allocation2] sm:$0xf]
        %s509 = scalar_lea.vmem [#allocation2], 4
        %v510 = vld [vmem:[%s509] sm:$0xf]
        %vm511 = vcmask 31744
        %v513 = vsel %vm511, %v507, 0
        %v516 = vsel %vm511, %v508, 0
        %518 = vmatprep.subr.bf16.mxu0 0
        %519 = vmatpush1.bf16.xpose.msra.mxu0 %v516
        %520 = vmatprep.subr.bf16.mxu0 0
        %521 = vmatpush1.bf16.xpose.msra.mxu0 0
        %522 = vmatprep.subr.bf16.mxu0 0
        %523 = vmatpush1.bf16.xpose.msra.mxu0 0
        %524 = vmatprep.subr.bf16.mxu0 0
        %525 = vmatpush1.bf16.xpose.msra.mxu0 0
        %526 = vmatprep.subr.bf16.mxu0 0
        %527 = vmatpush1.bf16.xpose.msra.mxu0 0
        %528 = vmatprep.subr.bf16.mxu0 0
        %529 = vmatpush1.bf16.xpose.msra.mxu0 0
        %530 = vmatprep.subr.bf16.mxu0 0
        %531 = vmatpush1.bf16.xpose.msra.mxu0 0
        %532 = vmatprep.subr.bf16.mxu0 0
        %533 = vmatpush1.bf16.xpose.msra.mxu0 0
        %534 = vmatprep.subr.bf16.mxu0 0
        %535 = vmatpush1.bf16.xpose.msra.mxu0 0
        %536 = vmatprep.subr.bf16.mxu0 0
        %537 = vmatpush1.bf16.xpose.msra.mxu0 0
        %538 = vmatprep.subr.bf16.mxu0 0
        %539 = vmatpush1.bf16.xpose.msra.mxu0 0
        %540 = vmatprep.subr.bf16.mxu0 0
        %541 = vmatpush1.bf16.xpose.msra.mxu0 0
        %542 = vmatprep.subr.bf16.mxu0 0
        %543 = vmatpush1.bf16.xpose.msra.mxu0 0
        %544 = vmatprep.subr.bf16.mxu0 0
        %545 = vmatpush1.bf16.xpose.msra.mxu0 0
        %546 = vmatprep.subr.bf16.mxu0 0
        %547 = vmatpush1.bf16.xpose.msra.mxu0 0
        %548 = vmatprep.subr.bf16.mxu0 0
        %549 = vmatpush1.bf16.xpose.msra.mxu0 0
        %550 = vmatprep.mubr.bf16.mxu0 0
        %551 = vmatmul.mubr.bf16.gmra.mrb[0].mxu0 %v513
        %v552 = vpop.f32.mrb[0].mxu0
        %v553 = vadd.f32 0.0, %v552
        %v554 = vpop.f32.mrb[0].mxu0
        %v555 = vpop.f32.mrb[0].mxu0
        %v556 = vpop.f32.mrb[0].mxu0
        %557 = vdwg.mxu0
        %vm558 = vcmask 64512
        %v559 = vsel %vm558, %v553, -inf
        %560 = vmax.xlane.f32.xlu0 %v559
        %v561 = vpop.xlane.xlu0 %560
        %v562 = vsub.f32 %v553, %v561
        %v563 = vmul.f32 %v562, 1.442695
        %v564 = vpow.pop %v563
        %v565 = vsel %vm558, %v564, 0.0
        %566 = vadd.xlane.f32.xlu0 %v565
        %v567 = vpop.xlane.xlu0 %566
        %v568 = vrcp.pop %v567
        %v569 = vmul.f32 %v564, %v568
        %v570 = vpack.c.bf16 %v569, %v569
        %v572 = vsel %vm558, %v570, 0
        %vm574 = vcmask 1043456
        %v576 = vsel %vm574, %v510, 0
        %578 = vmatprep.subr.bf16.mxu0 0
        %579 = vmatpush1.bf16.msra.mxu0 %v576
        %580 = vmatprep.subr.bf16.mxu0 0
        %581 = vmatpush1.bf16.msra.mxu0 0
        %582 = vmatprep.subr.bf16.mxu0 0
        %583 = vmatpush1.bf16.msra.mxu0 0
        %584 = vmatprep.subr.bf16.mxu0 0
        %585 = vmatpush1.bf16.msra.mxu0 0
        %586 = vmatprep.subr.bf16.mxu0 0
        %587 = vmatpush1.bf16.msra.mxu0 0
        %588 = vmatprep.subr.bf16.mxu0 0
        %589 = vmatpush1.bf16.msra.mxu0 0
        %590 = vmatprep.subr.bf16.mxu0 0
        %591 = vmatpush1.bf16.msra.mxu0 0
        %592 = vmatprep.subr.bf16.mxu0 0
        %593 = vmatpush1.bf16.msra.mxu0 0
        %594 = vmatprep.subr.bf16.mxu0 0
        %595 = vmatpush1.bf16.msra.mxu0 0
        %596 = vmatprep.subr.bf16.mxu0 0
        %597 = vmatpush1.bf16.msra.mxu0 0
        %598 = vmatprep.subr.bf16.mxu0 0
        %599 = vmatpush1.bf16.msra.mxu0 0
        %600 = vmatprep.subr.bf16.mxu0 0
        %601 = vmatpush1.bf16.msra.mxu0 0
        %602 = vmatprep.subr.bf16.mxu0 0
        %603 = vmatpush1.bf16.msra.mxu0 0
        %604 = vmatprep.subr.bf16.mxu0 0
        %605 = vmatpush1.bf16.msra.mxu0 0
        %606 = vmatprep.subr.bf16.mxu0 0
        %607 = vmatpush1.bf16.msra.mxu0 0
        %608 = vmatprep.subr.bf16.mxu0 0
        %609 = vmatpush1.bf16.msra.mxu0 0
        %610 = vmatprep.mubr.bf16.mxu0 0
        %611 = vmatmul.mubr.bf16.gmra.mrb[0].mxu0 %v572
        %v612 = vpop.f32.mrb[0].mxu0
        %v613 = vadd.f32 0.0, %v612
        %v614 = vpop.f32.mrb[0].mxu0
        %v615 = vpop.f32.mrb[0].mxu0
        %v616 = vpop.f32.mrb[0].mxu0
        %617 = vdwg.mxu0
        %v618 = vpack.c.bf16 %v613, %v613
        %vm619 = vcmask 27648
        %620 = vst.msk [vmem:[#allocation4] sm:$0xf] %vm619, %v618
        %v621 = vld [vmem:[#allocation3] sm:$0xf]
        %v622 = vld [vmem:[#allocation2] sm:$0xf]
        %v623 = vld [vmem:[%s509] sm:$0xf]
        %v625 = vunpack.c.l.b16 %v621
        %v626 = vpack.c.b16 %v625, %v625
        %627 = vrot.lane.b32.xlu0 %v626, 124
        %v628 = vpop.permute.xlu0 %627
        %v630 = vunpack.c.l.b16 %v622
        %v631 = vpack.c.b16 %v630, %v630
        %632 = vrot.lane.b32.xlu0 %v631, 124
        %v633 = vpop.permute.xlu0 %632
        %v635 = vsel %vm511, %v628, 0
        %v638 = vsel %vm511, %v633, 0
        %640 = vmatprep.subr.bf16.mxu0 0
        %641 = vmatpush1.bf16.xpose.msra.mxu0 %v638
        %642 = vmatprep.subr.bf16.mxu0 0
        %643 = vmatpush1.bf16.xpose.msra.mxu0 0
        %644 = vmatprep.subr.bf16.mxu0 0
        %645 = vmatpush1.bf16.xpose.msra.mxu0 0
        %646 = vmatprep.subr.bf16.mxu0 0
        %647 = vmatpush1.bf16.xpose.msra.mxu0 0
        %648 = vmatprep.subr.bf16.mxu0 0
        %649 = vmatpush1.bf16.xpose.msra.mxu0 0
        %650 = vmatprep.subr.bf16.mxu0 0
        %651 = vmatpush1.bf16.xpose.msra.mxu0 0
        %652 = vmatprep.subr.bf16.mxu0 0
        %653 = vmatpush1.bf16.xpose.msra.mxu0 0
        %654 = vmatprep.subr.bf16.mxu0 0
        %655 = vmatpush1.bf16.xpose.msra.mxu0 0
        %656 = vmatprep.subr.bf16.mxu0 0
        %657 = vmatpush1.bf16.xpose.msra.mxu0 0
        %658 = vmatprep.subr.bf16.mxu0 0
        %659 = vmatpush1.bf16.xpose.msra.mxu0 0
        %660 = vmatprep.subr.bf16.mxu0 0
        %661 = vmatpush1.bf16.xpose.msra.mxu0 0
        %662 = vmatprep.subr.bf16.mxu0 0
        %663 = vmatpush1.bf16.xpose.msra.mxu0 0
        %664 = vmatprep.subr.bf16.mxu0 0
        %665 = vmatpush1.bf16.xpose.msra.mxu0 0
        %666 = vmatprep.subr.bf16.mxu0 0
        %667 = vmatpush1.bf16.xpose.msra.mxu0 0
        %668 = vmatprep.subr.bf16.mxu0 0
        %669 = vmatpush1.bf16.xpose.msra.mxu0 0
        %670 = vmatprep.subr.bf16.mxu0 0
        %671 = vmatpush1.bf16.xpose.msra.mxu0 0
        %672 = vmatprep.mubr.bf16.mxu0 0
        %673 = vmatmul.mubr.bf16.gmra.mrb[0].mxu0 %v635
        %v674 = vpop.f32.mrb[0].mxu0
        %v675 = vadd.f32 0.0, %v674
        %v676 = vpop.f32.mrb[0].mxu0
        %v677 = vpop.f32.mrb[0].mxu0
        %v678 = vpop.f32.mrb[0].mxu0
        %679 = vdwg.mxu0
        %v680 = vsel %vm558, %v675, -inf
        %681 = vmax.xlane.f32.xlu0 %v680
        %v682 = vpop.xlane.xlu0 %681
        %v683 = vsub.f32 %v675, %v682
        %v684 = vmul.f32 %v683, 1.442695
        %v685 = vpow.pop %v684
        %v686 = vsel %vm558, %v685, 0.0
        %687 = vadd.xlane.f32.xlu0 %v686
        %v688 = vpop.xlane.xlu0 %687
        %v689 = vrcp.pop %v688
        %v690 = vmul.f32 %v685, %v689
        %v691 = vpack.c.bf16 %v690, %v690
        %v693 = vunpack.c.l.b16 %v623
        %v694 = vpack.c.b16 %v693, %v693
        %695 = vrot.lane.b32.xlu0 %v694, 124
        %v696 = vpop.permute.xlu0 %695
        %v698 = vsel %vm558, %v691, 0
        %v701 = vsel %vm574, %v696, 0
        %703 = vmatprep.subr.bf16.mxu0 0
        %704 = vmatpush1.bf16.msra.mxu0 %v701
        %705 = vmatprep.subr.bf16.mxu0 0
        %706 = vmatpush1.bf16.msra.mxu0 0
        %707 = vmatprep.subr.bf16.mxu0 0
        %708 = vmatpush1.bf16.msra.mxu0 0
        %709 = vmatprep.subr.bf16.mxu0 0
        %710 = vmatpush1.bf16.msra.mxu0 0
        %711 = vmatprep.subr.bf16.mxu0 0
        %712 = vmatpush1.bf16.msra.mxu0 0
        %713 = vmatprep.subr.bf16.mxu0 0
        %714 = vmatpush1.bf16.msra.mxu0 0
        %715 = vmatprep.subr.bf16.mxu0 0
        %716 = vmatpush1.bf16.msra.mxu0 0
        %717 = vmatprep.subr.bf16.mxu0 0
        %718 = vmatpush1.bf16.msra.mxu0 0
        %719 = vmatprep.subr.bf16.mxu0 0
        %720 = vmatpush1.bf16.msra.mxu0 0
        %721 = vmatprep.subr.bf16.mxu0 0
        %722 = vmatpush1.bf16.msra.mxu0 0
        %723 = vmatprep.subr.bf16.mxu0 0
        %724 = vmatpush1.bf16.msra.mxu0 0
        %725 = vmatprep.subr.bf16.mxu0 0
        %726 = vmatpush1.bf16.msra.mxu0 0
        %727 = vmatprep.subr.bf16.mxu0 0
        %728 = vmatpush1.bf16.msra.mxu0 0
        %729 = vmatprep.subr.bf16.mxu0 0
        %730 = vmatpush1.bf16.msra.mxu0 0
        %731 = vmatprep.subr.bf16.mxu0 0
        %732 = vmatpush1.bf16.msra.mxu0 0
        %733 = vmatprep.subr.bf16.mxu0 0
        %734 = vmatpush1.bf16.msra.mxu0 0
        %735 = vmatprep.mubr.bf16.mxu0 0
        %736 = vmatmul.mubr.bf16.gmra.mrb[0].mxu0 %v698
        %v737 = vpop.f32.mrb[0].mxu0
        %v738 = vadd.f32 0.0, %v737
        %v739 = vpop.f32.mrb[0].mxu0
        %v740 = vpop.f32.mrb[0].mxu0
        %v741 = vpop.f32.mrb[0].mxu0
        %742 = vdwg.mxu0
        %v743 = vpack.c.bf16 %v738, %v738
        %v745 = vunpack.c.l.b16 %v743
        %v746 = vpack.c.b16 %v745, %v745
        %747 = vrot.lane.b32.xlu0 %v746, 4
        %v748 = vpop.permute.xlu0 %747
        %vm750 = vcmask 60448
        %751 = vst.msk [vmem:[#allocation4] sm:$0xf] %vm750, %v748
        %v752 = vld [vmem:[#allocation3] sm:$0xf]
        %v753 = vld [vmem:[#allocation2] sm:$0xf]
        %v754 = vld [vmem:[%s509] sm:$0xf]
        %v756 = vunpack.c.l.b16 %v752
        %v757 = vpack.c.b16 %v756, %v756
        %758 = vrot.lane.b32.xlu0 %v757, 120
        %v759 = vpop.permute.xlu0 %758
        %v761 = vunpack.c.l.b16 %v753
        %v762 = vpack.c.b16 %v761, %v761
        %763 = vrot.lane.b32.xlu0 %v762, 120
        %v764 = vpop.permute.xlu0 %763
        %v766 = vsel %vm511, %v759, 0
        %v769 = vsel %vm511, %v764, 0
        %771 = vmatprep.subr.bf16.mxu0 0
        %772 = vmatpush1.bf16.xpose.msra.mxu0 %v769
        %773 = vmatprep.subr.bf16.mxu0 0
        %774 = vmatpush1.bf16.xpose.msra.mxu0 0
        %775 = vmatprep.subr.bf16.mxu0 0
        %776 = vmatpush1.bf16.xpose.msra.mxu0 0
        %777 = vmatprep.subr.bf16.mxu0 0
        %778 = vmatpush1.bf16.xpose.msra.mxu0 0
        %779 = vmatprep.subr.bf16.mxu0 0
        %780 = vmatpush1.bf16.xpose.msra.mxu0 0
        %781 = vmatprep.subr.bf16.mxu0 0
        %782 = vmatpush1.bf16.xpose.msra.mxu0 0
        %783 = vmatprep.subr.bf16.mxu0 0
        %784 = vmatpush1.bf16.xpose.msra.mxu0 0
        %785 = vmatprep.subr.bf16.mxu0 0
        %786 = vmatpush1.bf16.xpose.msra.mxu0 0
        %787 = vmatprep.subr.bf16.mxu0 0
        %788 = vmatpush1.bf16.xpose.msra.mxu0 0
        %789 = vmatprep.subr.bf16.mxu0 0
        %790 = vmatpush1.bf16.xpose.msra.mxu0 0
        %791 = vmatprep.subr.bf16.mxu0 0
        %792 = vmatpush1.bf16.xpose.msra.mxu0 0
        %793 = vmatprep.subr.bf16.mxu0 0
        %794 = vmatpush1.bf16.xpose.msra.mxu0 0
        %795 = vmatprep.subr.bf16.mxu0 0
        %796 = vmatpush1.bf16.xpose.msra.mxu0 0
        %797 = vmatprep.subr.bf16.mxu0 0
        %798 = vmatpush1.bf16.xpose.msra.mxu0 0
        %799 = vmatprep.subr.bf16.mxu0 0
        %800 = vmatpush1.bf16.xpose.msra.mxu0 0
        %801 = vmatprep.subr.bf16.mxu0 0
        %802 = vmatpush1.bf16.xpose.msra.mxu0 0
        %803 = vmatprep.mubr.bf16.mxu0 0
        %804 = vmatmul.mubr.bf16.gmra.mrb[0].mxu0 %v766
        %v805 = vpop.f32.mrb[0].mxu0
        %v806 = vadd.f32 0.0, %v805
        %v807 = vpop.f32.mrb[0].mxu0
        %v808 = vpop.f32.mrb[0].mxu0
        %v809 = vpop.f32.mrb[0].mxu0
        %810 = vdwg.mxu0
        %v811 = vsel %vm558, %v806, -inf
        %812 = vmax.xlane.f32.xlu0 %v811
        %v813 = vpop.xlane.xlu0 %812
        %v814 = vsub.f32 %v806, %v813
        %v815 = vmul.f32 %v814, 1.442695
        %v816 = vpow.pop %v815
        %v817 = vsel %vm558, %v816, 0.0
        %818 = vadd.xlane.f32.xlu0 %v817
        %v819 = vpop.xlane.xlu0 %818
        %v820 = vrcp.pop %v819
        %v821 = vmul.f32 %v816, %v820
        %v822 = vpack.c.bf16 %v821, %v821
        %v824 = vunpack.c.l.b16 %v754
        %v825 = vpack.c.b16 %v824, %v824
        %826 = vrot.lane.b32.xlu0 %v825, 120
        %v827 = vpop.permute.xlu0 %826
        %v829 = vsel %vm558, %v822, 0
        %v832 = vsel %vm574, %v827, 0
        %834 = vmatprep.subr.bf16.mxu0 0
        %835 = vmatpush1.bf16.msra.mxu0 %v832
        %836 = vmatprep.subr.bf16.mxu0 0
        %837 = vmatpush1.bf16.msra.mxu0 0
        %838 = vmatprep.subr.bf16.mxu0 0
        %839 = vmatpush1.bf16.msra.mxu0 0
        %840 = vmatprep.subr.bf16.mxu0 0
        %841 = vmatpush1.bf16.msra.mxu0 0
        %842 = vmatprep.subr.bf16.mxu0 0
        %843 = vmatpush1.bf16.msra.mxu0 0
        %844 = vmatprep.subr.bf16.mxu0 0
        %845 = vmatpush1.bf16.msra.mxu0 0
        %846 = vmatprep.subr.bf16.mxu0 0
        %847 = vmatpush1.bf16.msra.mxu0 0
        %848 = vmatprep.subr.bf16.mxu0 0
        %849 = vmatpush1.bf16.msra.mxu0 0
        %850 = vmatprep.subr.bf16.mxu0 0
        %851 = vmatpush1.bf16.msra.mxu0 0
        %852 = vmatprep.subr.bf16.mxu0 0
        %853 = vmatpush1.bf16.msra.mxu0 0
        %854 = vmatprep.subr.bf16.mxu0 0
        %855 = vmatpush1.bf16.msra.mxu0 0
        %856 = vmatprep.subr.bf16.mxu0 0
        %857 = vmatpush1.bf16.msra.mxu0 0
        %858 = vmatprep.subr.bf16.mxu0 0
        %859 = vmatpush1.bf16.msra.mxu0 0
        %860 = vmatprep.subr.bf16.mxu0 0
        %861 = vmatpush1.bf16.msra.mxu0 0
        %862 = vmatprep.subr.bf16.mxu0 0
        %863 = vmatpush1.bf16.msra.mxu0 0
        %864 = vmatprep.subr.bf16.mxu0 0
        %865 = vmatpush1.bf16.msra.mxu0 0
        %866 = vmatprep.mubr.bf16.mxu0 0
        %867 = vmatmul.mubr.bf16.gmra.mrb[0].mxu0 %v829
        %v868 = vpop.f32.mrb[0].mxu0
        %v869 = vadd.f32 0.0, %v868
        %v870 = vpop.f32.mrb[0].mxu0
        %v871 = vpop.f32.mrb[0].mxu0
        %v872 = vpop.f32.mrb[0].mxu0
        %873 = vdwg.mxu0
        %v874 = vpack.c.bf16 %v869, %v869
        %v876 = vunpack.c.l.b16 %v874
        %v877 = vpack.c.b16 %v876, %v876
        %878 = vrot.lane.b32.xlu0 %v877, 8
        %v879 = vpop.permute.xlu0 %878
        %vm881 = vcmask 93248
        %882 = vst.msk [vmem:[#allocation4] sm:$0xf] %vm881, %v879
        %v883 = vld [vmem:[#allocation3] sm:$0xf]
        %v884 = vld [vmem:[#allocation2] sm:$0xf]
        %v885 = vld [vmem:[%s509] sm:$0xf]
        %v887 = vunpack.c.l.b16 %v883
        %v888 = vpack.c.b16 %v887, %v887
        %889 = vrot.lane.b32.xlu0 %v888, 116
        %v890 = vpop.permute.xlu0 %889
        %v892 = vunpack.c.l.b16 %v884
        %v893 = vpack.c.b16 %v892, %v892
        %894 = vrot.lane.b32.xlu0 %v893, 116
        %v895 = vpop.permute.xlu0 %894
        %v897 = vsel %vm511, %v890, 0
        %v900 = vsel %vm511, %v895, 0
        %902 = vmatprep.subr.bf16.mxu0 0
        %903 = vmatpush1.bf16.xpose.msra.mxu0 %v900
        %904 = vmatprep.subr.bf16.mxu0 0
        %905 = vmatpush1.bf16.xpose.msra.mxu0 0
        %906 = vmatprep.subr.bf16.mxu0 0
        %907 = vmatpush1.bf16.xpose.msra.mxu0 0
        %908 = vmatprep.subr.bf16.mxu0 0
        %909 = vmatpush1.bf16.xpose.msra.mxu0 0
        %910 = vmatprep.subr.bf16.mxu0 0
        %911 = vmatpush1.bf16.xpose.msra.mxu0 0
        %912 = vmatprep.subr.bf16.mxu0 0
        %913 = vmatpush1.bf16.xpose.msra.mxu0 0
        %914 = vmatprep.subr.bf16.mxu0 0
        %915 = vmatpush1.bf16.xpose.msra.mxu0 0
        %916 = vmatprep.subr.bf16.mxu0 0
        %917 = vmatpush1.bf16.xpose.msra.mxu0 0
        %918 = vmatprep.subr.bf16.mxu0 0
        %919 = vmatpush1.bf16.xpose.msra.mxu0 0
        %920 = vmatprep.subr.bf16.mxu0 0
        %921 = vmatpush1.bf16.xpose.msra.mxu0 0
        %922 = vmatprep.subr.bf16.mxu0 0
        %923 = vmatpush1.bf16.xpose.msra.mxu0 0
        %924 = vmatprep.subr.bf16.mxu0 0
        %925 = vmatpush1.bf16.xpose.msra.mxu0 0
        %926 = vmatprep.subr.bf16.mxu0 0
        %927 = vmatpush1.bf16.xpose.msra.mxu0 0
        %928 = vmatprep.subr.bf16.mxu0 0
        %929 = vmatpush1.bf16.xpose.msra.mxu0 0
        %930 = vmatprep.subr.bf16.mxu0 0
        %931 = vmatpush1.bf16.xpose.msra.mxu0 0
        %932 = vmatprep.subr.bf16.mxu0 0
        %933 = vmatpush1.bf16.xpose.msra.mxu0 0
        %934 = vmatprep.mubr.bf16.mxu0 0
        %935 = vmatmul.mubr.bf16.gmra.mrb[0].mxu0 %v897
        %v936 = vpop.f32.mrb[0].mxu0
        %v937 = vadd.f32 0.0, %v936
        %v938 = vpop.f32.mrb[0].mxu0
        %v939 = vpop.f32.mrb[0].mxu0
        %v940 = vpop.f32.mrb[0].mxu0
        %941 = vdwg.mxu0
        %v942 = vsel %vm558, %v937, -inf
        %943 = vmax.xlane.f32.xlu0 %v942
        %v944 = vpop.xlane.xlu0 %943
        %v945 = vsub.f32 %v937, %v944
        %v946 = vmul.f32 %v945, 1.442695
        %v947 = vpow.pop %v946
        %v948 = vsel %vm558, %v947, 0.0
        %949 = vadd.xlane.f32.xlu0 %v948
        %v950 = vpop.xlane.xlu0 %949
        %v951 = vrcp.pop %v950
        %v952 = vmul.f32 %v947, %v951
        %v953 = vpack.c.bf16 %v952, %v952
        %v955 = vunpack.c.l.b16 %v885
        %v956 = vpack.c.b16 %v955, %v955
        %957 = vrot.lane.b32.xlu0 %v956, 116
        %v958 = vpop.permute.xlu0 %957
        %v960 = vsel %vm558, %v953, 0
        %v963 = vsel %vm574, %v958, 0
        %965 = vmatprep.subr.bf16.mxu0 0
        %966 = vmatpush1.bf16.msra.mxu0 %v963
        %967 = vmatprep.subr.bf16.mxu0 0
        %968 = vmatpush1.bf16.msra.mxu0 0
        %969 = vmatprep.subr.bf16.mxu0 0
        %970 = vmatpush1.bf16.msra.mxu0 0
        %971 = vmatprep.subr.bf16.mxu0 0
        %972 = vmatpush1.bf16.msra.mxu0 0
        %973 = vmatprep.subr.bf16.mxu0 0
        %974 = vmatpush1.bf16.msra.mxu0 0
        %975 = vmatprep.subr.bf16.mxu0 0
        %976 = vmatpush1.bf16.msra.mxu0 0
        %977 = vmatprep.subr.bf16.mxu0 0
        %978 = vmatpush1.bf16.msra.mxu0 0
        %979 = vmatprep.subr.bf16.mxu0 0
        %980 = vmatpush1.bf16.msra.mxu0 0
        %981 = vmatprep.subr.bf16.mxu0 0
        %982 = vmatpush1.bf16.msra.mxu0 0
        %983 = vmatprep.subr.bf16.mxu0 0
        %984 = vmatpush1.bf16.msra.mxu0 0
        %985 = vmatprep.subr.bf16.mxu0 0
        %986 = vmatpush1.bf16.msra.mxu0 0
        %987 = vmatprep.subr.bf16.mxu0 0
        %988 = vmatpush1.bf16.msra.mxu0 0
        %989 = vmatprep.subr.bf16.mxu0 0
        %990 = vmatpush1.bf16.msra.mxu0 0
        %991 = vmatprep.subr.bf16.mxu0 0
        %992 = vmatpush1.bf16.msra.mxu0 0
        %993 = vmatprep.subr.bf16.mxu0 0
        %994 = vmatpush1.bf16.msra.mxu0 0
        %995 = vmatprep.subr.bf16.mxu0 0
        %996 = vmatpush1.bf16.msra.mxu0 0
        %997 = vmatprep.mubr.bf16.mxu0 0
        %998 = vmatmul.mubr.bf16.gmra.mrb[0].mxu0 %v960
        %v999 = vpop.f32.mrb[0].mxu0
        %v1000 = vadd.f32 0.0, %v999
        %v1001 = vpop.f32.mrb[0].mxu0
        %v1002 = vpop.f32.mrb[0].mxu0
        %v1003 = vpop.f32.mrb[0].mxu0
        %1004 = vdwg.mxu0
        %v1005 = vpack.c.bf16 %v1000, %v1000
        %v1007 = vunpack.c.l.b16 %v1005
        %v1008 = vpack.c.b16 %v1007, %v1007
        %1009 = vrot.lane.b32.xlu0 %v1008, 12
        %v1010 = vpop.permute.xlu0 %1009
        %vm1012 = vcmask 126048
        %1013 = vst.msk [vmem:[#allocation4] sm:$0xf] %vm1012, %v1010
        %v1014 = vld [vmem:[#allocation3] sm:$0xf]
        %v1015 = vld [vmem:[#allocation2] sm:$0xf]
        %v1016 = vld [vmem:[%s509] sm:$0xf]
        %v1018 = vunpack.c.l.b16 %v1014
        %v1019 = vpack.c.b16 %v1018, %v1018
        %1020 = vrot.lane.b32.xlu0 %v1019, 112
        %v1021 = vpop.permute.xlu0 %1020
        %v1023 = vunpack.c.l.b16 %v1015
        %v1024 = vpack.c.b16 %v1023, %v1023
        %1025 = vrot.lane.b32.xlu0 %v1024, 112
        %v1026 = vpop.permute.xlu0 %1025
        %v1028 = vsel %vm511, %v1021, 0
        %v1031 = vsel %vm511, %v1026, 0
        %1033 = vmatprep.subr.bf16.mxu0 0
        %1034 = vmatpush1.bf16.xpose.msra.mxu0 %v1031
        %1035 = vmatprep.subr.bf16.mxu0 0
        %1036 = vmatpush1.bf16.xpose.msra.mxu0 0
        %1037 = vmatprep.subr.bf16.mxu0 0
        %1038 = vmatpush1.bf16.xpose.msra.mxu0 0
        %1039 = vmatprep.subr.bf16.mxu0 0
        %1040 = vmatpush1.bf16.xpose.msra.mxu0 0
        %1041 = vmatprep.subr.bf16.mxu0 0
        %1042 = vmatpush1.bf16.xpose.msra.mxu0 0
        %1043 = vmatprep.subr.bf16.mxu0 0
        %1044 = vmatpush1.bf16.xpose.msra.mxu0 0
        %1045 = vmatprep.subr.bf16.mxu0 0
        %1046 = vmatpush1.bf16.xpose.msra.mxu0 0
        %1047 = vmatprep.subr.bf16.mxu0 0
        %1048 = vmatpush1.bf16.xpose.msra.mxu0 0
        %1049 = vmatprep.subr.bf16.mxu0 0
        %1050 = vmatpush1.bf16.xpose.msra.mxu0 0
        %1051 = vmatprep.subr.bf16.mxu0 0
        %1052 = vmatpush1.bf16.xpose.msra.mxu0 0
        %1053 = vmatprep.subr.bf16.mxu0 0
        %1054 = vmatpush1.bf16.xpose.msra.mxu0 0
        %1055 = vmatprep.subr.bf16.mxu0 0
        %1056 = vmatpush1.bf16.xpose.msra.mxu0 0
        %1057 = vmatprep.subr.bf16.mxu0 0
        %1058 = vmatpush1.bf16.xpose.msra.mxu0 0
        %1059 = vmatprep.subr.bf16.mxu0 0
        %1060 = vmatpush1.bf16.xpose.msra.mxu0 0
        %1061 = vmatprep.subr.bf16.mxu0 0
        %1062 = vmatpush1.bf16.xpose.msra.mxu0 0
        %1063 = vmatprep.subr.bf16.mxu0 0
        %1064 = vmatpush1.bf16.xpose.msra.mxu0 0
        %1065 = vmatprep.mubr.bf16.mxu0 0
        %1066 = vmatmul.mubr.bf16.gmra.mrb[0].mxu0 %v1028
        %v1067 = vpop.f32.mrb[0].mxu0
        %v1068 = vadd.f32 0.0, %v1067
        %v1069 = vpop.f32.mrb[0].mxu0
        %v1070 = vpop.f32.mrb[0].mxu0
        %v1071 = vpop.f32.mrb[0].mxu0
        %1072 = vdwg.mxu0
        %v1073 = vsel %vm558, %v1068, -inf
        %1074 = vmax.xlane.f32.xlu0 %v1073
        %v1075 = vpop.xlane.xlu0 %1074
        %v1076 = vsub.f32 %v1068, %v1075
        %v1077 = vmul.f32 %v1076, 1.442695
        %v1078 = vpow.pop %v1077
        %v1079 = vsel %vm558, %v1078, 0.0
        %1080 = vadd.xlane.f32.xlu0 %v1079
        %v1081 = vpop.xlane.xlu0 %1080
        %v1082 = vrcp.pop %v1081
        %v1083 = vmul.f32 %v1078, %v1082
        %v1084 = vpack.c.bf16 %v1083, %v1083
        %v1086 = vunpack.c.l.b16 %v1016
        %v1087 = vpack.c.b16 %v1086, %v1086
        %1088 = vrot.lane.b32.xlu0 %v1087, 112
        %v1089 = vpop.permute.xlu0 %1088
        %v1091 = vsel %vm558, %v1084, 0
        %v1094 = vsel %vm574, %v1089, 0
        %1096 = vmatprep.subr.bf16.mxu0 0
        %1097 = vmatpush1.bf16.msra.mxu0 %v1094
        %1098 = vmatprep.subr.bf16.mxu0 0
        %1099 = vmatpush1.bf16.msra.mxu0 0
        %1100 = vmatprep.subr.bf16.mxu0 0
        %1101 = vmatpush1.bf16.msra.mxu0 0
        %1102 = vmatprep.subr.bf16.mxu0 0
        %1103 = vmatpush1.bf16.msra.mxu0 0
        %1104 = vmatprep.subr.bf16.mxu0 0
        %1105 = vmatpush1.bf16.msra.mxu0 0
        %1106 = vmatprep.subr.bf16.mxu0 0
        %1107 = vmatpush1.bf16.msra.mxu0 0
        %1108 = vmatprep.subr.bf16.mxu0 0
        %1109 = vmatpush1.bf16.msra.mxu0 0
        %1110 = vmatprep.subr.bf16.mxu0 0
        %1111 = vmatpush1.bf16.msra.mxu0 0
        %1112 = vmatprep.subr.bf16.mxu0 0
        %1113 = vmatpush1.bf16.msra.mxu0 0
        %1114 = vmatprep.subr.bf16.mxu0 0
        %1115 = vmatpush1.bf16.msra.mxu0 0
        %1116 = vmatprep.subr.bf16.mxu0 0
        %1117 = vmatpush1.bf16.msra.mxu0 0
        %1118 = vmatprep.subr.bf16.mxu0 0
        %1119 = vmatpush1.bf16.msra.mxu0 0
        %1120 = vmatprep.subr.bf16.mxu0 0
        %1121 = vmatpush1.bf16.msra.mxu0 0
        %1122 = vmatprep.subr.bf16.mxu0 0
        %1123 = vmatpush1.bf16.msra.mxu0 0
        %1124 = vmatprep.subr.bf16.mxu0 0
        %1125 = vmatpush1.bf16.msra.mxu0 0
        %1126 = vmatprep.subr.bf16.mxu0 0
        %1127 = vmatpush1.bf16.msra.mxu0 0
        %1128 = vmatprep.mubr.bf16.mxu0 0
        %1129 = vmatmul.mubr.bf16.gmra.mrb[0].mxu0 %v1091
        %v1130 = vpop.f32.mrb[0].mxu0
        %v1131 = vadd.f32 0.0, %v1130
        %v1132 = vpop.f32.mrb[0].mxu0
        %v1133 = vpop.f32.mrb[0].mxu0
        %v1134 = vpop.f32.mrb[0].mxu0
        %1135 = vdwg.mxu0
        %v1136 = vpack.c.bf16 %v1131, %v1131
        %v1138 = vunpack.c.l.b16 %v1136
        %v1139 = vpack.c.b16 %v1138, %v1138
        %1140 = vrot.lane.b32.xlu0 %v1139, 16
        %v1141 = vpop.permute.xlu0 %1140
        %vm1143 = vcmask 158848
        %1144 = vst.msk [vmem:[#allocation4] sm:$0xf] %vm1143, %v1141
        %v1145 = vld [vmem:[#allocation3] sm:$0xf]
        %v1146 = vld [vmem:[#allocation2] sm:$0xf]
        %v1147 = vld [vmem:[%s509] sm:$0xf]
        %v1149 = vunpack.c.l.b16 %v1145
        %v1150 = vpack.c.b16 %v1149, %v1149
        %1151 = vrot.lane.b32.xlu0 %v1150, 108
        %v1152 = vpop.permute.xlu0 %1151
        %v1154 = vunpack.c.l.b16 %v1146
        %v1155 = vpack.c.b16 %v1154, %v1154
        %1156 = vrot.lane.b32.xlu0 %v1155, 108
        %v1157 = vpop.permute.xlu0 %1156
        %v1159 = vsel %vm511, %v1152, 0
        %v1162 = vsel %vm511, %v1157, 0
        %1164 = vmatprep.subr.bf16.mxu0 0
        %1165 = vmatpush1.bf16.xpose.msra.mxu0 %v1162
        %1166 = vmatprep.subr.bf16.mxu0 0
        %1167 = vmatpush1.bf16.xpose.msra.mxu0 0
        %1168 = vmatprep.subr.bf16.mxu0 0
        %1169 = vmatpush1.bf16.xpose.msra.mxu0 0
        %1170 = vmatprep.subr.bf16.mxu0 0
        %1171 = vmatpush1.bf16.xpose.msra.mxu0 0
        %1172 = vmatprep.subr.bf16.mxu0 0
        %1173 = vmatpush1.bf16.xpose.msra.mxu0 0
        %1174 = vmatprep.subr.bf16.mxu0 0
        %1175 = vmatpush1.bf16.xpose.msra.mxu0 0
        %1176 = vmatprep.subr.bf16.mxu0 0
        %1177 = vmatpush1.bf16.xpose.msra.mxu0 0
        %1178 = vmatprep.subr.bf16.mxu0 0
        %1179 = vmatpush1.bf16.xpose.msra.mxu0 0
        %1180 = vmatprep.subr.bf16.mxu0 0
        %1181 = vmatpush1.bf16.xpose.msra.mxu0 0
        %1182 = vmatprep.subr.bf16.mxu0 0
        %1183 = vmatpush1.bf16.xpose.msra.mxu0 0
        %1184 = vmatprep.subr.bf16.mxu0 0
        %1185 = vmatpush1.bf16.xpose.msra.mxu0 0
        %1186 = vmatprep.subr.bf16.mxu0 0
        %1187 = vmatpush1.bf16.xpose.msra.mxu0 0
        %1188 = vmatprep.subr.bf16.mxu0 0
        %1189 = vmatpush1.bf16.xpose.msra.mxu0 0
        %1190 = vmatprep.subr.bf16.mxu0 0
        %1191 = vmatpush1.bf16.xpose.msra.mxu0 0
        %1192 = vmatprep.subr.bf16.mxu0 0
        %1193 = vmatpush1.bf16.xpose.msra.mxu0 0
        %1194 = vmatprep.subr.bf16.mxu0 0
        %1195 = vmatpush1.bf16.xpose.msra.mxu0 0
        %1196 = vmatprep.mubr.bf16.mxu0 0
        %1197 = vmatmul.mubr.bf16.gmra.mrb[0].mxu0 %v1159
        %v1198 = vpop.f32.mrb[0].mxu0
        %v1199 = vadd.f32 0.0, %v1198
        %v1200 = vpop.f32.mrb[0].mxu0
        %v1201 = vpop.f32.mrb[0].mxu0
        %v1202 = vpop.f32.mrb[0].mxu0
        %1203 = vdwg.mxu0
        %v1204 = vsel %vm558, %v1199, -inf
        %1205 = vmax.xlane.f32.xlu0 %v1204
        %v1206 = vpop.xlane.xlu0 %1205
        %v1207 = vsub.f32 %v1199, %v1206
        %v1208 = vmul.f32 %v1207, 1.442695
        %v1209 = vpow.pop %v1208
        %v1210 = vsel %vm558, %v1209, 0.0
        %1211 = vadd.xlane.f32.xlu0 %v1210
        %v1212 = vpop.xlane.xlu0 %1211
        %v1213 = vrcp.pop %v1212
        %v1214 = vmul.f32 %v1209, %v1213
        %v1215 = vpack.c.bf16 %v1214, %v1214
        %v1217 = vunpack.c.l.b16 %v1147
        %v1218 = vpack.c.b16 %v1217, %v1217
        %1219 = vrot.lane.b32.xlu0 %v1218, 108
        %v1220 = vpop.permute.xlu0 %1219
        %v1222 = vsel %vm558, %v1215, 0
        %v1225 = vsel %vm574, %v1220, 0
        %1227 = vmatprep.subr.bf16.mxu0 0
        %1228 = vmatpush1.bf16.msra.mxu0 %v1225
        %1229 = vmatprep.subr.bf16.mxu0 0
        %1230 = vmatpush1.bf16.msra.mxu0 0
        %1231 = vmatprep.subr.bf16.mxu0 0
        %1232 = vmatpush1.bf16.msra.mxu0 0
        %1233 = vmatprep.subr.bf16.mxu0 0
        %1234 = vmatpush1.bf16.msra.mxu0 0
        %1235 = vmatprep.subr.bf16.mxu0 0
        %1236 = vmatpush1.bf16.msra.mxu0 0
        %1237 = vmatprep.subr.bf16.mxu0 0
        %1238 = vmatpush1.bf16.msra.mxu0 0
        %1239 = vmatprep.subr.bf16.mxu0 0
        %1240 = vmatpush1.bf16.msra.mxu0 0
        %1241 = vmatprep.subr.bf16.mxu0 0
        %1242 = vmatpush1.bf16.msra.mxu0 0
        %1243 = vmatprep.subr.bf16.mxu0 0
        %1244 = vmatpush1.bf16.msra.mxu0 0
        %1245 = vmatprep.subr.bf16.mxu0 0
        %1246 = vmatpush1.bf16.msra.mxu0 0
        %1247 = vmatprep.subr.bf16.mxu0 0
        %1248 = vmatpush1.bf16.msra.mxu0 0
        %1249 = vmatprep.subr.bf16.mxu0 0
        %1250 = vmatpush1.bf16.msra.mxu0 0
        %1251 = vmatprep.subr.bf16.mxu0 0
        %1252 = vmatpush1.bf16.msra.mxu0 0
        %1253 = vmatprep.subr.bf16.mxu0 0
        %1254 = vmatpush1.bf16.msra.mxu0 0
        %1255 = vmatprep.subr.bf16.mxu0 0
        %1256 = vmatpush1.bf16.msra.mxu0 0
        %1257 = vmatprep.subr.bf16.mxu0 0
        %1258 = vmatpush1.bf16.msra.mxu0 0
        %1259 = vmatprep.mubr.bf16.mxu0 0
        %1260 = vmatmul.mubr.bf16.gmra.mrb[0].mxu0 %v1222
        %v1261 = vpop.f32.mrb[0].mxu0
        %v1262 = vadd.f32 0.0, %v1261
        %v1263 = vpop.f32.mrb[0].mxu0
        %v1264 = vpop.f32.mrb[0].mxu0
        %v1265 = vpop.f32.mrb[0].mxu0
        %1266 = vdwg.mxu0
        %v1267 = vpack.c.bf16 %v1262, %v1262
        %v1269 = vunpack.c.l.b16 %v1267
        %v1270 = vpack.c.b16 %v1269, %v1269
        %1271 = vrot.lane.b32.xlu0 %v1270, 20
        %v1272 = vpop.permute.xlu0 %1271
        %vm1274 = vcmask 191648
        %1275 = vst.msk [vmem:[#allocation4] sm:$0xf] %vm1274, %v1272
        %v1276 = vld [vmem:[#allocation3] sm:$0xf]
        %v1277 = vld [vmem:[#allocation2] sm:$0xf]
        %v1278 = vld [vmem:[%s509] sm:$0xf]
        %v1280 = vunpack.c.l.b16 %v1276
        %v1281 = vpack.c.b16 %v1280, %v1280
        %1282 = vrot.lane.b32.xlu0 %v1281, 104
        %v1283 = vpop.permute.xlu0 %1282
        %v1285 = vunpack.c.l.b16 %v1277
        %v1286 = vpack.c.b16 %v1285, %v1285
        %1287 = vrot.lane.b32.xlu0 %v1286, 104
        %v1288 = vpop.permute.xlu0 %1287
        %v1290 = vsel %vm511, %v1283, 0
        %v1293 = vsel %vm511, %v1288, 0
        %1295 = vmatprep.subr.bf16.mxu0 0
        %1296 = vmatpush1.bf16.xpose.msra.mxu0 %v1293
        %1297 = vmatprep.subr.bf16.mxu0 0
        %1298 = vmatpush1.bf16.xpose.msra.mxu0 0
        %1299 = vmatprep.subr.bf16.mxu0 0
        %1300 = vmatpush1.bf16.xpose.msra.mxu0 0
        %1301 = vmatprep.subr.bf16.mxu0 0
        %1302 = vmatpush1.bf16.xpose.msra.mxu0 0
        %1303 = vmatprep.subr.bf16.mxu0 0
        %1304 = vmatpush1.bf16.xpose.msra.mxu0 0
        %1305 = vmatprep.subr.bf16.mxu0 0
        %1306 = vmatpush1.bf16.xpose.msra.mxu0 0
        %1307 = vmatprep.subr.bf16.mxu0 0
        %1308 = vmatpush1.bf16.xpose.msra.mxu0 0
        %1309 = vmatprep.subr.bf16.mxu0 0
        %1310 = vmatpush1.bf16.xpose.msra.mxu0 0
        %1311 = vmatprep.subr.bf16.mxu0 0
        %1312 = vmatpush1.bf16.xpose.msra.mxu0 0
        %1313 = vmatprep.subr.bf16.mxu0 0
        %1314 = vmatpush1.bf16.xpose.msra.mxu0 0
        %1315 = vmatprep.subr.bf16.mxu0 0
        %1316 = vmatpush1.bf16.xpose.msra.mxu0 0
        %1317 = vmatprep.subr.bf16.mxu0 0
        %1318 = vmatpush1.bf16.xpose.msra.mxu0 0
        %1319 = vmatprep.subr.bf16.mxu0 0
        %1320 = vmatpush1.bf16.xpose.msra.mxu0 0
        %1321 = vmatprep.subr.bf16.mxu0 0
        %1322 = vmatpush1.bf16.xpose.msra.mxu0 0
        %1323 = vmatprep.subr.bf16.mxu0 0
        %1324 = vmatpush1.bf16.xpose.msra.mxu0 0
        %1325 = vmatprep.subr.bf16.mxu0 0
        %1326 = vmatpush1.bf16.xpose.msra.mxu0 0
        %1327 = vmatprep.mubr.bf16.mxu0 0
        %1328 = vmatmul.mubr.bf16.gmra.mrb[0].mxu0 %v1290
        %v1329 = vpop.f32.mrb[0].mxu0
        %v1330 = vadd.f32 0.0, %v1329
        %v1331 = vpop.f32.mrb[0].mxu0
        %v1332 = vpop.f32.mrb[0].mxu0
        %v1333 = vpop.f32.mrb[0].mxu0
        %1334 = vdwg.mxu0
        %v1335 = vsel %vm558, %v1330, -inf
        %1336 = vmax.xlane.f32.xlu0 %v1335
        %v1337 = vpop.xlane.xlu0 %1336
        %v1338 = vsub.f32 %v1330, %v1337
        %v1339 = vmul.f32 %v1338, 1.442695
        %v1340 = vpow.pop %v1339
        %v1341 = vsel %vm558, %v1340, 0.0
        %1342 = vadd.xlane.f32.xlu0 %v1341
        %v1343 = vpop.xlane.xlu0 %1342
        %v1344 = vrcp.pop %v1343
        %v1345 = vmul.f32 %v1340, %v1344
        %v1346 = vpack.c.bf16 %v1345, %v1345
        %v1348 = vunpack.c.l.b16 %v1278
        %v1349 = vpack.c.b16 %v1348, %v1348
        %1350 = vrot.lane.b32.xlu0 %v1349, 104
        %v1351 = vpop.permute.xlu0 %1350
        %v1353 = vsel %vm558, %v1346, 0
        %v1356 = vsel %vm574, %v1351, 0
        %1358 = vmatprep.subr.bf16.mxu0 0
        %1359 = vmatpush1.bf16.msra.mxu0 %v1356
        %1360 = vmatprep.subr.bf16.mxu0 0
        %1361 = vmatpush1.bf16.msra.mxu0 0
        %1362 = vmatprep.subr.bf16.mxu0 0
        %1363 = vmatpush1.bf16.msra.mxu0 0
        %1364 = vmatprep.subr.bf16.mxu0 0
        %1365 = vmatpush1.bf16.msra.mxu0 0
        %1366 = vmatprep.subr.bf16.mxu0 0
        %1367 = vmatpush1.bf16.msra.mxu0 0
        %1368 = vmatprep.subr.bf16.mxu0 0
        %1369 = vmatpush1.bf16.msra.mxu0 0
        %1370 = vmatprep.subr.bf16.mxu0 0
        %1371 = vmatpush1.bf16.msra.mxu0 0
        %1372 = vmatprep.subr.bf16.mxu0 0
        %1373 = vmatpush1.bf16.msra.mxu0 0
        %1374 = vmatprep.subr.bf16.mxu0 0
        %1375 = vmatpush1.bf16.msra.mxu0 0
        %1376 = vmatprep.subr.bf16.mxu0 0
        %1377 = vmatpush1.bf16.msra.mxu0 0
        %1378 = vmatprep.subr.bf16.mxu0 0
        %1379 = vmatpush1.bf16.msra.mxu0 0
        %1380 = vmatprep.subr.bf16.mxu0 0
        %1381 = vmatpush1.bf16.msra.mxu0 0
        %1382 = vmatprep.subr.bf16.mxu0 0
        %1383 = vmatpush1.bf16.msra.mxu0 0
        %1384 = vmatprep.subr.bf16.mxu0 0
        %1385 = vmatpush1.bf16.msra.mxu0 0
        %1386 = vmatprep.subr.bf16.mxu0 0
        %1387 = vmatpush1.bf16.msra.mxu0 0
        %1388 = vmatprep.subr.bf16.mxu0 0
        %1389 = vmatpush1.bf16.msra.mxu0 0
        %1390 = vmatprep.mubr.bf16.mxu0 0
        %1391 = vmatmul.mubr.bf16.gmra.mrb[0].mxu0 %v1353
        %v1392 = vpop.f32.mrb[0].mxu0
        %v1393 = vadd.f32 0.0, %v1392
        %v1394 = vpop.f32.mrb[0].mxu0
        %v1395 = vpop.f32.mrb[0].mxu0
        %v1396 = vpop.f32.mrb[0].mxu0
        %1397 = vdwg.mxu0
        %v1398 = vpack.c.bf16 %v1393, %v1393
        %v1400 = vunpack.c.l.b16 %v1398
        %v1401 = vpack.c.b16 %v1400, %v1400
        %1402 = vrot.lane.b32.xlu0 %v1401, 24
        %v1403 = vpop.permute.xlu0 %1402
        %vm1405 = vcmask 224448
        %1406 = vst.msk [vmem:[#allocation4] sm:$0xf] %vm1405, %v1403
        %v1407 = vld [vmem:[#allocation3] sm:$0xf]
        %v1408 = vld [vmem:[#allocation2] sm:$0xf]
        %v1409 = vld [vmem:[%s509] sm:$0xf]
        %v1411 = vunpack.c.l.b16 %v1407
        %v1412 = vpack.c.b16 %v1411, %v1411
        %1413 = vrot.lane.b32.xlu0 %v1412, 100
        %v1414 = vpop.permute.xlu0 %1413
        %v1416 = vunpack.c.l.b16 %v1408
        %v1417 = vpack.c.b16 %v1416, %v1416
        %1418 = vrot.lane.b32.xlu0 %v1417, 100
        %v1419 = vpop.permute.xlu0 %1418
        %v1421 = vsel %vm511, %v1414, 0
        %v1424 = vsel %vm511, %v1419, 0
        %1426 = vmatprep.subr.bf16.mxu0 0
        %1427 = vmatpush1.bf16.xpose.msra.mxu0 %v1424
        %1428 = vmatprep.subr.bf16.mxu0 0
        %1429 = vmatpush1.bf16.xpose.msra.mxu0 0
        %1430 = vmatprep.subr.bf16.mxu0 0
        %1431 = vmatpush1.bf16.xpose.msra.mxu0 0
        %1432 = vmatprep.subr.bf16.mxu0 0
        %1433 = vmatpush1.bf16.xpose.msra.mxu0 0
        %1434 = vmatprep.subr.bf16.mxu0 0
        %1435 = vmatpush1.bf16.xpose.msra.mxu0 0
        %1436 = vmatprep.subr.bf16.mxu0 0
        %1437 = vmatpush1.bf16.xpose.msra.mxu0 0
        %1438 = vmatprep.subr.bf16.mxu0 0
        %1439 = vmatpush1.bf16.xpose.msra.mxu0 0
        %1440 = vmatprep.subr.bf16.mxu0 0
        %1441 = vmatpush1.bf16.xpose.msra.mxu0 0
        %1442 = vmatprep.subr.bf16.mxu0 0
        %1443 = vmatpush1.bf16.xpose.msra.mxu0 0
        %1444 = vmatprep.subr.bf16.mxu0 0
        %1445 = vmatpush1.bf16.xpose.msra.mxu0 0
        %1446 = vmatprep.subr.bf16.mxu0 0
        %1447 = vmatpush1.bf16.xpose.msra.mxu0 0
        %1448 = vmatprep.subr.bf16.mxu0 0
        %1449 = vmatpush1.bf16.xpose.msra.mxu0 0
        %1450 = vmatprep.subr.bf16.mxu0 0
        %1451 = vmatpush1.bf16.xpose.msra.mxu0 0
        %1452 = vmatprep.subr.bf16.mxu0 0
        %1453 = vmatpush1.bf16.xpose.msra.mxu0 0
        %1454 = vmatprep.subr.bf16.mxu0 0
        %1455 = vmatpush1.bf16.xpose.msra.mxu0 0
        %1456 = vmatprep.subr.bf16.mxu0 0
        %1457 = vmatpush1.bf16.xpose.msra.mxu0 0
        %1458 = vmatprep.mubr.bf16.mxu0 0
        %1459 = vmatmul.mubr.bf16.gmra.mrb[0].mxu0 %v1421
        %v1460 = vpop.f32.mrb[0].mxu0
        %v1461 = vadd.f32 0.0, %v1460
        %v1462 = vpop.f32.mrb[0].mxu0
        %v1463 = vpop.f32.mrb[0].mxu0
        %v1464 = vpop.f32.mrb[0].mxu0
        %1465 = vdwg.mxu0
        %v1466 = vsel %vm558, %v1461, -inf
        %1467 = vmax.xlane.f32.xlu0 %v1466
        %v1468 = vpop.xlane.xlu0 %1467
        %v1469 = vsub.f32 %v1461, %v1468
        %v1470 = vmul.f32 %v1469, 1.442695
        %v1471 = vpow.pop %v1470
        %v1472 = vsel %vm558, %v1471, 0.0
        %1473 = vadd.xlane.f32.xlu0 %v1472
        %v1474 = vpop.xlane.xlu0 %1473
        %v1475 = vrcp.pop %v1474
        %v1476 = vmul.f32 %v1471, %v1475
        %v1477 = vpack.c.bf16 %v1476, %v1476
        %v1479 = vunpack.c.l.b16 %v1409
        %v1480 = vpack.c.b16 %v1479, %v1479
        %1481 = vrot.lane.b32.xlu0 %v1480, 100
        %v1482 = vpop.permute.xlu0 %1481
        %v1484 = vsel %vm558, %v1477, 0
        %v1487 = vsel %vm574, %v1482, 0
        %1489 = vmatprep.subr.bf16.mxu0 0
        %1490 = vmatpush1.bf16.msra.mxu0 %v1487
        %1491 = vmatprep.subr.bf16.mxu0 0
        %1492 = vmatpush1.bf16.msra.mxu0 0
        %1493 = vmatprep.subr.bf16.mxu0 0
        %1494 = vmatpush1.bf16.msra.mxu0 0
        %1495 = vmatprep.subr.bf16.mxu0 0
        %1496 = vmatpush1.bf16.msra.mxu0 0
        %1497 = vmatprep.subr.bf16.mxu0 0
        %1498 = vmatpush1.bf16.msra.mxu0 0
        %1499 = vmatprep.subr.bf16.mxu0 0
        %1500 = vmatpush1.bf16.msra.mxu0 0
        %1501 = vmatprep.subr.bf16.mxu0 0
        %1502 = vmatpush1.bf16.msra.mxu0 0
        %1503 = vmatprep.subr.bf16.mxu0 0
        %1504 = vmatpush1.bf16.msra.mxu0 0
        %1505 = vmatprep.subr.bf16.mxu0 0
        %1506 = vmatpush1.bf16.msra.mxu0 0
        %1507 = vmatprep.subr.bf16.mxu0 0
        %1508 = vmatpush1.bf16.msra.mxu0 0
        %1509 = vmatprep.subr.bf16.mxu0 0
        %1510 = vmatpush1.bf16.msra.mxu0 0
        %1511 = vmatprep.subr.bf16.mxu0 0
        %1512 = vmatpush1.bf16.msra.mxu0 0
        %1513 = vmatprep.subr.bf16.mxu0 0
        %1514 = vmatpush1.bf16.msra.mxu0 0
        %1515 = vmatprep.subr.bf16.mxu0 0
        %1516 = vmatpush1.bf16.msra.mxu0 0
        %1517 = vmatprep.subr.bf16.mxu0 0
        %1518 = vmatpush1.bf16.msra.mxu0 0
        %1519 = vmatprep.subr.bf16.mxu0 0
        %1520 = vmatpush1.bf16.msra.mxu0 0
        %1521 = vmatprep.mubr.bf16.mxu0 0
        %1522 = vmatmul.mubr.bf16.gmra.mrb[0].mxu0 %v1484
        %v1523 = vpop.f32.mrb[0].mxu0
        %v1524 = vadd.f32 0.0, %v1523
        %v1525 = vpop.f32.mrb[0].mxu0
        %v1526 = vpop.f32.mrb[0].mxu0
        %v1527 = vpop.f32.mrb[0].mxu0
        %1528 = vdwg.mxu0
        %v1529 = vpack.c.bf16 %v1524, %v1524
        %v1531 = vunpack.c.l.b16 %v1529
        %v1532 = vpack.c.b16 %v1531, %v1531
        %1533 = vrot.lane.b32.xlu0 %v1532, 28
        %v1534 = vpop.permute.xlu0 %1533
        %vm1536 = vcmask 257248
        %1537 = vst.msk [vmem:[#allocation4] sm:$0xf] %vm1536, %v1534
        %v1538 = vld [vmem:[#allocation4] sm:$0xf]
        %v1539 = vld [vmem:[#allocation13] sm:$0xf]
        %v1540 = vld [vmem:[#allocation13 + $0x4] sm:$0xf]
        %v1541 = vld [vmem:[#allocation13 + $0x8] sm:$0xf]
        %v1542 = vld [vmem:[#allocation13 + $0xc] sm:$0xf]
        %v1543 = vld [vmem:[%s5] sm:$0x1]
        %v1545 = vlaneseq
        %v1546 = vshrl.u32 %v1545, 7
        %v1547 = vsub.s32 0, %v1546
        %v1548 = vrot.slane %v1543, %v1547
        %v1554 = vunpack.c.l.b16 %v1539
        %v1555 = vunpack.c.l.b16 %v1540
        %v1556 = vunpack.c.l.b16 %v1541
        %v1557 = vunpack.c.l.b16 %v1542
        %v1558 = vpack.c.b16 %v1555, %v1554
        %v1559 = vpack.c.b16 %v1557, %v1556
        %v1563 = vsel %vm460, %v1538, 0
        %1565 = vmatprep.subr.bf16.mxu0 0
        %1566 = vmatpush1.bf16.msra.mxu0 %v1558
        %1567 = vmatprep.subr.bf16.mxu0 0
        %1568 = vmatpush1.bf16.msra.mxu0 %v1559
        %1569 = vmatprep.subr.bf16.mxu0 0
        %1570 = vmatpush1.bf16.msra.mxu0 0
        %1571 = vmatprep.subr.bf16.mxu0 0
        %1572 = vmatpush1.bf16.msra.mxu0 0
        %1573 = vmatprep.subr.bf16.mxu0 0
        %1574 = vmatpush1.bf16.msra.mxu0 0
        %1575 = vmatprep.subr.bf16.mxu0 0
        %1576 = vmatpush1.bf16.msra.mxu0 0
        %1577 = vmatprep.subr.bf16.mxu0 0
        %1578 = vmatpush1.bf16.msra.mxu0 0
        %1579 = vmatprep.subr.bf16.mxu0 0
        %1580 = vmatpush1.bf16.msra.mxu0 0
        %1581 = vmatprep.subr.bf16.mxu0 0
        %1582 = vmatpush1.bf16.msra.mxu0 0
        %1583 = vmatprep.subr.bf16.mxu0 0
        %1584 = vmatpush1.bf16.msra.mxu0 0
        %1585 = vmatprep.subr.bf16.mxu0 0
        %1586 = vmatpush1.bf16.msra.mxu0 0
        %1587 = vmatprep.subr.bf16.mxu0 0
        %1588 = vmatpush1.bf16.msra.mxu0 0
        %1589 = vmatprep.subr.bf16.mxu0 0
        %1590 = vmatpush1.bf16.msra.mxu0 0
        %1591 = vmatprep.subr.bf16.mxu0 0
        %1592 = vmatpush1.bf16.msra.mxu0 0
        %1593 = vmatprep.subr.bf16.mxu0 0
        %1594 = vmatpush1.bf16.msra.mxu0 0
        %1595 = vmatprep.subr.bf16.mxu0 0
        %1596 = vmatpush1.bf16.msra.mxu0 0
        %1597 = vmatprep.mubr.bf16.mxu0 0
        %1598 = vmatmul.mubr.bf16.gmra.mrb[0].mxu0 %v1563
        %v1599 = vpop.f32.mrb[0].mxu0
        %v1600 = vadd.f32 %v1548, %v1599
        %v1601 = vpop.f32.mrb[0].mxu0
        %v1602 = vpop.f32.mrb[0].mxu0
        %v1603 = vpop.f32.mrb[0].mxu0
        %1604 = vdwg.mxu0
        %1605 = vst.msk [vmem:[%s363] sm:$0xff] %vm460, %v1600
        %s1606 = sand.u32 %s187, 1
        %s1607 = scalar_lea.sflag [#allocation7], %s1606
        %s1608 = sand.u32 %s187, 1
        %s1609 = smul.addr %s1608, 8
        %s1610 = scalar_lea.vmem [#allocation14], %s1609
        // Predicated region
        $region69: #{tpu_custom_call.1} parent=43 // pred_check
          %p1611 = pneg %p197
        $region70: #{tpu_custom_call.1} parent=43 // pred_check_branch
          %1613 = sbr.rel (%p1611) target = $region72
        $region71: #{tpu_custom_call.1} parent=43 // pred_region
          %s1615 = ssub.s32 128, 128
          %1616 = vsyncadd %s1607, %s1615
          %s1617 = sadd.s32 %s32, %s31
          %s1618 = smul.addr %s1617, 128
          %s1619 = scalar_lea.hbm %s6, %s1618
          %s1621 = sshll.u32 %s1610, 4
          %s1622 = int_to_ptr.vmem [resolvable:$true] %s1621
          %1624 = dma.vmem_to_hbm [thread:$0]  %s1622, 128, %s1619, %s1607
        $region72: #{tpu_custom_call.1} parent=43 // pred_fallthru
          _
      $region44: #{tpu_custom_call.1} parent=5 // pred_fallthru
        _
      %p1625 = scmp.le.s32.totalorder 2, %s22
      // Predicated region
      $region73: #{tpu_custom_call.1} parent=5 // pred_check
        %p1626 = pneg %p1625
      $region74: #{tpu_custom_call.1} parent=5 // pred_check_branch
        %1628 = sbr.rel (%p1626) target = $region76
      $region75: #{tpu_custom_call.1} parent=5 // pred_region
        %s1629 = ssub.s32 %s22, 2
        // Predicated region
        $region77: #{tpu_custom_call.1} parent=75 // pred_check
          %p1630 = pneg %p203
        $region78: #{tpu_custom_call.1} parent=75 // pred_check_branch
          %1632 = sbr.rel (%p1630) target = $region80
        $region79: #{tpu_custom_call.1} parent=75 // pred_region
          %s1633 = sand.u32 %s188, 1
          %s1634 = scalar_lea.sflag [#allocation7], %s1633
          %s1635 = sand.u32 %s188, 1
          %s1636 = smul.addr %s1635, 8
          %s1637 = scalar_lea.vmem [#allocation14], %s1636
          %1638 = dma.done %s1634, 128
        $region80: #{tpu_custom_call.1} parent=75 // pred_fallthru
          _
      $region76: #{tpu_custom_call.1} parent=5 // pred_fallthru
        _
    $region6: #{tpu_custom_call.1} parent=1 // loop_footer
      %s26 = sadd.s32 1, %s22
    $region7: #{tpu_custom_call.1} parent=1 // loop_footer_branch
      %21 = sbr.rel target = $region3
    $region8: #{tpu_custom_call.1} parent=1 // loop_exit
      _
    %1639 = vsyncpa [#allocation6], 1
    %s1640 = scalar_lea.sflag [#allocation6], 1
    %1641 = vsyncpa %s1640, 1
    %1642 = vsyncpa [#allocation9], 1
    %s1643 = scalar_lea.sflag [#allocation9], 1
    %1644 = vsyncpa %s1643, 1
    %1645 = vsyncpa [#allocation12], 1
    %1646 = vsyncpa [#allocation7], 1
    %s1647 = scalar_lea.sflag [#allocation7], 1
    %1648 = vsyncpa %s1647, 1

</llo_original>
